<compile_context>
chip_gen: v5e
topology: v5e:2x2
jax: 0.10.0
libtpu: 0.0.40
codegen_flags: <defaults>
</compile_context>

<pallas_src>
import functools

import numpy as np
import jax
import jax.numpy as jnp
from jax.experimental import pallas as pl
from jax.experimental.pallas import tpu as pltpu

# ----- synthetic epsilon-predictor ("unet" stand-in) configuration ----------
HIDDEN = 16      # hidden channels of the stand-in UNet
EMB = 32         # sinusoidal timestep-embedding width
PADW = 128       # zero halo (lanes) on each side of the flattened spatial axis
# TODO(synk): the real ADM UNet (guided-diffusion lsun_bedroom checkpoint) cannot
# be loaded here; a small deterministic 2-layer 3x3-conv net with the same I/O
# contract (predicts 2*C channels = [eps mean | variance]) stands in for it.
# Weights/activations are kept in f32 (bf16 MXU inputs are a further win on
# v6e/v7x); at 16x16 everything fits in VMEM, so no spatial grid is needed
# (a spatial tile axis + vmem_limit_bytes would be added for e.g. 256x256).


# =============================== Pallas kernels ==============================

def _fill_col(pad_ref, col_ref, mask_l, mask_r, nrows, kpad, W, HW):
    """Scatter the 9 shifted 3x3-tap windows of `pad_ref` into the im2col slab.

    pad_ref : (nrows, PADW + HW + PADW) zero-haloed, spatially flattened rows
    col_ref : (9*kpad, HW) im2col slab; tap k occupies rows [k*kpad, k*kpad+nrows)
    mask_l/r: (nrows, HW) multiplicative masks zeroing the horizontal wrap-around
              positions for dx = -1 / dx = +1 (vertical OOB is handled by the halo)
    """
    k = 0
    for dy in (-1, 0, 1):
        for dx in (-1, 0, 1):
            off = PADW + dy * W + dx
            tap = pad_ref[:, off:off + HW]            # shifted spatial window
            if dx == -1:
                tap = tap * mask_l
            elif dx == 1:
                tap = tap * mask_r
            col_ref[k * kpad:k * kpad + nrows, :] = tap
            k += 1


def _fused_step_kernel(coef_ref, temb_ref, masks_ref, w1_ref, b1_ref, w2_ref,
                       b2_ref, x_ref, o_ref,
                       pad1_ref, pad2_ref, col1_ref, col2_ref,
                       *, C, H, W, F1, KP1):
    """One full DDIM step for one batch element (grid axis = batch).

    Fuses: in-VMEM im2col -> 3x3 conv (+bias+temb, SiLU) -> in-VMEM im2col ->
    3x3 conv (+bias) -> eps split -> DDIM update, all on a lane-dense
    (channels, H*W) layout.

    coef (SMEM f32[8]) = [1/sqrt(a_t), sqrt(1-a_t), sqrt(a_p), sqrt(1-a_p),
                          clip_flag, pad, pad, pad]
    """
    HW = H * W

    # Fresh zeros every grid step (cheap; keeps the kernel megacore-safe since
    # scratch is per-core): only the halo columns / tap-padding rows matter.
    pad1_ref[...] = jnp.zeros_like(pad1_ref)
    pad2_ref[...] = jnp.zeros_like(pad2_ref)
    col1_ref[...] = jnp.zeros_like(col1_ref)

    x = x_ref[0]                              # (C, HW), HW lanes -> lane dense
    mask_l = masks_ref[0]                     # (F1, HW)
    mask_r = masks_ref[1]

    # ---- layer 1: 3x3 conv + bias + timestep embedding + SiLU ----
    pad1_ref[:, PADW:PADW + HW] = x
    _fill_col(pad1_ref, col1_ref, mask_l[0:C, :], mask_r[0:C, :], C, KP1, W, HW)
    h = jnp.dot(w1_ref[...], col1_ref[...],
                preferred_element_type=jnp.float32)   # (F1, HW)
    h = h + b1_ref[...] + temb_ref[...]               # (F1,1) lane-broadcast
    h = h * (1.0 / (1.0 + jnp.exp(-h)))               # SiLU

    # ---- layer 2: 3x3 conv + bias -> [eps mean | variance] (2C, HW) ----
    pad2_ref[:, PADW:PADW + HW] = h
    _fill_col(pad2_ref, col2_ref, mask_l, mask_r, F1, F1, W, HW)
    out2 = jnp.dot(w2_ref[...], col2_ref[...],
                   preferred_element_type=jnp.float32)
    out2 = out2 + b2_ref[...]
    eps = out2[0:C, :]                                # split(channels)[0]

    # ---- fused DDIM update (shared by inversion and reconstruction) ----
    inv_sa_t = coef_ref[0]
    sb_t = coef_ref[1]
    sa_p = coef_ref[2]
    sb_p = coef_ref[3]
    clip = coef_ref[4]
    pred_x0 = (x - sb_t * eps) * inv_sa_t             # multiply, not divide
    clipped = jnp.clip(pred_x0, -1.0, 1.0)
    pred_x0 = pred_x0 + (clipped - pred_x0) * clip    # clip iff clip_flag == 1
    o_ref[0] = sa_p * pred_x0 + sb_p * eps


def _dire_kernel(x_ref, r_ref, o_ref):
    o_ref[...] = jnp.abs(x_ref[...] - r_ref[...])


# ========================= wrappers around pallas_call ========================

def _make_fused_step(B, C, H, W, F1, KP1):
    HW = H * W
    P = HW + 2 * PADW
    assert W + 1 <= PADW, "spatial width too large for the fixed halo"

    kern = functools.partial(_fused_step_kernel, C=C, H=H, W=W, F1=F1, KP1=KP1)

    def cspec(shape):                      # whole array, resident across grid
        nd = len(shape)
        return pl.BlockSpec(shape, lambda b, _nd=nd: (0,) * _nd)

    xblk = pl.BlockSpec((1, C, HW), lambda b: (b, 0, 0))

    return pl.pallas_call(
        kern,
        out_shape=jax.ShapeDtypeStruct((B, C, HW), jnp.float32),
        grid=(B,),
        in_specs=[
            pl.BlockSpec(memory_space=pltpu.MemorySpace.SMEM),   # coef
            cspec((F1, 1)),                                      # temb(t) proj
            cspec((2, F1, HW)),                                  # wrap masks
            cspec((F1, 9 * KP1)),                                # folded conv1 W
            cspec((F1, 1)),                                      # conv1 bias
            cspec((2 * C, 9 * F1)),                              # folded conv2 W
            cspec((2 * C, 1)),                                   # conv2 bias
            xblk,                                                # state
        ],
        out_specs=xblk,
        scratch_shapes=[
            pltpu.VMEM((C, P), jnp.float32),            # padded input rows
            pltpu.VMEM((F1, P), jnp.float32),           # padded hidden rows
            pltpu.VMEM((9 * KP1, HW), jnp.float32),     # im2col slab, layer 1
            pltpu.VMEM((9 * F1, HW), jnp.float32),      # im2col slab, layer 2
        ],
        compiler_params=pltpu.CompilerParams(
            dimension_semantics=("parallel",)),
    )


@jax.jit
def _run(params, x_nchw, coefs_inv, ts_inv, coefs_rec, ts_rec):
    B, C, H, W = x_nchw.shape
    HW = H * W
    F1 = params["wt"].shape[1]
    KP1 = ((C + 7) // 8) * 8               # pad tap groups to sublane multiples

    x_flat = x_nchw.reshape(B, C, HW)      # NCHW -> lane-dense (B, C, HW)

    # ---- fold conv weights: (9, Cin, F) -> (F, 9*kpad), tap-major columns ----
    def fold(w, kpad):
        taps, cin, f = w.shape
        wf = jnp.zeros((f, taps * kpad), jnp.float32)
        for k in range(taps):
            wf = wf.at[:, k * kpad:k * kpad + cin].set(w[k].T)
        return wf

    w1f = fold(params["w1"], KP1)                        # (F1, 9*KP1)
    w2f = fold(params["w2"], F1)                         # (2C, 9*F1)
    b1 = params["b1"].reshape(F1, 1)
    b2 = params["b2"].reshape(2 * C, 1)

    # ---- horizontal-wrap masks for the in-kernel im2col (dx = -1 / +1) ----
    xcoord = jnp.arange(HW, dtype=jnp.int32) % W
    not_left = (xcoord > 0).astype(jnp.float32)
    not_right = (xcoord < W - 1).astype(jnp.float32)
    masks = jnp.stack([jnp.tile(not_left[None, :], (F1, 1)),
                       jnp.tile(not_right[None, :], (F1, 1))])   # (2, F1, HW)

    # ---- timestep-embedding projection for every scheduled timestep ----
    def temb_table(ts):
        half = EMB // 2
        freqs = jnp.exp(-jnp.log(10000.0) *
                        jnp.arange(half, dtype=jnp.float32) / half)
        ang = ts[:, None] * freqs[None, :]
        emb = jnp.concatenate([jnp.cos(ang), jnp.sin(ang)], axis=-1)   # (T, EMB)
        return (emb @ params["wt"] + params["bt"])[:, :, None]         # (T, F1, 1)

    step = _make_fused_step(B, C, H, W, F1, KP1)

    def body(z, per_step):
        coef, temb = per_step
        z = step(coef, temb, masks, w1f, b1, w2f, b2, z)
        return z, None

    # ---- inversion (no clipping), then reconstruction (clip_sample=True) ----
    noise, _ = jax.lax.scan(body, x_flat, (coefs_inv, temb_table(ts_inv)))
    recon, _ = jax.lax.scan(body, noise, (coefs_rec, temb_table(ts_rec)))

    dire = pl.pallas_call(
        _dire_kernel,
        out_shape=jax.ShapeDtypeStruct((B, C, HW), jnp.float32),
        in_specs=[pl.BlockSpec(memory_space=pltpu.MemorySpace.VMEM)] * 2,
        out_specs=pl.BlockSpec(memory_space=pltpu.MemorySpace.VMEM),
    )(x_flat, recon)

    return dire.reshape(B, C, H, W), recon.reshape(B, C, H, W)


# ============================ scheduler & params ==============================

def make_scheduler(n_steps, num_train_timesteps=1000,
                   beta_start=1e-4, beta_end=0.02, steps_offset=1):
    """DDIMScheduler(beta_schedule='linear', clip_sample=True,
    prediction_type='epsilon', set_alpha_to_one=False, steps_offset=1)."""
    betas = np.linspace(beta_start, beta_end, num_train_timesteps, dtype=np.float64)
    alphas_cumprod = np.cumprod(1.0 - betas)
    step_ratio = num_train_timesteps // n_steps
    timesteps = (np.arange(n_steps) * step_ratio).round()[::-1].astype(np.int64)
    timesteps = timesteps + steps_offset
    return {
        "timesteps": timesteps,                           # descending
        "alphas_cumprod": alphas_cumprod,
        "step_ratio": step_ratio,
        "final_alpha_cumprod": float(alphas_cumprod[0]),  # set_alpha_to_one=False
    }


def init_params(key, channels, hidden=HIDDEN, emb=EMB):
    k1, k2, k3 = jax.random.split(key, 3)
    return {
        "w1": jax.random.normal(k1, (9, channels, hidden), jnp.float32) * 0.1,
        "b1": jnp.zeros((1, hidden), jnp.float32),
        "wt": jax.random.normal(k2, (emb, hidden), jnp.float32) * 0.1,
        "bt": jnp.zeros((1, hidden), jnp.float32),
        "w2": jax.random.normal(k3, (9, hidden, 2 * channels), jnp.float32) * 0.05,
        "b2": jnp.zeros((1, 2 * channels), jnp.float32),
    }


def adm_dire_forward(params, sched, x, n_steps=None):
    """DIRE(x): DDIM-invert x to noise, reconstruct, return (|x - recon|, recon)."""
    del n_steps                              # implied by sched["timesteps"]
    acp = sched["alphas_cumprod"]
    timesteps = sched["timesteps"]           # descending
    ratio = sched["step_ratio"]

    def row(a_t, a_p, clip):                 # note: 1/sqrt(a_t) precomputed
        return [a_t ** -0.5, (1.0 - a_t) ** 0.5, a_p ** 0.5, (1.0 - a_p) ** 0.5,
                1.0 if clip else 0.0, 0.0, 0.0, 0.0]

    # ---- inversion (_invert): no clipping; scale_model_input is identity ----
    rev = timesteps[::-1]
    inv_rows, inv_ts = [], []
    for i in range(len(rev) - 1):
        t, tn = int(rev[i]), int(rev[i + 1])
        inv_rows.append(row(float(acp[t]), float(acp[tn]), clip=False))
        inv_ts.append(float(t))

    # ---- reconstruction (_reconstruct): scheduler.step, clip_sample=True, eta=0 ----
    rec_rows, rec_ts = [], []
    for t in timesteps:
        t = int(t)
        pt = t - ratio
        a_p = float(acp[pt]) if pt >= 0 else sched["final_alpha_cumprod"]
        rec_rows.append(row(float(acp[t]), a_p, clip=True))
        rec_ts.append(float(t))

    return _run(params, x,
                jnp.array(inv_rows, dtype=jnp.float32),
                jnp.array(inv_ts, dtype=jnp.float32),
                jnp.array(rec_rows, dtype=jnp.float32),
                jnp.array(rec_ts, dtype=jnp.float32))


# ==================================== main ====================================

if __name__ == "__main__":
    B, C, H, W = 2, 4, 16, 16
    n_steps = 4

    key = jax.random.PRNGKey(0)
    kx, kp = jax.random.split(key)
    x = jax.random.uniform(kx, (B, C, H, W), jnp.float32, minval=-1.0, maxval=1.0)
    params = init_params(kp, C)
    sched = make_scheduler(n_steps)

    dire, recon = adm_dire_forward(params, sched, x, n_steps)
    jax.block_until_ready((dire, recon))
    assert dire.shape == (B, C, H, W) and recon.shape == (B, C, H, W)
    assert bool(jnp.all(jnp.isfinite(dire))) and bool(jnp.all(jnp.isfinite(recon)))
    print("KERNEL_OK")
</pallas_src>

<mosaic_0001>
module attributes {stable_mosaic.version = 11 : i64} {
  func.func @_fused_step_kernel(%arg0: i32, %arg1: memref<8xf32, #tpu.memory_space<smem>>, %arg2: memref<16x1xf32, #tpu.memory_space<vmem>>, %arg3: memref<2x16x256xf32, #tpu.memory_space<vmem>>, %arg4: memref<16x72xf32, #tpu.memory_space<vmem>>, %arg5: memref<16x1xf32, #tpu.memory_space<vmem>>, %arg6: memref<8x144xf32, #tpu.memory_space<vmem>>, %arg7: memref<8x1xf32, #tpu.memory_space<vmem>>, %arg8: memref<1x4x256xf32, #tpu.memory_space<vmem>>, %arg9: memref<1x4x256xf32, #tpu.memory_space<vmem>>, %arg10: memref<4x512xf32, #tpu.memory_space<vmem>>, %arg11: memref<16x512xf32, #tpu.memory_space<vmem>>, %arg12: memref<72x256xf32, #tpu.memory_space<vmem>>, %arg13: memref<144x256xf32, #tpu.memory_space<vmem>>) attributes {dimension_semantics = [#tpu.dimension_semantics<parallel>], iteration_bounds = array<i64: 2>, scalar_prefetch = 0 : i64, scratch_operands = 4 : i64, tpu.core_type = #tpu.core_type<tc>, window_params = [{transform_indices = @transform_0, window_bounds = array<i64: 8>}, {pipeline_mode = #tpu.pipeline_mode<synchronous>, transform_indices = @transform_1, window_bounds = array<i64: 16, 1>}, {pipeline_mode = #tpu.pipeline_mode<synchronous>, transform_indices = @transform_2, window_bounds = array<i64: 2, 16, 256>}, {pipeline_mode = #tpu.pipeline_mode<synchronous>, transform_indices = @transform_3, window_bounds = array<i64: 16, 72>}, {pipeline_mode = #tpu.pipeline_mode<synchronous>, transform_indices = @transform_4, window_bounds = array<i64: 16, 1>}, {pipeline_mode = #tpu.pipeline_mode<synchronous>, transform_indices = @transform_5, window_bounds = array<i64: 8, 144>}, {pipeline_mode = #tpu.pipeline_mode<synchronous>, transform_indices = @transform_6, window_bounds = array<i64: 8, 1>}, {transform_indices = @transform_7, window_bounds = array<i64: 1, 4, 256>}, {transform_indices = @transform_8, window_bounds = array<i64: 1, 4, 256>}]} {
    %cst = arith.constant 0.000000e+00 : f32
    %0 = vector.broadcast %cst : f32 to vector<4x512xf32>
    %c0 = arith.constant 0 : index
    %c0_0 = arith.constant 0 : index
    %1 = vector.load %arg10[%c0, %c0_0] : memref<4x512xf32, #tpu.memory_space<vmem>>, vector<4x512xf32>
    tpu.vector_store %arg10[%c0, %c0_0], %0 {strides = array<i32>} : memref<4x512xf32, #tpu.memory_space<vmem>>, vector<4x512xf32>,
    %cst_1 = arith.constant 0.000000e+00 : f32
    %2 = vector.broadcast %cst_1 : f32 to vector<16x512xf32>
    %c0_2 = arith.constant 0 : index
    %c0_3 = arith.constant 0 : index
    %3 = vector.load %arg11[%c0_2, %c0_3] : memref<16x512xf32, #tpu.memory_space<vmem>>, vector<16x512xf32>
    tpu.vector_store %arg11[%c0_2, %c0_3], %2 {strides = array<i32>} : memref<16x512xf32, #tpu.memory_space<vmem>>, vector<16x512xf32>,
    %cst_4 = arith.constant 0.000000e+00 : f32
    %4 = vector.broadcast %cst_4 : f32 to vector<72x256xf32>
    %c0_5 = arith.constant 0 : index
    %c0_6 = arith.constant 0 : index
    %5 = vector.load %arg12[%c0_5, %c0_6] : memref<72x256xf32, #tpu.memory_space<vmem>>, vector<72x256xf32>
    tpu.vector_store %arg12[%c0_5, %c0_6], %4 {strides = array<i32>} : memref<72x256xf32, #tpu.memory_space<vmem>>, vector<72x256xf32>,
    %c0_7 = arith.constant 0 : index
    %c0_8 = arith.constant 0 : index
    %c0_9 = arith.constant 0 : index
    %6 = vector.load %arg8[%c0_7, %c0_8, %c0_9] : memref<1x4x256xf32, #tpu.memory_space<vmem>>, vector<1x4x256xf32>
    %7 = vector.shape_cast %6 : vector<1x4x256xf32> to vector<4x256xf32>
    %c0_10 = arith.constant 0 : index
    %c0_11 = arith.constant 0 : index
    %c0_12 = arith.constant 0 : index
    %8 = vector.load %arg3[%c0_10, %c0_11, %c0_12] : memref<2x16x256xf32, #tpu.memory_space<vmem>>, vector<1x16x256xf32>
    %9 = vector.shape_cast %8 : vector<1x16x256xf32> to vector<16x256xf32>
    %c1 = arith.constant 1 : index
    %c0_13 = arith.constant 0 : index
    %c0_14 = arith.constant 0 : index
    %10 = vector.load %arg3[%c1, %c0_13, %c0_14] : memref<2x16x256xf32, #tpu.memory_space<vmem>>, vector<1x16x256xf32>
    %11 = vector.shape_cast %10 : vector<1x16x256xf32> to vector<16x256xf32>
    %c0_15 = arith.constant 0 : index
    %c128 = arith.constant 128 : index
    %12 = vector.load %arg10[%c0_15, %c128] : memref<4x512xf32, #tpu.memory_space<vmem>>, vector<4x256xf32>
    tpu.vector_store %arg10[%c0_15, %c128], %7 {strides = array<i32>} : memref<4x512xf32, #tpu.memory_space<vmem>>, vector<4x256xf32>,
    %13 = vector.extract_strided_slice %9 {offsets = [0, 0], sizes = [4, 256], strides = [1, 1]} : vector<16x256xf32> to vector<4x256xf32>
    %14 = vector.extract_strided_slice %11 {offsets = [0, 0], sizes = [4, 256], strides = [1, 1]} : vector<16x256xf32> to vector<4x256xf32>
    %c0_16 = arith.constant 0 : index
    %c111 = arith.constant 111 : index
    %15 = vector.load %arg10[%c0_16, %c111] : memref<4x512xf32, #tpu.memory_space<vmem>>, vector<4x256xf32>
    %16 = arith.mulf %15, %13 : vector<4x256xf32>
    %c0_17 = arith.constant 0 : index
    %c0_18 = arith.constant 0 : index
    %17 = vector.load %arg12[%c0_17, %c0_18] : memref<72x256xf32, #tpu.memory_space<vmem>>, vector<4x256xf32>
    tpu.vector_store %arg12[%c0_17, %c0_18], %16 {strides = array<i32>} : memref<72x256xf32, #tpu.memory_space<vmem>>, vector<4x256xf32>,
    %c0_19 = arith.constant 0 : index
    %c112 = arith.constant 112 : index
    %18 = vector.load %arg10[%c0_19, %c112] : memref<4x512xf32, #tpu.memory_space<vmem>>, vector<4x256xf32>
    %c8 = arith.constant 8 : index
    %c0_20 = arith.constant 0 : index
    %19 = vector.load %arg12[%c8, %c0_20] : memref<72x256xf32, #tpu.memory_space<vmem>>, vector<4x256xf32>
    tpu.vector_store %arg12[%c8, %c0_20], %18 {strides = array<i32>} : memref<72x256xf32, #tpu.memory_space<vmem>>, vector<4x256xf32>,
    %c0_21 = arith.constant 0 : index
    %c113 = arith.constant 113 : index
    %20 = vector.load %arg10[%c0_21, %c113] : memref<4x512xf32, #tpu.memory_space<vmem>>, vector<4x256xf32>
    %21 = arith.mulf %20, %14 : vector<4x256xf32>
    %c16 = arith.constant 16 : index
    %c0_22 = arith.constant 0 : index
    %22 = vector.load %arg12[%c16, %c0_22] : memref<72x256xf32, #tpu.memory_space<vmem>>, vector<4x256xf32>
    tpu.vector_store %arg12[%c16, %c0_22], %21 {strides = array<i32>} : memref<72x256xf32, #tpu.memory_space<vmem>>, vector<4x256xf32>,
    %c0_23 = arith.constant 0 : index
    %c127 = arith.constant 127 : index
    %23 = vector.load %arg10[%c0_23, %c127] : memref<4x512xf32, #tpu.memory_space<vmem>>, vector<4x256xf32>
    %24 = arith.mulf %23, %13 : vector<4x256xf32>
    %c24 = arith.constant 24 : index
    %c0_24 = arith.constant 0 : index
    %25 = vector.load %arg12[%c24, %c0_24] : memref<72x256xf32, #tpu.memory_space<vmem>>, vector<4x256xf32>
    tpu.vector_store %arg12[%c24, %c0_24], %24 {strides = array<i32>} : memref<72x256xf32, #tpu.memory_space<vmem>>, vector<4x256xf32>,
    %c0_25 = arith.constant 0 : index
    %c128_26 = arith.constant 128 : index
    %26 = vector.load %arg10[%c0_25, %c128_26] : memref<4x512xf32, #tpu.memory_space<vmem>>, vector<4x256xf32>
    %c32 = arith.constant 32 : index
    %c0_27 = arith.constant 0 : index
    %27 = vector.load %arg12[%c32, %c0_27] : memref<72x256xf32, #tpu.memory_space<vmem>>, vector<4x256xf32>
    tpu.vector_store %arg12[%c32, %c0_27], %26 {strides = array<i32>} : memref<72x256xf32, #tpu.memory_space<vmem>>, vector<4x256xf32>,
    %c0_28 = arith.constant 0 : index
    %c129 = arith.constant 129 : index
    %28 = vector.load %arg10[%c0_28, %c129] : memref<4x512xf32, #tpu.memory_space<vmem>>, vector<4x256xf32>
    %29 = arith.mulf %28, %14 : vector<4x256xf32>
    %c40 = arith.constant 40 : index
    %c0_29 = arith.constant 0 : index
    %30 = vector.load %arg12[%c40, %c0_29] : memref<72x256xf32, #tpu.memory_space<vmem>>, vector<4x256xf32>
    tpu.vector_store %arg12[%c40, %c0_29], %29 {strides = array<i32>} : memref<72x256xf32, #tpu.memory_space<vmem>>, vector<4x256xf32>,
    %c0_30 = arith.constant 0 : index
    %c143 = arith.constant 143 : index
    %31 = vector.load %arg10[%c0_30, %c143] : memref<4x512xf32, #tpu.memory_space<vmem>>, vector<4x256xf32>
    %32 = arith.mulf %31, %13 : vector<4x256xf32>
    %c48 = arith.constant 48 : index
    %c0_31 = arith.constant 0 : index
    %33 = vector.load %arg12[%c48, %c0_31] : memref<72x256xf32, #tpu.memory_space<vmem>>, vector<4x256xf32>
    tpu.vector_store %arg12[%c48, %c0_31], %32 {strides = array<i32>} : memref<72x256xf32, #tpu.memory_space<vmem>>, vector<4x256xf32>,
    %c0_32 = arith.constant 0 : index
    %c144 = arith.constant 144 : index
    %34 = vector.load %arg10[%c0_32, %c144] : memref<4x512xf32, #tpu.memory_space<vmem>>, vector<4x256xf32>
    %c56 = arith.constant 56 : index
    %c0_33 = arith.constant 0 : index
    %35 = vector.load %arg12[%c56, %c0_33] : memref<72x256xf32, #tpu.memory_space<vmem>>, vector<4x256xf32>
    tpu.vector_store %arg12[%c56, %c0_33], %34 {strides = array<i32>} : memref<72x256xf32, #tpu.memory_space<vmem>>, vector<4x256xf32>,
    %c0_34 = arith.constant 0 : index
    %c145 = arith.constant 145 : index
    %36 = vector.load %arg10[%c0_34, %c145] : memref<4x512xf32, #tpu.memory_space<vmem>>, vector<4x256xf32>
    %37 = arith.mulf %36, %14 : vector<4x256xf32>
    %c64 = arith.constant 64 : index
    %c0_35 = arith.constant 0 : index
    %38 = vector.load %arg12[%c64, %c0_35] : memref<72x256xf32, #tpu.memory_space<vmem>>, vector<4x256xf32>
    tpu.vector_store %arg12[%c64, %c0_35], %37 {strides = array<i32>} : memref<72x256xf32, #tpu.memory_space<vmem>>, vector<4x256xf32>,
    %c0_36 = arith.constant 0 : index
    %c0_37 = arith.constant 0 : index
    %39 = vector.load %arg4[%c0_36, %c0_37] : memref<16x72xf32, #tpu.memory_space<vmem>>, vector<16x72xf32>
    %c0_38 = arith.constant 0 : index
    %c0_39 = arith.constant 0 : index
    %40 = vector.load %arg12[%c0_38, %c0_39] : memref<72x256xf32, #tpu.memory_space<vmem>>, vector<72x256xf32>
    %cst_40 = arith.constant dense<0.000000e+00> : vector<16x256xf32>
    %41 = tpu.matmul %39, %40, %cst_40 {dimension_numbers = #tpu.dot_dimension_numbers<[1], [0], [0], [1], [0, 0, 1, 1], [], []>} : vector<16x72xf32>, vector<72x256xf32>, vector<16x256xf32> -> vector<16x256xf32>
    %c0_41 = arith.constant 0 : index
    %c0_42 = arith.constant 0 : index
    %42 = vector.load %arg5[%c0_41, %c0_42] : memref<16x1xf32, #tpu.memory_space<vmem>>, vector<16x1xf32>
    %43 = vector.broadcast %42 : vector<16x1xf32> to vector<16x256xf32>
    %44 = arith.addf %41, %43 : vector<16x256xf32>
    %c0_43 = arith.constant 0 : index
    %c0_44 = arith.constant 0 : index
    %45 = vector.load %arg2[%c0_43, %c0_44] : memref<16x1xf32, #tpu.memory_space<vmem>>, vector<16x1xf32>
    %46 = vector.broadcast %45 : vector<16x1xf32> to vector<16x256xf32>
    %47 = arith.addf %44, %46 : vector<16x256xf32>
    %cst_45 = arith.constant 0.000000e+00 : f32
    %48 = vector.broadcast %cst_45 : f32 to vector<16x256xf32>
    %49 = arith.subf %48, %47 : vector<16x256xf32>
    %50 = math.exp %49 : vector<16x256xf32>
    %cst_46 = arith.constant 1.000000e+00 : f32
    %51 = vector.broadcast %cst_46 : f32 to vector<16x256xf32>
    %52 = arith.addf %51, %50 : vector<16x256xf32>
    %cst_47 = arith.constant 1.000000e+00 : f32
    %53 = vector.broadcast %cst_47 : f32 to vector<16x256xf32>
    %54 = arith.divf %53, %52 : vector<16x256xf32>
    %55 = arith.mulf %47, %54 : vector<16x256xf32>
    %c0_48 = arith.constant 0 : index
    %c128_49 = arith.constant 128 : index
    %56 = vector.load %arg11[%c0_48, %c128_49] : memref<16x512xf32, #tpu.memory_space<vmem>>, vector<16x256xf32>
    tpu.vector_store %arg11[%c0_48, %c128_49], %55 {strides = array<i32>} : memref<16x512xf32, #tpu.memory_space<vmem>>, vector<16x256xf32>,
    %c0_50 = arith.constant 0 : index
    %c111_51 = arith.constant 111 : index
    %57 = vector.load %arg11[%c0_50, %c111_51] : memref<16x512xf32, #tpu.memory_space<vmem>>, vector<16x256xf32>
    %58 = arith.mulf %57, %9 : vector<16x256xf32>
    %c0_52 = arith.constant 0 : index
    %c0_53 = arith.constant 0 : index
    %59 = vector.load %arg13[%c0_52, %c0_53] : memref<144x256xf32, #tpu.memory_space<vmem>>, vector<16x256xf32>
    tpu.vector_store %arg13[%c0_52, %c0_53], %58 {strides = array<i32>} : memref<144x256xf32, #tpu.memory_space<vmem>>, vector<16x256xf32>,
    %c0_54 = arith.constant 0 : index
    %c112_55 = arith.constant 112 : index
    %60 = vector.load %arg11[%c0_54, %c112_55] : memref<16x512xf32, #tpu.memory_space<vmem>>, vector<16x256xf32>
    %c16_56 = arith.constant 16 : index
    %c0_57 = arith.constant 0 : index
    %61 = vector.load %arg13[%c16_56, %c0_57] : memref<144x256xf32, #tpu.memory_space<vmem>>, vector<16x256xf32>
    tpu.vector_store %arg13[%c16_56, %c0_57], %60 {strides = array<i32>} : memref<144x256xf32, #tpu.memory_space<vmem>>, vector<16x256xf32>,
    %c0_58 = arith.constant 0 : index
    %c113_59 = arith.constant 113 : index
    %62 = vector.load %arg11[%c0_58, %c113_59] : memref<16x512xf32, #tpu.memory_space<vmem>>, vector<16x256xf32>
    %63 = arith.mulf %62, %11 : vector<16x256xf32>
    %c32_60 = arith.constant 32 : index
    %c0_61 = arith.constant 0 : index
    %64 = vector.load %arg13[%c32_60, %c0_61] : memref<144x256xf32, #tpu.memory_space<vmem>>, vector<16x256xf32>
    tpu.vector_store %arg13[%c32_60, %c0_61], %63 {strides = array<i32>} : memref<144x256xf32, #tpu.memory_space<vmem>>, vector<16x256xf32>,
    %c0_62 = arith.constant 0 : index
    %c127_63 = arith.constant 127 : index
    %65 = vector.load %arg11[%c0_62, %c127_63] : memref<16x512xf32, #tpu.memory_space<vmem>>, vector<16x256xf32>
    %66 = arith.mulf %65, %9 : vector<16x256xf32>
    %c48_64 = arith.constant 48 : index
    %c0_65 = arith.constant 0 : index
    %67 = vector.load %arg13[%c48_64, %c0_65] : memref<144x256xf32, #tpu.memory_space<vmem>>, vector<16x256xf32>
    tpu.vector_store %arg13[%c48_64, %c0_65], %66 {strides = array<i32>} : memref<144x256xf32, #tpu.memory_space<vmem>>, vector<16x256xf32>,
    %c0_66 = arith.constant 0 : index
    %c128_67 = arith.constant 128 : index
    %68 = vector.load %arg11[%c0_66, %c128_67] : memref<16x512xf32, #tpu.memory_space<vmem>>, vector<16x256xf32>
    %c64_68 = arith.constant 64 : index
    %c0_69 = arith.constant 0 : index
    %69 = vector.load %arg13[%c64_68, %c0_69] : memref<144x256xf32, #tpu.memory_space<vmem>>, vector<16x256xf32>
    tpu.vector_store %arg13[%c64_68, %c0_69], %68 {strides = array<i32>} : memref<144x256xf32, #tpu.memory_space<vmem>>, vector<16x256xf32>,
    %c0_70 = arith.constant 0 : index
    %c129_71 = arith.constant 129 : index
    %70 = vector.load %arg11[%c0_70, %c129_71] : memref<16x512xf32, #tpu.memory_space<vmem>>, vector<16x256xf32>
    %71 = arith.mulf %70, %11 : vector<16x256xf32>
    %c80 = arith.constant 80 : index
    %c0_72 = arith.constant 0 : index
    %72 = vector.load %arg13[%c80, %c0_72] : memref<144x256xf32, #tpu.memory_space<vmem>>, vector<16x256xf32>
    tpu.vector_store %arg13[%c80, %c0_72], %71 {strides = array<i32>} : memref<144x256xf32, #tpu.memory_space<vmem>>, vector<16x256xf32>,
    %c0_73 = arith.constant 0 : index
    %c143_74 = arith.constant 143 : index
    %73 = vector.load %arg11[%c0_73, %c143_74] : memref<16x512xf32, #tpu.memory_space<vmem>>, vector<16x256xf32>
    %74 = arith.mulf %73, %9 : vector<16x256xf32>
    %c96 = arith.constant 96 : index
    %c0_75 = arith.constant 0 : index
    %75 = vector.load %arg13[%c96, %c0_75] : memref<144x256xf32, #tpu.memory_space<vmem>>, vector<16x256xf32>
    tpu.vector_store %arg13[%c96, %c0_75], %74 {strides = array<i32>} : memref<144x256xf32, #tpu.memory_space<vmem>>, vector<16x256xf32>,
    %c0_76 = arith.constant 0 : index
    %c144_77 = arith.constant 144 : index
    %76 = vector.load %arg11[%c0_76, %c144_77] : memref<16x512xf32, #tpu.memory_space<vmem>>, vector<16x256xf32>
    %c112_78 = arith.constant 112 : index
    %c0_79 = arith.constant 0 : index
    %77 = vector.load %arg13[%c112_78, %c0_79] : memref<144x256xf32, #tpu.memory_space<vmem>>, vector<16x256xf32>
    tpu.vector_store %arg13[%c112_78, %c0_79], %76 {strides = array<i32>} : memref<144x256xf32, #tpu.memory_space<vmem>>, vector<16x256xf32>,
    %c0_80 = arith.constant 0 : index
    %c145_81 = arith.constant 145 : index
    %78 = vector.load %arg11[%c0_80, %c145_81] : memref<16x512xf32, #tpu.memory_space<vmem>>, vector<16x256xf32>
    %79 = arith.mulf %78, %11 : vector<16x256xf32>
    %c128_82 = arith.constant 128 : index
    %c0_83 = arith.constant 0 : index
    %80 = vector.load %arg13[%c128_82, %c0_83] : memref<144x256xf32, #tpu.memory_space<vmem>>, vector<16x256xf32>
    tpu.vector_store %arg13[%c128_82, %c0_83], %79 {strides = array<i32>} : memref<144x256xf32, #tpu.memory_space<vmem>>, vector<16x256xf32>,
    %c0_84 = arith.constant 0 : index
    %c0_85 = arith.constant 0 : index
    %81 = vector.load %arg6[%c0_84, %c0_85] : memref<8x144xf32, #tpu.memory_space<vmem>>, vector<8x144xf32>
    %c0_86 = arith.constant 0 : index
    %c0_87 = arith.constant 0 : index
    %82 = vector.load %arg13[%c0_86, %c0_87] : memref<144x256xf32, #tpu.memory_space<vmem>>, vector<144x256xf32>
    %cst_88 = arith.constant dense<0.000000e+00> : vector<8x256xf32>
    %83 = tpu.matmul %81, %82, %cst_88 {dimension_numbers = #tpu.dot_dimension_numbers<[1], [0], [0], [1], [0, 0, 1, 1], [], []>} : vector<8x144xf32>, vector<144x256xf32>, vector<8x256xf32> -> vector<8x256xf32>
    %c0_89 = arith.constant 0 : index
    %c0_90 = arith.constant 0 : index
    %84 = vector.load %arg7[%c0_89, %c0_90] : memref<8x1xf32, #tpu.memory_space<vmem>>, vector<8x1xf32>
    %85 = vector.broadcast %84 : vector<8x1xf32> to vector<8x256xf32>
    %86 = arith.addf %83, %85 : vector<8x256xf32>
    %87 = vector.extract_strided_slice %86 {offsets = [0, 0], sizes = [4, 256], strides = [1, 1]} : vector<8x256xf32> to vector<4x256xf32>
    %c0_91 = arith.constant 0 : index
    %88 = memref.load %arg1[%c0_91] : memref<8xf32, #tpu.memory_space<smem>>
    %c1_92 = arith.constant 1 : index
    %89 = memref.load %arg1[%c1_92] : memref<8xf32, #tpu.memory_space<smem>>
    %c2 = arith.constant 2 : index
    %90 = memref.load %arg1[%c2] : memref<8xf32, #tpu.memory_space<smem>>
    %c3 = arith.constant 3 : index
    %91 = memref.load %arg1[%c3] : memref<8xf32, #tpu.memory_space<smem>>
    %c4 = arith.constant 4 : index
    %92 = memref.load %arg1[%c4] : memref<8xf32, #tpu.memory_space<smem>>
    %93 = vector.broadcast %89 : f32 to vector<4x256xf32>
    %94 = arith.mulf %93, %87 : vector<4x256xf32>
    %95 = arith.subf %7, %94 : vector<4x256xf32>
    %96 = vector.broadcast %88 : f32 to vector<4x256xf32>
    %97 = arith.mulf %95, %96 : vector<4x256xf32>
    %cst_93 = arith.constant -1.000000e+00 : f32
    %cst_94 = arith.constant 1.000000e+00 : f32
    %98 = vector.broadcast %cst_93 : f32 to vector<4x256xf32>
    %99 = arith.maximumf %98, %97 : vector<4x256xf32>
    %100 = vector.broadcast %cst_94 : f32 to vector<4x256xf32>
    %101 = arith.minimumf %100, %99 : vector<4x256xf32>
    %102 = arith.subf %101, %97 : vector<4x256xf32>
    %103 = vector.broadcast %92 : f32 to vector<4x256xf32>
    %104 = arith.mulf %102, %103 : vector<4x256xf32>
    %105 = arith.addf %97, %104 : vector<4x256xf32>
    %106 = vector.broadcast %90 : f32 to vector<4x256xf32>
    %107 = arith.mulf %106, %105 : vector<4x256xf32>
    %108 = vector.broadcast %91 : f32 to vector<4x256xf32>
    %109 = arith.mulf %108, %87 : vector<4x256xf32>
    %110 = arith.addf %107, %109 : vector<4x256xf32>
    %c0_95 = arith.constant 0 : index
    %c0_96 = arith.constant 0 : index
    %c0_97 = arith.constant 0 : index
    %111 = vector.load %arg9[%c0_95, %c0_96, %c0_97] : memref<1x4x256xf32, #tpu.memory_space<vmem>>, vector<1x4x256xf32>
    %112 = vector.shape_cast %111 : vector<1x4x256xf32> to vector<4x256xf32>
    %113 = vector.shape_cast %110 : vector<4x256xf32> to vector<1x4x256xf32>
    tpu.vector_store %arg9[%c0_95, %c0_96, %c0_97], %113 {strides = array<i32>} : memref<1x4x256xf32, #tpu.memory_space<vmem>>, vector<1x4x256xf32>,
    return
  }
  func.func @transform_0(%arg0: i32) -> i32 {
    %c0_i32 = arith.constant 0 : i32
    %c0_i32_0 = arith.constant 0 : i32
    return %c0_i32 : i32
  }
  func.func @transform_1(%arg0: i32) -> (i32, i32) {
    %c0_i32 = arith.constant 0 : i32
    %c0_i32_0 = arith.constant 0 : i32
    %c0_i32_1 = arith.constant 0 : i32
    return %c0_i32, %c0_i32_0 : i32, i32
  }
  func.func @transform_2(%arg0: i32) -> (i32, i32, i32) {
    %c0_i32 = arith.constant 0 : i32
    %c0_i32_0 = arith.constant 0 : i32
    %c0_i32_1 = arith.constant 0 : i32
    %c0_i32_2 = arith.constant 0 : i32
    return %c0_i32, %c0_i32_0, %c0_i32_1 : i32, i32, i32
  }
  func.func @transform_3(%arg0: i32) -> (i32, i32) {
    %c0_i32 = arith.constant 0 : i32
    %c0_i32_0 = arith.constant 0 : i32
    %c0_i32_1 = arith.constant 0 : i32
    return %c0_i32, %c0_i32_0 : i32, i32
  }
  func.func @transform_4(%arg0: i32) -> (i32, i32) {
    %c0_i32 = arith.constant 0 : i32
    %c0_i32_0 = arith.constant 0 : i32
    %c0_i32_1 = arith.constant 0 : i32
    return %c0_i32, %c0_i32_0 : i32, i32
  }
  func.func @transform_5(%arg0: i32) -> (i32, i32) {
    %c0_i32 = arith.constant 0 : i32
    %c0_i32_0 = arith.constant 0 : i32
    %c0_i32_1 = arith.constant 0 : i32
    return %c0_i32, %c0_i32_0 : i32, i32
  }
  func.func @transform_6(%arg0: i32) -> (i32, i32) {
    %c0_i32 = arith.constant 0 : i32
    %c0_i32_0 = arith.constant 0 : i32
    %c0_i32_1 = arith.constant 0 : i32
    return %c0_i32, %c0_i32_0 : i32, i32
  }
  func.func @transform_7(%arg0: i32) -> (i32, i32, i32) {
    %c0_i32 = arith.constant 0 : i32
    %c0_i32_0 = arith.constant 0 : i32
    %c0_i32_1 = arith.constant 0 : i32
    return %arg0, %c0_i32, %c0_i32_0 : i32, i32, i32
  }
  func.func @transform_8(%arg0: i32) -> (i32, i32, i32) {
    %c0_i32 = arith.constant 0 : i32
    %c0_i32_0 = arith.constant 0 : i32
    %c0_i32_1 = arith.constant 0 : i32
    return %arg0, %c0_i32, %c0_i32_0 : i32, i32, i32
  }
}

module attributes {stable_mosaic.version = 11 : i64} {
  func.func @_dire_kernel(%arg0: memref<2x4x256xf32, #tpu.memory_space<vmem>>, %arg1: memref<2x4x256xf32, #tpu.memory_space<vmem>>, %arg2: memref<2x4x256xf32, #tpu.memory_space<vmem>>) attributes {dimension_semantics = [], scalar_prefetch = 0 : i64, scratch_operands = 0 : i64, tpu.core_type = #tpu.core_type<tc>} {
    %c0 = arith.constant 0 : index
    %c0_0 = arith.constant 0 : index
    %c0_1 = arith.constant 0 : index
    %0 = vector.load %arg0[%c0, %c0_0, %c0_1] : memref<2x4x256xf32, #tpu.memory_space<vmem>>, vector<2x4x256xf32>
    %c0_2 = arith.constant 0 : index
    %c0_3 = arith.constant 0 : index
    %c0_4 = arith.constant 0 : index
    %1 = vector.load %arg1[%c0_2, %c0_3, %c0_4] : memref<2x4x256xf32, #tpu.memory_space<vmem>>, vector<2x4x256xf32>
    %2 = arith.subf %0, %1 : vector<2x4x256xf32>
    %3 = math.absf %2 : vector<2x4x256xf32>
    %c0_5 = arith.constant 0 : index
    %c0_6 = arith.constant 0 : index
    %c0_7 = arith.constant 0 : index
    %4 = vector.load %arg2[%c0_5, %c0_6, %c0_7] : memref<2x4x256xf32, #tpu.memory_space<vmem>>, vector<2x4x256xf32>
    tpu.vector_store %arg2[%c0_5, %c0_6, %c0_7], %3 {strides = array<i32>} : memref<2x4x256xf32, #tpu.memory_space<vmem>>, vector<2x4x256xf32>,
    return
  }
}

module attributes {stable_mosaic.version = 11 : i64} {
  func.func @_fused_step_kernel(%arg0: i32, %arg1: memref<8xf32, #tpu.memory_space<smem>>, %arg2: memref<16x1xf32, #tpu.memory_space<vmem>>, %arg3: memref<2x16x256xf32, #tpu.memory_space<vmem>>, %arg4: memref<16x72xf32, #tpu.memory_space<vmem>>, %arg5: memref<16x1xf32, #tpu.memory_space<vmem>>, %arg6: memref<8x144xf32, #tpu.memory_space<vmem>>, %arg7: memref<8x1xf32, #tpu.memory_space<vmem>>, %arg8: memref<1x4x256xf32, #tpu.memory_space<vmem>>, %arg9: memref<1x4x256xf32, #tpu.memory_space<vmem>>, %arg10: memref<4x512xf32, #tpu.memory_space<vmem>>, %arg11: memref<16x512xf32, #tpu.memory_space<vmem>>, %arg12: memref<72x256xf32, #tpu.memory_space<vmem>>, %arg13: memref<144x256xf32, #tpu.memory_space<vmem>>) attributes {dimension_semantics = [#tpu.dimension_semantics<parallel>], iteration_bounds = array<i64: 2>, scalar_prefetch = 0 : i64, scratch_operands = 4 : i64, tpu.core_type = #tpu.core_type<tc>, window_params = [{transform_indices = @transform_0, window_bounds = array<i64: 8>}, {pipeline_mode = #tpu.pipeline_mode<synchronous>, transform_indices = @transform_1, window_bounds = array<i64: 16, 1>}, {pipeline_mode = #tpu.pipeline_mode<synchronous>, transform_indices = @transform_2, window_bounds = array<i64: 2, 16, 256>}, {pipeline_mode = #tpu.pipeline_mode<synchronous>, transform_indices = @transform_3, window_bounds = array<i64: 16, 72>}, {pipeline_mode = #tpu.pipeline_mode<synchronous>, transform_indices = @transform_4, window_bounds = array<i64: 16, 1>}, {pipeline_mode = #tpu.pipeline_mode<synchronous>, transform_indices = @transform_5, window_bounds = array<i64: 8, 144>}, {pipeline_mode = #tpu.pipeline_mode<synchronous>, transform_indices = @transform_6, window_bounds = array<i64: 8, 1>}, {transform_indices = @transform_7, window_bounds = array<i64: 1, 4, 256>}, {transform_indices = @transform_8, window_bounds = array<i64: 1, 4, 256>}]} {
    %cst = arith.constant 0.000000e+00 : f32
    %0 = vector.broadcast %cst : f32 to vector<4x512xf32>
    %c0 = arith.constant 0 : index
    %c0_0 = arith.constant 0 : index
    %1 = vector.load %arg10[%c0, %c0_0] : memref<4x512xf32, #tpu.memory_space<vmem>>, vector<4x512xf32>
    tpu.vector_store %arg10[%c0, %c0_0], %0 {strides = array<i32>} : memref<4x512xf32, #tpu.memory_space<vmem>>, vector<4x512xf32>,
    %cst_1 = arith.constant 0.000000e+00 : f32
    %2 = vector.broadcast %cst_1 : f32 to vector<16x512xf32>
    %c0_2 = arith.constant 0 : index
    %c0_3 = arith.constant 0 : index
    %3 = vector.load %arg11[%c0_2, %c0_3] : memref<16x512xf32, #tpu.memory_space<vmem>>, vector<16x512xf32>
    tpu.vector_store %arg11[%c0_2, %c0_3], %2 {strides = array<i32>} : memref<16x512xf32, #tpu.memory_space<vmem>>, vector<16x512xf32>,
    %cst_4 = arith.constant 0.000000e+00 : f32
    %4 = vector.broadcast %cst_4 : f32 to vector<72x256xf32>
    %c0_5 = arith.constant 0 : index
    %c0_6 = arith.constant 0 : index
    %5 = vector.load %arg12[%c0_5, %c0_6] : memref<72x256xf32, #tpu.memory_space<vmem>>, vector<72x256xf32>
    tpu.vector_store %arg12[%c0_5, %c0_6], %4 {strides = array<i32>} : memref<72x256xf32, #tpu.memory_space<vmem>>, vector<72x256xf32>,
    %c0_7 = arith.constant 0 : index
    %c0_8 = arith.constant 0 : index
    %c0_9 = arith.constant 0 : index
    %6 = vector.load %arg8[%c0_7, %c0_8, %c0_9] : memref<1x4x256xf32, #tpu.memory_space<vmem>>, vector<1x4x256xf32>
    %7 = vector.shape_cast %6 : vector<1x4x256xf32> to vector<4x256xf32>
    %c0_10 = arith.constant 0 : index
    %c0_11 = arith.constant 0 : index
    %c0_12 = arith.constant 0 : index
    %8 = vector.load %arg3[%c0_10, %c0_11, %c0_12] : memref<2x16x256xf32, #tpu.memory_space<vmem>>, vector<1x16x256xf32>
    %9 = vector.shape_cast %8 : vector<1x16x256xf32> to vector<16x256xf32>
    %c1 = arith.constant 1 : index
    %c0_13 = arith.constant 0 : index
    %c0_14 = arith.constant 0 : index
    %10 = vector.load %arg3[%c1, %c0_13, %c0_14] : memref<2x16x256xf32, #tpu.memory_space<vmem>>, vector<1x16x256xf32>
    %11 = vector.shape_cast %10 : vector<1x16x256xf32> to vector<16x256xf32>
    %c0_15 = arith.constant 0 : index
    %c128 = arith.constant 128 : index
    %12 = vector.load %arg10[%c0_15, %c128] : memref<4x512xf32, #tpu.memory_space<vmem>>, vector<4x256xf32>
    tpu.vector_store %arg10[%c0_15, %c128], %7 {strides = array<i32>} : memref<4x512xf32, #tpu.memory_space<vmem>>, vector<4x256xf32>,
    %13 = vector.extract_strided_slice %9 {offsets = [0, 0], sizes = [4, 256], strides = [1, 1]} : vector<16x256xf32> to vector<4x256xf32>
    %14 = vector.extract_strided_slice %11 {offsets = [0, 0], sizes = [4, 256], strides = [1, 1]} : vector<16x256xf32> to vector<4x256xf32>
    %c0_16 = arith.constant 0 : index
    %c111 = arith.constant 111 : index
    %15 = vector.load %arg10[%c0_16, %c111] : memref<4x512xf32, #tpu.memory_space<vmem>>, vector<4x256xf32>
    %16 = arith.mulf %15, %13 : vector<4x256xf32>
    %c0_17 = arith.constant 0 : index
    %c0_18 = arith.constant 0 : index
    %17 = vector.load %arg12[%c0_17, %c0_18] : memref<72x256xf32, #tpu.memory_space<vmem>>, vector<4x256xf32>
    tpu.vector_store %arg12[%c0_17, %c0_18], %16 {strides = array<i32>} : memref<72x256xf32, #tpu.memory_space<vmem>>, vector<4x256xf32>,
    %c0_19 = arith.constant 0 : index
    %c112 = arith.constant 112 : index
    %18 = vector.load %arg10[%c0_19, %c112] : memref<4x512xf32, #tpu.memory_space<vmem>>, vector<4x256xf32>
    %c8 = arith.constant 8 : index
    %c0_20 = arith.constant 0 : index
    %19 = vector.load %arg12[%c8, %c0_20] : memref<72x256xf32, #tpu.memory_space<vmem>>, vector<4x256xf32>
    tpu.vector_store %arg12[%c8, %c0_20], %18 {strides = array<i32>} : memref<72x256xf32, #tpu.memory_space<vmem>>, vector<4x256xf32>,
    %c0_21 = arith.constant 0 : index
    %c113 = arith.constant 113 : index
    %20 = vector.load %arg10[%c0_21, %c113] : memref<4x512xf32, #tpu.memory_space<vmem>>, vector<4x256xf32>
    %21 = arith.mulf %20, %14 : vector<4x256xf32>
    %c16 = arith.constant 16 : index
    %c0_22 = arith.constant 0 : index
    %22 = vector.load %arg12[%c16, %c0_22] : memref<72x256xf32, #tpu.memory_space<vmem>>, vector<4x256xf32>
    tpu.vector_store %arg12[%c16, %c0_22], %21 {strides = array<i32>} : memref<72x256xf32, #tpu.memory_space<vmem>>, vector<4x256xf32>,
    %c0_23 = arith.constant 0 : index
    %c127 = arith.constant 127 : index
    %23 = vector.load %arg10[%c0_23, %c127] : memref<4x512xf32, #tpu.memory_space<vmem>>, vector<4x256xf32>
    %24 = arith.mulf %23, %13 : vector<4x256xf32>
    %c24 = arith.constant 24 : index
    %c0_24 = arith.constant 0 : index
    %25 = vector.load %arg12[%c24, %c0_24] : memref<72x256xf32, #tpu.memory_space<vmem>>, vector<4x256xf32>
    tpu.vector_store %arg12[%c24, %c0_24], %24 {strides = array<i32>} : memref<72x256xf32, #tpu.memory_space<vmem>>, vector<4x256xf32>,
    %c0_25 = arith.constant 0 : index
    %c128_26 = arith.constant 128 : index
    %26 = vector.load %arg10[%c0_25, %c128_26] : memref<4x512xf32, #tpu.memory_space<vmem>>, vector<4x256xf32>
    %c32 = arith.constant 32 : index
    %c0_27 = arith.constant 0 : index
    %27 = vector.load %arg12[%c32, %c0_27] : memref<72x256xf32, #tpu.memory_space<vmem>>, vector<4x256xf32>
    tpu.vector_store %arg12[%c32, %c0_27], %26 {strides = array<i32>} : memref<72x256xf32, #tpu.memory_space<vmem>>, vector<4x256xf32>,
    %c0_28 = arith.constant 0 : index
    %c129 = arith.constant 129 : index
    %28 = vector.load %arg10[%c0_28, %c129] : memref<4x512xf32, #tpu.memory_space<vmem>>, vector<4x256xf32>
    %29 = arith.mulf %28, %14 : vector<4x256xf32>
    %c40 = arith.constant 40 : index
    %c0_29 = arith.constant 0 : index
    %30 = vector.load %arg12[%c40, %c0_29] : memref<72x256xf32, #tpu.memory_space<vmem>>, vector<4x256xf32>
    tpu.vector_store %arg12[%c40, %c0_29], %29 {strides = array<i32>} : memref<72x256xf32, #tpu.memory_space<vmem>>, vector<4x256xf32>,
    %c0_30 = arith.constant 0 : index
    %c143 = arith.constant 143 : index
    %31 = vector.load %arg10[%c0_30, %c143] : memref<4x512xf32, #tpu.memory_space<vmem>>, vector<4x256xf32>
    %32 = arith.mulf %31, %13 : vector<4x256xf32>
    %c48 = arith.constant 48 : index
    %c0_31 = arith.constant 0 : index
    %33 = vector.load %arg12[%c48, %c0_31] : memref<72x256xf32, #tpu.memory_space<vmem>>, vector<4x256xf32>
    tpu.vector_store %arg12[%c48, %c0_31], %32 {strides = array<i32>} : memref<72x256xf32, #tpu.memory_space<vmem>>, vector<4x256xf32>,
    %c0_32 = arith.constant 0 : index
    %c144 = arith.constant 144 : index
    %34 = vector.load %arg10[%c0_32, %c144] : memref<4x512xf32, #tpu.memory_space<vmem>>, vector<4x256xf32>
    %c56 = arith.constant 56 : index
    %c0_33 = arith.constant 0 : index
    %35 = vector.load %arg12[%c56, %c0_33] : memref<72x256xf32, #tpu.memory_space<vmem>>, vector<4x256xf32>
    tpu.vector_store %arg12[%c56, %c0_33], %34 {strides = array<i32>} : memref<72x256xf32, #tpu.memory_space<vmem>>, vector<4x256xf32>,
    %c0_34 = arith.constant 0 : index
    %c145 = arith.constant 145 : index
    %36 = vector.load %arg10[%c0_34, %c145] : memref<4x512xf32, #tpu.memory_space<vmem>>, vector<4x256xf32>
    %37 = arith.mulf %36, %14 : vector<4x256xf32>
    %c64 = arith.constant 64 : index
    %c0_35 = arith.constant 0 : index
    %38 = vector.load %arg12[%c64, %c0_35] : memref<72x256xf32, #tpu.memory_space<vmem>>, vector<4x256xf32>
    tpu.vector_store %arg12[%c64, %c0_35], %37 {strides = array<i32>} : memref<72x256xf32, #tpu.memory_space<vmem>>, vector<4x256xf32>,
    %c0_36 = arith.constant 0 : index
    %c0_37 = arith.constant 0 : index
    %39 = vector.load %arg4[%c0_36, %c0_37] : memref<16x72xf32, #tpu.memory_space<vmem>>, vector<16x72xf32>
    %c0_38 = arith.constant 0 : index
    %c0_39 = arith.constant 0 : index
    %40 = vector.load %arg12[%c0_38, %c0_39] : memref<72x256xf32, #tpu.memory_space<vmem>>, vector<72x256xf32>
    %cst_40 = arith.constant dense<0.000000e+00> : vector<16x256xf32>
    %41 = tpu.matmul %39, %40, %cst_40 {dimension_numbers = #tpu.dot_dimension_numbers<[1], [0], [0], [1], [0, 0, 1, 1], [], []>} : vector<16x72xf32>, vector<72x256xf32>, vector<16x256xf32> -> vector<16x256xf32>
    %c0_41 = arith.constant 0 : index
    %c0_42 = arith.constant 0 : index
    %42 = vector.load %arg5[%c0_41, %c0_42] : memref<16x1xf32, #tpu.memory_space<vmem>>, vector<16x1xf32>
    %43 = vector.broadcast %42 : vector<16x1xf32> to vector<16x256xf32>
    %44 = arith.addf %41, %43 : vector<16x256xf32>
    %c0_43 = arith.constant 0 : index
    %c0_44 = arith.constant 0 : index
    %45 = vector.load %arg2[%c0_43, %c0_44] : memref<16x1xf32, #tpu.memory_space<vmem>>, vector<16x1xf32>
    %46 = vector.broadcast %45 : vector<16x1xf32> to vector<16x256xf32>
    %47 = arith.addf %44, %46 : vector<16x256xf32>
    %cst_45 = arith.constant 0.000000e+00 : f32
    %48 = vector.broadcast %cst_45 : f32 to vector<16x256xf32>
    %49 = arith.subf %48, %47 : vector<16x256xf32>
    %50 = math.exp %49 : vector<16x256xf32>
    %cst_46 = arith.constant 1.000000e+00 : f32
    %51 = vector.broadcast %cst_46 : f32 to vector<16x256xf32>
    %52 = arith.addf %51, %50 : vector<16x256xf32>
    %cst_47 = arith.constant 1.000000e+00 : f32
    %53 = vector.broadcast %cst_47 : f32 to vector<16x256xf32>
    %54 = arith.divf %53, %52 : vector<16x256xf32>
    %55 = arith.mulf %47, %54 : vector<16x256xf32>
    %c0_48 = arith.constant 0 : index
    %c128_49 = arith.constant 128 : index
    %56 = vector.load %arg11[%c0_48, %c128_49] : memref<16x512xf32, #tpu.memory_space<vmem>>, vector<16x256xf32>
    tpu.vector_store %arg11[%c0_48, %c128_49], %55 {strides = array<i32>} : memref<16x512xf32, #tpu.memory_space<vmem>>, vector<16x256xf32>,
    %c0_50 = arith.constant 0 : index
    %c111_51 = arith.constant 111 : index
    %57 = vector.load %arg11[%c0_50, %c111_51] : memref<16x512xf32, #tpu.memory_space<vmem>>, vector<16x256xf32>
    %58 = arith.mulf %57, %9 : vector<16x256xf32>
    %c0_52 = arith.constant 0 : index
    %c0_53 = arith.constant 0 : index
    %59 = vector.load %arg13[%c0_52, %c0_53] : memref<144x256xf32, #tpu.memory_space<vmem>>, vector<16x256xf32>
    tpu.vector_store %arg13[%c0_52, %c0_53], %58 {strides = array<i32>} : memref<144x256xf32, #tpu.memory_space<vmem>>, vector<16x256xf32>,
    %c0_54 = arith.constant 0 : index
    %c112_55 = arith.constant 112 : index
    %60 = vector.load %arg11[%c0_54, %c112_55] : memref<16x512xf32, #tpu.memory_space<vmem>>, vector<16x256xf32>
    %c16_56 = arith.constant 16 : index
    %c0_57 = arith.constant 0 : index
    %61 = vector.load %arg13[%c16_56, %c0_57] : memref<144x256xf32, #tpu.memory_space<vmem>>, vector<16x256xf32>
    tpu.vector_store %arg13[%c16_56, %c0_57], %60 {strides = array<i32>} : memref<144x256xf32, #tpu.memory_space<vmem>>, vector<16x256xf32>,
    %c0_58 = arith.constant 0 : index
    %c113_59 = arith.constant 113 : index
    %62 = vector.load %arg11[%c0_58, %c113_59] : memref<16x512xf32, #tpu.memory_space<vmem>>, vector<16x256xf32>
    %63 = arith.mulf %62, %11 : vector<16x256xf32>
    %c32_60 = arith.constant 32 : index
    %c0_61 = arith.constant 0 : index
    %64 = vector.load %arg13[%c32_60, %c0_61] : memref<144x256xf32, #tpu.memory_space<vmem>>, vector<16x256xf32>
    tpu.vector_store %arg13[%c32_60, %c0_61], %63 {strides = array<i32>} : memref<144x256xf32, #tpu.memory_space<vmem>>, vector<16x256xf32>,
    %c0_62 = arith.constant 0 : index
    %c127_63 = arith.constant 127 : index
    %65 = vector.load %arg11[%c0_62, %c127_63] : memref<16x512xf32, #tpu.memory_space<vmem>>, vector<16x256xf32>
    %66 = arith.mulf %65, %9 : vector<16x256xf32>
    %c48_64 = arith.constant 48 : index
    %c0_65 = arith.constant 0 : index
    %67 = vector.load %arg13[%c48_64, %c0_65] : memref<144x256xf32, #tpu.memory_space<vmem>>, vector<16x256xf32>
    tpu.vector_store %arg13[%c48_64, %c0_65], %66 {strides = array<i32>} : memref<144x256xf32, #tpu.memory_space<vmem>>, vector<16x256xf32>,
    %c0_66 = arith.constant 0 : index
    %c128_67 = arith.constant 128 : index
    %68 = vector.load %arg11[%c0_66, %c128_67] : memref<16x512xf32, #tpu.memory_space<vmem>>, vector<16x256xf32>
    %c64_68 = arith.constant 64 : index
    %c0_69 = arith.constant 0 : index
    %69 = vector.load %arg13[%c64_68, %c0_69] : memref<144x256xf32, #tpu.memory_space<vmem>>, vector<16x256xf32>
    tpu.vector_store %arg13[%c64_68, %c0_69], %68 {strides = array<i32>} : memref<144x256xf32, #tpu.memory_space<vmem>>, vector<16x256xf32>,
    %c0_70 = arith.constant 0 : index
    %c129_71 = arith.constant 129 : index
    %70 = vector.load %arg11[%c0_70, %c129_71] : memref<16x512xf32, #tpu.memory_space<vmem>>, vector<16x256xf32>
    %71 = arith.mulf %70, %11 : vector<16x256xf32>
    %c80 = arith.constant 80 : index
    %c0_72 = arith.constant 0 : index
    %72 = vector.load %arg13[%c80, %c0_72] : memref<144x256xf32, #tpu.memory_space<vmem>>, vector<16x256xf32>
    tpu.vector_store %arg13[%c80, %c0_72], %71 {strides = array<i32>} : memref<144x256xf32, #tpu.memory_space<vmem>>, vector<16x256xf32>,
    %c0_73 = arith.constant 0 : index
    %c143_74 = arith.constant 143 : index
    %73 = vector.load %arg11[%c0_73, %c143_74] : memref<16x512xf32, #tpu.memory_space<vmem>>, vector<16x256xf32>
    %74 = arith.mulf %73, %9 : vector<16x256xf32>
    %c96 = arith.constant 96 : index
    %c0_75 = arith.constant 0 : index
    %75 = vector.load %arg13[%c96, %c0_75] : memref<144x256xf32, #tpu.memory_space<vmem>>, vector<16x256xf32>
    tpu.vector_store %arg13[%c96, %c0_75], %74 {strides = array<i32>} : memref<144x256xf32, #tpu.memory_space<vmem>>, vector<16x256xf32>,
    %c0_76 = arith.constant 0 : index
    %c144_77 = arith.constant 144 : index
    %76 = vector.load %arg11[%c0_76, %c144_77] : memref<16x512xf32, #tpu.memory_space<vmem>>, vector<16x256xf32>
    %c112_78 = arith.constant 112 : index
    %c0_79 = arith.constant 0 : index
    %77 = vector.load %arg13[%c112_78, %c0_79] : memref<144x256xf32, #tpu.memory_space<vmem>>, vector<16x256xf32>
    tpu.vector_store %arg13[%c112_78, %c0_79], %76 {strides = array<i32>} : memref<144x256xf32, #tpu.memory_space<vmem>>, vector<16x256xf32>,
    %c0_80 = arith.constant 0 : index
    %c145_81 = arith.constant 145 : index
    %78 = vector.load %arg11[%c0_80, %c145_81] : memref<16x512xf32, #tpu.memory_space<vmem>>, vector<16x256xf32>
    %79 = arith.mulf %78, %11 : vector<16x256xf32>
    %c128_82 = arith.constant 128 : index
    %c0_83 = arith.constant 0 : index
    %80 = vector.load %arg13[%c128_82, %c0_83] : memref<144x256xf32, #tpu.memory_space<vmem>>, vector<16x256xf32>
    tpu.vector_store %arg13[%c128_82, %c0_83], %79 {strides = array<i32>} : memref<144x256xf32, #tpu.memory_space<vmem>>, vector<16x256xf32>,
    %c0_84 = arith.constant 0 : index
    %c0_85 = arith.constant 0 : index
    %81 = vector.load %arg6[%c0_84, %c0_85] : memref<8x144xf32, #tpu.memory_space<vmem>>, vector<8x144xf32>
    %c0_86 = arith.constant 0 : index
    %c0_87 = arith.constant 0 : index
    %82 = vector.load %arg13[%c0_86, %c0_87] : memref<144x256xf32, #tpu.memory_space<vmem>>, vector<144x256xf32>
    %cst_88 = arith.constant dense<0.000000e+00> : vector<8x256xf32>
    %83 = tpu.matmul %81, %82, %cst_88 {dimension_numbers = #tpu.dot_dimension_numbers<[1], [0], [0], [1], [0, 0, 1, 1], [], []>} : vector<8x144xf32>, vector<144x256xf32>, vector<8x256xf32> -> vector<8x256xf32>
    %c0_89 = arith.constant 0 : index
    %c0_90 = arith.constant 0 : index
    %84 = vector.load %arg7[%c0_89, %c0_90] : memref<8x1xf32, #tpu.memory_space<vmem>>, vector<8x1xf32>
    %85 = vector.broadcast %84 : vector<8x1xf32> to vector<8x256xf32>
    %86 = arith.addf %83, %85 : vector<8x256xf32>
    %87 = vector.extract_strided_slice %86 {offsets = [0, 0], sizes = [4, 256], strides = [1, 1]} : vector<8x256xf32> to vector<4x256xf32>
    %c0_91 = arith.constant 0 : index
    %88 = memref.load %arg1[%c0_91] : memref<8xf32, #tpu.memory_space<smem>>
    %c1_92 = arith.constant 1 : index
    %89 = memref.load %arg1[%c1_92] : memref<8xf32, #tpu.memory_space<smem>>
    %c2 = arith.constant 2 : index
    %90 = memref.load %arg1[%c2] : memref<8xf32, #tpu.memory_space<smem>>
    %c3 = arith.constant 3 : index
    %91 = memref.load %arg1[%c3] : memref<8xf32, #tpu.memory_space<smem>>
    %c4 = arith.constant 4 : index
    %92 = memref.load %arg1[%c4] : memref<8xf32, #tpu.memory_space<smem>>
    %93 = vector.broadcast %89 : f32 to vector<4x256xf32>
    %94 = arith.mulf %93, %87 : vector<4x256xf32>
    %95 = arith.subf %7, %94 : vector<4x256xf32>
    %96 = vector.broadcast %88 : f32 to vector<4x256xf32>
    %97 = arith.mulf %95, %96 : vector<4x256xf32>
    %cst_93 = arith.constant -1.000000e+00 : f32
    %cst_94 = arith.constant 1.000000e+00 : f32
    %98 = vector.broadcast %cst_93 : f32 to vector<4x256xf32>
    %99 = arith.maximumf %98, %97 : vector<4x256xf32>
    %100 = vector.broadcast %cst_94 : f32 to vector<4x256xf32>
    %101 = arith.minimumf %100, %99 : vector<4x256xf32>
    %102 = arith.subf %101, %97 : vector<4x256xf32>
    %103 = vector.broadcast %92 : f32 to vector<4x256xf32>
    %104 = arith.mulf %102, %103 : vector<4x256xf32>
    %105 = arith.addf %97, %104 : vector<4x256xf32>
    %106 = vector.broadcast %90 : f32 to vector<4x256xf32>
    %107 = arith.mulf %106, %105 : vector<4x256xf32>
    %108 = vector.broadcast %91 : f32 to vector<4x256xf32>
    %109 = arith.mulf %108, %87 : vector<4x256xf32>
    %110 = arith.addf %107, %109 : vector<4x256xf32>
    %c0_95 = arith.constant 0 : index
    %c0_96 = arith.constant 0 : index
    %c0_97 = arith.constant 0 : index
    %111 = vector.load %arg9[%c0_95, %c0_96, %c0_97] : memref<1x4x256xf32, #tpu.memory_space<vmem>>, vector<1x4x256xf32>
    %112 = vector.shape_cast %111 : vector<1x4x256xf32> to vector<4x256xf32>
    %113 = vector.shape_cast %110 : vector<4x256xf32> to vector<1x4x256xf32>
    tpu.vector_store %arg9[%c0_95, %c0_96, %c0_97], %113 {strides = array<i32>} : memref<1x4x256xf32, #tpu.memory_space<vmem>>, vector<1x4x256xf32>,
    return
  }
  func.func @transform_0(%arg0: i32) -> i32 {
    %c0_i32 = arith.constant 0 : i32
    %c0_i32_0 = arith.constant 0 : i32
    return %c0_i32 : i32
  }
  func.func @transform_1(%arg0: i32) -> (i32, i32) {
    %c0_i32 = arith.constant 0 : i32
    %c0_i32_0 = arith.constant 0 : i32
    %c0_i32_1 = arith.constant 0 : i32
    return %c0_i32, %c0_i32_0 : i32, i32
  }
  func.func @transform_2(%arg0: i32) -> (i32, i32, i32) {
    %c0_i32 = arith.constant 0 : i32
    %c0_i32_0 = arith.constant 0 : i32
    %c0_i32_1 = arith.constant 0 : i32
    %c0_i32_2 = arith.constant 0 : i32
    return %c0_i32, %c0_i32_0, %c0_i32_1 : i32, i32, i32
  }
  func.func @transform_3(%arg0: i32) -> (i32, i32) {
    %c0_i32 = arith.constant 0 : i32
    %c0_i32_0 = arith.constant 0 : i32
    %c0_i32_1 = arith.constant 0 : i32
    return %c0_i32, %c0_i32_0 : i32, i32
  }
  func.func @transform_4(%arg0: i32) -> (i32, i32) {
    %c0_i32 = arith.constant 0 : i32
    %c0_i32_0 = arith.constant 0 : i32
    %c0_i32_1 = arith.constant 0 : i32
    return %c0_i32, %c0_i32_0 : i32, i32
  }
  func.func @transform_5(%arg0: i32) -> (i32, i32) {
    %c0_i32 = arith.constant 0 : i32
    %c0_i32_0 = arith.constant 0 : i32
    %c0_i32_1 = arith.constant 0 : i32
    return %c0_i32, %c0_i32_0 : i32, i32
  }
  func.func @transform_6(%arg0: i32) -> (i32, i32) {
    %c0_i32 = arith.constant 0 : i32
    %c0_i32_0 = arith.constant 0 : i32
    %c0_i32_1 = arith.constant 0 : i32
    return %c0_i32, %c0_i32_0 : i32, i32
  }
  func.func @transform_7(%arg0: i32) -> (i32, i32, i32) {
    %c0_i32 = arith.constant 0 : i32
    %c0_i32_0 = arith.constant 0 : i32
    %c0_i32_1 = arith.constant 0 : i32
    return %arg0, %c0_i32, %c0_i32_0 : i32, i32, i32
  }
  func.func @transform_8(%arg0: i32) -> (i32, i32, i32) {
    %c0_i32 = arith.constant 0 : i32
    %c0_i32_0 = arith.constant 0 : i32
    %c0_i32_1 = arith.constant 0 : i32
    return %arg0, %c0_i32, %c0_i32_0 : i32, i32, i32
  }
}

</mosaic_0001>

<llo_original>
// kernel: _run.1
$region0: #{_run.1}
  #allocation0 [shape = 'u32[]', space=smem, size = 0x4, offset = 0x4, fixed_abs, tag = 'smem constant byte address 0x4 - core index']
  #allocation1 [shape = 'u32[72,128]{1,0:T(1,128)}', space=vmem, size = 0x9000, scoped, tag = 'internal scratch']
  %s0 = inlined_call_operand.vmem [shape: f32[2,4,256], index: 0, kind: input, shape index: {}]
  %s1 = inlined_call_operand.hbm [shape: f32[2,4,256], index: 1, kind: input, shape index: {}]
  %s2 = inlined_call_operand.vmem [shape: f32[2,4,256], index: 2, kind: output, shape index: {}]
  %s3 = sld [smem:[#allocation0]]
  $region22: #{_run.1} parent=0
    _
  %s5 = ssub.s32 1, %s3
  %s6 = scalar_select 0, %s5, %s3
  $region1: #{_run.1} parent=0
    #allocation2 [shape = 'u8[8192]{0}', space=vmem, size = 0x2000, scoped, tag = 'input window, operand 1, single buffered']
    #allocation3 [shape = 's32[1]{0}', space=sflag, size = 0x4, scoped, tag = 'scoped memory for _run.1']
    %7 = vsyncpa [#allocation3], 0
    // Predicated region
    $region2: #{_run.1} parent=1 // pred_check
      _
    $region3: #{_run.1} parent=1 // pred_check_branch
      %9 = sbr.rel (0) target = $region5
    $region4: #{_run.1} parent=1 // pred_region
      _
    $region5: #{_run.1} parent=1 // pred_fallthru
      _
    // Predicated region
    $region6: #{_run.1} parent=1 // pred_check
      _
    $region7: #{_run.1} parent=1 // pred_check_branch
      %11 = sbr.rel (0) target = $region9
    $region8: #{_run.1} parent=1 // pred_region
      %13 = vsyncadd [#allocation3], 0
      %s14 = sshll.u32 %s1, 4
      %s15 = int_to_ptr.hbm [resolvable:$true] %s14
      %s16 = sshll.u32 [#allocation2], 4
      %s17 = int_to_ptr.vmem [resolvable:$true] %s16
      %22 = dma.hbm_to_vmem [thread:$0]  %s15, 256, %s17, [#allocation3], 128, 128, 8
    $region9: #{_run.1} parent=1 // pred_fallthru
      _
    // Predicated region
    $region10: #{_run.1} parent=1 // pred_check
      _
    $region11: #{_run.1} parent=1 // pred_check_branch
      %24 = sbr.rel (0) target = $region13
    $region12: #{_run.1} parent=1 // pred_region
      %26 = dma.done [#allocation3], 256
    $region13: #{_run.1} parent=1 // pred_fallthru
      _
    %v27 = vld [vmem:[%s0] sm:$0xff]
    %v28 = vld [vmem:[%s0 + $0x8] sm:$0xff]
    %v29 = vld [vmem:[#allocation2] sm:$0xff]
    %v30 = vld [vmem:[#allocation2 + $0x8] sm:$0xff]
    %v31 = vsub.f32 %v27, %v29
    %v32 = vsub.f32 %v28, %v30
    %v33 = vand.u32 2147483647, %v31
    %v34 = vand.u32 2147483647, %v32
    %35 = vst [vmem:[%s2] sm:$0xff] %v33
    %36 = vst [vmem:[%s2 + $0x8] sm:$0xff] %v34
    // Predicated region
    $region14: #{_run.1} parent=1 // pred_check
      _
    $region15: #{_run.1} parent=1 // pred_check_branch
      %38 = sbr.rel (0) target = $region17
    $region16: #{_run.1} parent=1 // pred_region
      _
    $region17: #{_run.1} parent=1 // pred_fallthru
      _
    // Predicated region
    $region18: #{_run.1} parent=1 // pred_check
      _
    $region19: #{_run.1} parent=1 // pred_check_branch
      %40 = sbr.rel (0) target = $region21
    $region20: #{_run.1} parent=1 // pred_region
      _
    $region21: #{_run.1} parent=1 // pred_fallthru
      _
    %41 = vsyncpa [#allocation3], 1

// kernel: closed_call.9
$region0: #{closed_call.9}
  #allocation0 [shape = 'u32[]', space=smem, size = 0x4, offset = 0x4, fixed_abs, tag = 'smem constant byte address 0x4 - core index']
  #allocation1 [shape = 'u32[72,128]{1,0:T(1,128)}', space=vmem, size = 0x9000, scoped, tag = 'internal scratch']
  #allocation2 [shape = 'f32[4,512]{1,0:T(4,128)}', space=vmem, size = 0x2000, scoped, tag = 'scratch operand']
  #allocation3 [shape = 'f32[16,512]{1,0:T(8,128)}', space=vmem, size = 0x8000, scoped, tag = 'scratch operand']
  #allocation4 [shape = 'f32[72,256]{1,0:T(8,128)}', space=vmem, size = 0x12000, scoped, tag = 'scratch operand']
  #allocation5 [shape = 'f32[144,256]{1,0:T(8,128)}', space=vmem, size = 0x24000, scoped, tag = 'scratch operand']
  %s0 = inlined_call_operand.vmem [shape: f32[8], index: 0, kind: input, shape index: {}]
  %s1 = inlined_call_operand.vmem [shape: f32[16,1], index: 1, kind: input, shape index: {}]
  %s2 = inlined_call_operand.vmem [shape: f32[2,16,256], index: 2, kind: input, shape index: {}]
  %s3 = inlined_call_operand.vmem [shape: f32[16,72], index: 3, kind: input, shape index: {}]
  %s4 = inlined_call_operand.vmem [shape: f32[16,1], index: 4, kind: input, shape index: {}]
  %s5 = inlined_call_operand.vmem [shape: f32[8,144], index: 5, kind: input, shape index: {}]
  %s6 = inlined_call_operand.vmem [shape: f32[8,1], index: 6, kind: input, shape index: {}]
  %s7 = inlined_call_operand.vmem [shape: f32[2,4,256], index: 7, kind: input, shape index: {}]
  %s8 = inlined_call_operand.hbm [shape: f32[2,4,256], index: 8, kind: output, shape index: {}]
  %s9 = sld [smem:[#allocation0]]
  $region69: #{closed_call.9} parent=0
    _
  %s11 = ssub.s32 1, %s9
  %s12 = scalar_select 0, %s11, %s9
  $region1: #{closed_call.9} parent=0
    #allocation6 [shape = 'u8[512]{0}', space=smem, size = 0x200, scoped, tag = 'input window, operand 0, single buffered']
    #allocation7 [shape = 's32[2]{0}', space=sflag, size = 0x8, scoped, tag = 'scoped memory for closed_call.9']
    #allocation8 [shape = 's32[2]{0}', space=sflag, size = 0x8, scoped, tag = 'scoped memory for closed_call.9']
    #allocation9 [shape = 'u8[8192]{0}', space=vmem, size = 0x2000, scoped, tag = 'output window, operand 0']
    %13 = vsyncpa [#allocation8], 0
    %14 = vsyncpa [#allocation7], 0
    %s15 = scalar_lea.sflag [#allocation7], 1
    %16 = vsyncpa %s15, 0
    loop: start=0, step=1, limit=4
    $region2: #{closed_call.9} parent=1 // loop_pre_header
      _
    $region3: #{closed_call.9} parent=1 // loop_header
      %s18 = sphi 0, %s22
      %p19 = scmp.ge.s32.totalorder %s18, 4
      %s26 = sphi 0, %s26
      %s28 = sphi 0, %s26
      %s29 = sphi 0, %s28
      %s43 = sphi 0, %s29
      %s47 = sphi 0, %s47
      %s49 = sphi 0, %s47
      %s50 = sphi 0, %s49
      %s64 = sphi 0, %s50
      %s68 = sphi 0, %s68
      %s70 = sphi 0, %s68
      %s71 = sphi 0, %s70
      %s85 = sphi 0, %s71
      %s89 = sphi 0, %s89
      %s91 = sphi 0, %s89
      %s92 = sphi 0, %s91
      %s106 = sphi 0, %s92
      %s110 = sphi 0, %s110
      %s112 = sphi 0, %s110
      %s113 = sphi 0, %s112
      %s127 = sphi 0, %s113
      %s131 = sphi 0, %s131
      %s133 = sphi 0, %s131
      %s134 = sphi 0, %s133
      %s148 = sphi 0, %s134
      %s152 = sphi 0, %s152
      %s154 = sphi 0, %s152
      %s155 = sphi 0, %s154
      %s169 = sphi 0, %s155
      %s175 = sphi 0, %s177
      %s178 = sphi 0, %s175
      %s179 = sphi 0, %s178
      %s195 = sphi 0, %s179
      %s201 = sphi 0, %s203
      %s204 = sphi 0, %s201
      %s205 = sphi 0, %s204
      %s221 = sphi 0, %s205
    $region4: #{closed_call.9} parent=1 // loop_header_branch
      %21 = sbr.rel (%p19) target = $region8
    $region5: #{closed_call.9} parent=1 // loop_body
      %s23 = ssub.s32 %s18, 1
      %s24 = ssub.s32 %s18, 2
      %s25 = sadd.s32 %s18, 1
      %s27 = sadd.s32 %s26, 1
      %p30 = scmp.eq.s32.totalorder %s18, 1
      %p31 = scmp.ne.s32.totalorder %s26, %s28
      %p32 = scmp.eq.s32.totalorder %s18, 0
      %p33 = por %p31, %p32
      %p34 = scmp.ne.s32.totalorder %s26, %s28
      %p35 = scmp.eq.s32.totalorder %s23, 1
      %p36 = por %p34, %p35
      %p37 = scmp.ne.s32.totalorder %s28, %s29
      %p38 = scmp.eq.s32.totalorder %s23, 0
      %p39 = por %p37, %p38
      %p40 = scmp.ne.s32.totalorder %s28, %s29
      %p41 = scmp.eq.s32.totalorder %s24, 1
      %p42 = por %p40, %p41
      %p44 = scmp.ne.s32.totalorder %s29, %s43
      %p45 = scmp.eq.s32.totalorder %s24, 0
      %p46 = por %p44, %p45
      %s48 = sadd.s32 %s47, 1
      %p51 = scmp.eq.s32.totalorder %s18, 1
      %p52 = scmp.ne.s32.totalorder %s47, %s49
      %p53 = scmp.eq.s32.totalorder %s18, 0
      %p54 = por %p52, %p53
      %p55 = scmp.ne.s32.totalorder %s47, %s49
      %p56 = scmp.eq.s32.totalorder %s23, 1
      %p57 = por %p55, %p56
      %p58 = scmp.ne.s32.totalorder %s49, %s50
      %p59 = scmp.eq.s32.totalorder %s23, 0
      %p60 = por %p58, %p59
      %p61 = scmp.ne.s32.totalorder %s49, %s50
      %p62 = scmp.eq.s32.totalorder %s24, 1
      %p63 = por %p61, %p62
      %p65 = scmp.ne.s32.totalorder %s50, %s64
      %p66 = scmp.eq.s32.totalorder %s24, 0
      %p67 = por %p65, %p66
      %s69 = sadd.s32 %s68, 1
      %p72 = scmp.eq.s32.totalorder %s18, 1
      %p73 = scmp.ne.s32.totalorder %s68, %s70
      %p74 = scmp.eq.s32.totalorder %s18, 0
      %p75 = por %p73, %p74
      %p76 = scmp.ne.s32.totalorder %s68, %s70
      %p77 = scmp.eq.s32.totalorder %s23, 1
      %p78 = por %p76, %p77
      %p79 = scmp.ne.s32.totalorder %s70, %s71
      %p80 = scmp.eq.s32.totalorder %s23, 0
      %p81 = por %p79, %p80
      %p82 = scmp.ne.s32.totalorder %s70, %s71
      %p83 = scmp.eq.s32.totalorder %s24, 1
      %p84 = por %p82, %p83
      %p86 = scmp.ne.s32.totalorder %s71, %s85
      %p87 = scmp.eq.s32.totalorder %s24, 0
      %p88 = por %p86, %p87
      %s90 = sadd.s32 %s89, 1
      %p93 = scmp.eq.s32.totalorder %s18, 1
      %p94 = scmp.ne.s32.totalorder %s89, %s91
      %p95 = scmp.eq.s32.totalorder %s18, 0
      %p96 = por %p94, %p95
      %p97 = scmp.ne.s32.totalorder %s89, %s91
      %p98 = scmp.eq.s32.totalorder %s23, 1
      %p99 = por %p97, %p98
      %p100 = scmp.ne.s32.totalorder %s91, %s92
      %p101 = scmp.eq.s32.totalorder %s23, 0
      %p102 = por %p100, %p101
      %p103 = scmp.ne.s32.totalorder %s91, %s92
      %p104 = scmp.eq.s32.totalorder %s24, 1
      %p105 = por %p103, %p104
      %p107 = scmp.ne.s32.totalorder %s92, %s106
      %p108 = scmp.eq.s32.totalorder %s24, 0
      %p109 = por %p107, %p108
      %s111 = sadd.s32 %s110, 1
      %p114 = scmp.eq.s32.totalorder %s18, 1
      %p115 = scmp.ne.s32.totalorder %s110, %s112
      %p116 = scmp.eq.s32.totalorder %s18, 0
      %p117 = por %p115, %p116
      %p118 = scmp.ne.s32.totalorder %s110, %s112
      %p119 = scmp.eq.s32.totalorder %s23, 1
      %p120 = por %p118, %p119
      %p121 = scmp.ne.s32.totalorder %s112, %s113
      %p122 = scmp.eq.s32.totalorder %s23, 0
      %p123 = por %p121, %p122
      %p124 = scmp.ne.s32.totalorder %s112, %s113
      %p125 = scmp.eq.s32.totalorder %s24, 1
      %p126 = por %p124, %p125
      %p128 = scmp.ne.s32.totalorder %s113, %s127
      %p129 = scmp.eq.s32.totalorder %s24, 0
      %p130 = por %p128, %p129
      %s132 = sadd.s32 %s131, 1
      %p135 = scmp.eq.s32.totalorder %s18, 1
      %p136 = scmp.ne.s32.totalorder %s131, %s133
      %p137 = scmp.eq.s32.totalorder %s18, 0
      %p138 = por %p136, %p137
      %p139 = scmp.ne.s32.totalorder %s131, %s133
      %p140 = scmp.eq.s32.totalorder %s23, 1
      %p141 = por %p139, %p140
      %p142 = scmp.ne.s32.totalorder %s133, %s134
      %p143 = scmp.eq.s32.totalorder %s23, 0
      %p144 = por %p142, %p143
      %p145 = scmp.ne.s32.totalorder %s133, %s134
      %p146 = scmp.eq.s32.totalorder %s24, 1
      %p147 = por %p145, %p146
      %p149 = scmp.ne.s32.totalorder %s134, %s148
      %p150 = scmp.eq.s32.totalorder %s24, 0
      %p151 = por %p149, %p150
      %s153 = sadd.s32 %s152, 1
      %p156 = scmp.eq.s32.totalorder %s18, 1
      %p157 = scmp.ne.s32.totalorder %s152, %s154
      %p158 = scmp.eq.s32.totalorder %s18, 0
      %p159 = por %p157, %p158
      %p160 = scmp.ne.s32.totalorder %s152, %s154
      %p161 = scmp.eq.s32.totalorder %s23, 1
      %p162 = por %p160, %p161
      %p163 = scmp.ne.s32.totalorder %s154, %s155
      %p164 = scmp.eq.s32.totalorder %s23, 0
      %p165 = por %p163, %p164
      %p166 = scmp.ne.s32.totalorder %s154, %s155
      %p167 = scmp.eq.s32.totalorder %s24, 1
      %p168 = por %p166, %p167
      %p170 = scmp.ne.s32.totalorder %s155, %s169
      %p171 = scmp.eq.s32.totalorder %s24, 0
      %p172 = por %p170, %p171
      %s173 = ssub.s32 %s18, %s25
      %p174 = scmp.eq.s32.totalorder %s173, 0
      %s176 = sadd.s32 %s175, 1
      %s177 = scalar_select %p174, %s175, %s176
      %p180 = pneg %p174
      %p181 = scmp.eq.s32.totalorder %s18, 1
      %p182 = por %p180, %p181
      %p183 = scmp.ne.s32.totalorder %s175, %s178
      %p184 = scmp.eq.s32.totalorder %s18, 0
      %p185 = por %p183, %p184
      %p186 = scmp.ne.s32.totalorder %s175, %s178
      %p187 = scmp.eq.s32.totalorder %s23, 1
      %p188 = por %p186, %p187
      %p189 = scmp.ne.s32.totalorder %s178, %s179
      %p190 = scmp.eq.s32.totalorder %s23, 0
      %p191 = por %p189, %p190
      %p192 = scmp.ne.s32.totalorder %s178, %s179
      %p193 = scmp.eq.s32.totalorder %s24, 1
      %p194 = por %p192, %p193
      %p196 = scmp.ne.s32.totalorder %s179, %s195
      %p197 = scmp.eq.s32.totalorder %s24, 0
      %p198 = por %p196, %p197
      %s199 = ssub.s32 %s18, %s25
      %p200 = scmp.eq.s32.totalorder %s199, 0
      %s202 = sadd.s32 %s201, 1
      %s203 = scalar_select %p200, %s201, %s202
      %p206 = pneg %p200
      %p207 = scmp.eq.s32.totalorder %s18, 1
      %p208 = por %p206, %p207
      %p209 = scmp.ne.s32.totalorder %s201, %s204
      %p210 = scmp.eq.s32.totalorder %s18, 0
      %p211 = por %p209, %p210
      %p212 = scmp.ne.s32.totalorder %s201, %s204
      %p213 = scmp.eq.s32.totalorder %s23, 1
      %p214 = por %p212, %p213
      %p215 = scmp.ne.s32.totalorder %s204, %s205
      %p216 = scmp.eq.s32.totalorder %s23, 0
      %p217 = por %p215, %p216
      %p218 = scmp.ne.s32.totalorder %s204, %s205
      %p219 = scmp.eq.s32.totalorder %s24, 1
      %p220 = por %p218, %p219
      %p222 = scmp.ne.s32.totalorder %s205, %s221
      %p223 = scmp.eq.s32.totalorder %s24, 0
      %p224 = por %p222, %p223
      %p225 = scmp.le.s32.totalorder 1, %s18
      %p226 = scmp.lt.s32.totalorder %s18, 3
      %p227 = pnand %p225, %p226
      %p228 = pneg %p227
      // Predicated region
      $region9: #{closed_call.9} parent=5 // pred_check
        _
      $region10: #{closed_call.9} parent=5 // pred_check_branch
        %230 = sbr.rel (%p227) target = $region12
      $region11: #{closed_call.9} parent=5 // pred_region
        %s231 = ssub.s32 %s18, 1
        // Predicated region
        $region13: #{closed_call.9} parent=11 // pred_check
          %p232 = pneg %p39
        $region14: #{closed_call.9} parent=11 // pred_check_branch
          %234 = sbr.rel (%p232) target = $region16
        $region15: #{closed_call.9} parent=11 // pred_region
          %236 = vsyncadd [#allocation8], 0
          %s238 = sshll.u32 %s0, 4
          %s239 = int_to_ptr.vmem [resolvable:$true] %s238
          %241 = dma.vmem_to_smem %s239, 16, [#allocation6], [#allocation8]
        $region16: #{closed_call.9} parent=11 // pred_fallthru
          _
        // Predicated region
        $region17: #{closed_call.9} parent=11 // pred_check
          %p242 = pneg %p60
        $region18: #{closed_call.9} parent=11 // pred_check_branch
          %244 = sbr.rel (%p242) target = $region20
        $region19: #{closed_call.9} parent=11 // pred_region
          _
        $region20: #{closed_call.9} parent=11 // pred_fallthru
          _
        // Predicated region
        $region21: #{closed_call.9} parent=11 // pred_check
          %p245 = pneg %p81
        $region22: #{closed_call.9} parent=11 // pred_check_branch
          %247 = sbr.rel (%p245) target = $region24
        $region23: #{closed_call.9} parent=11 // pred_region
          _
        $region24: #{closed_call.9} parent=11 // pred_fallthru
          _
        // Predicated region
        $region25: #{closed_call.9} parent=11 // pred_check
          %p248 = pneg %p102
        $region26: #{closed_call.9} parent=11 // pred_check_branch
          %250 = sbr.rel (%p248) target = $region28
        $region27: #{closed_call.9} parent=11 // pred_region
          _
        $region28: #{closed_call.9} parent=11 // pred_fallthru
          _
        // Predicated region
        $region29: #{closed_call.9} parent=11 // pred_check
          %p251 = pneg %p123
        $region30: #{closed_call.9} parent=11 // pred_check_branch
          %253 = sbr.rel (%p251) target = $region32
        $region31: #{closed_call.9} parent=11 // pred_region
          _
        $region32: #{closed_call.9} parent=11 // pred_fallthru
          _
        // Predicated region
        $region33: #{closed_call.9} parent=11 // pred_check
          %p254 = pneg %p144
        $region34: #{closed_call.9} parent=11 // pred_check_branch
          %256 = sbr.rel (%p254) target = $region36
        $region35: #{closed_call.9} parent=11 // pred_region
          _
        $region36: #{closed_call.9} parent=11 // pred_fallthru
          _
        // Predicated region
        $region37: #{closed_call.9} parent=11 // pred_check
          %p257 = pneg %p165
        $region38: #{closed_call.9} parent=11 // pred_check_branch
          %259 = sbr.rel (%p257) target = $region40
        $region39: #{closed_call.9} parent=11 // pred_region
          _
        $region40: #{closed_call.9} parent=11 // pred_fallthru
          _
      $region12: #{closed_call.9} parent=5 // pred_fallthru
        _
      %p260 = scmp.lt.s32.totalorder %s18, 2
      // Predicated region
      $region41: #{closed_call.9} parent=5 // pred_check
        %p261 = pneg %p260
      $region42: #{closed_call.9} parent=5 // pred_check_branch
        %263 = sbr.rel (%p261) target = $region44
      $region43: #{closed_call.9} parent=5 // pred_region
        // Predicated region
        $region45: #{closed_call.9} parent=43 // pred_check
          %p264 = pneg %p185
        $region46: #{closed_call.9} parent=43 // pred_check_branch
          %266 = sbr.rel (%p264) target = $region48
        $region47: #{closed_call.9} parent=43 // pred_region
          %p267 = scmp.lt.s32.totalorder %s18, 1
          %s268 = scalar_select %p267, %s18, 1
          %s269 = smul.addr %s268, 2
          %s270 = smul.addr %s269, 4
          %s271 = scalar_lea.vmem %s7, %s270
        $region48: #{closed_call.9} parent=43 // pred_fallthru
          _
      $region44: #{closed_call.9} parent=5 // pred_fallthru
        _
      %p272 = scmp.le.s32.totalorder 1, %s18
      %p273 = scmp.lt.s32.totalorder %s18, 3
      %p274 = pnand %p272, %p273
      %p275 = pneg %p274
      // Predicated region
      $region49: #{closed_call.9} parent=5 // pred_check
        _
      $region50: #{closed_call.9} parent=5 // pred_check_branch
        %277 = sbr.rel (%p274) target = $region52
      $region51: #{closed_call.9} parent=5 // pred_region
        %s278 = ssub.s32 %s18, 1
        // Predicated region
        $region53: #{closed_call.9} parent=51 // pred_check
          %p279 = pneg %p39
        $region54: #{closed_call.9} parent=51 // pred_check_branch
          %281 = sbr.rel (%p279) target = $region56
        $region55: #{closed_call.9} parent=51 // pred_region
          %283 = dma.done [#allocation8], 16
        $region56: #{closed_call.9} parent=51 // pred_fallthru
          _
        %284 = sfence
        %p285 = pneg %p39
        %p286 = pneg %p36
        %p287 = pneg %p60
        %p288 = pneg %p57
        %p289 = pneg %p81
        %p290 = pneg %p78
        %p291 = pneg %p102
        %p292 = pneg %p99
        %p293 = pneg %p123
        %p294 = pneg %p120
        %p295 = pneg %p144
        %p296 = pneg %p141
        %p297 = pneg %p165
        %p298 = pneg %p162
        %p299 = scmp.lt.s32.totalorder %s23, 1
        %s300 = scalar_select %p299, %s23, 1
        %s301 = smul.addr %s300, 2
        %s302 = smul.addr %s301, 4
        %s303 = scalar_lea.vmem %s7, %s302
        %p304 = pneg %p191
        %p305 = pneg %p188
        %p306 = pneg %p217
        %p307 = pneg %p214
        %s308 = sand.u32 %s204, 1
        %s309 = scalar_lea.sflag [#allocation7], %s308
        %s310 = sand.u32 %s204, 1
        %s311 = smul.addr %s310, 8
        %s312 = scalar_lea.vmem [#allocation9], %s311
        %p313 = scmp.lt.s32.totalorder %s23, 1
        %s314 = scalar_select %p313, %s23, 1
        %s315 = smul.addr %s314, 2
        %s316 = smul.addr %s315, 4
        %s317 = scalar_lea.vmem %s7, %s316
        %318 = vst [vmem:[#allocation2] sm:$0xff] 0.0
        %319 = vst [vmem:[#allocation2 + $0x8] sm:$0xff] 0.0
        %320 = vst [vmem:[#allocation3] sm:$0xff] 0.0
        %321 = vst [vmem:[#allocation3 + $0x8] sm:$0xff] 0.0
        %322 = vst [vmem:[#allocation3 + $0x10] sm:$0xff] 0.0
        %323 = vst [vmem:[#allocation3 + $0x18] sm:$0xff] 0.0
        %324 = vst [vmem:[#allocation3 + $0x20] sm:$0xff] 0.0
        %325 = vst [vmem:[#allocation3 + $0x28] sm:$0xff] 0.0
        %326 = vst [vmem:[#allocation3 + $0x30] sm:$0xff] 0.0
        %327 = vst [vmem:[#allocation3 + $0x38] sm:$0xff] 0.0
        %328 = vst [vmem:[#allocation4] sm:$0xff] 0.0
        %329 = vst [vmem:[#allocation4 + $0x8] sm:$0xff] 0.0
        %330 = vst [vmem:[#allocation4 + $0x10] sm:$0xff] 0.0
        %331 = vst [vmem:[#allocation4 + $0x18] sm:$0xff] 0.0
        %332 = vst [vmem:[#allocation4 + $0x20] sm:$0xff] 0.0
        %333 = vst [vmem:[#allocation4 + $0x28] sm:$0xff] 0.0
        %334 = vst [vmem:[#allocation4 + $0x30] sm:$0xff] 0.0
        %335 = vst [vmem:[#allocation4 + $0x38] sm:$0xff] 0.0
        %336 = vst [vmem:[#allocation4 + $0x40] sm:$0xff] 0.0
        %337 = vst [vmem:[#allocation4 + $0x48] sm:$0xff] 0.0
        %338 = vst [vmem:[#allocation4 + $0x50] sm:$0xff] 0.0
        %339 = vst [vmem:[#allocation4 + $0x58] sm:$0xff] 0.0
        %340 = vst [vmem:[#allocation4 + $0x60] sm:$0xff] 0.0
        %341 = vst [vmem:[#allocation4 + $0x68] sm:$0xff] 0.0
        %342 = vst [vmem:[#allocation4 + $0x70] sm:$0xff] 0.0
        %343 = vst [vmem:[#allocation4 + $0x78] sm:$0xff] 0.0
        %344 = vst [vmem:[#allocation4 + $0x80] sm:$0xff] 0.0
        %345 = vst [vmem:[#allocation4 + $0x88] sm:$0xff] 0.0
        %v346 = vld [vmem:[%s317] sm:$0xff]
        %v347 = vld [vmem:[%s2] sm:$0xff]
        %v348 = vld [vmem:[%s2 + $0x8] sm:$0xff]
        %v349 = vld [vmem:[%s2 + $0x10] sm:$0xff]
        %v350 = vld [vmem:[%s2 + $0x18] sm:$0xff]
        %s351 = scalar_lea.vmem %s2, 32
        %v352 = vld [vmem:[%s351] sm:$0xff]
        %v353 = vld [vmem:[%s351 + $0x8] sm:$0xff]
        %v354 = vld [vmem:[%s351 + $0x10] sm:$0xff]
        %v355 = vld [vmem:[%s351 + $0x18] sm:$0xff]
        %356 = vst [vmem:[#allocation2 + $0x4] sm:$0xff] %v346
        %v357 = vld [vmem:[#allocation2] sm:$0xff]
        %v358 = vld [vmem:[#allocation2 + $0x8] sm:$0xf]
        %v361 = vrot.slane %v348, 4
        %vm362 = vcmask 1043456
        %v363 = vsel %vm362, %v347, %v361
        %364 = vrot.lane.b32.xlu0 %v363, 111
        %v365 = vpop.permute.xlu0 %364
        %v366 = vrot.slane %v365, 4
        %vm367 = vcmask 908288
        %v368 = vsel %vm367, %v366, %v365
        %v371 = vmul.f32 %v357, %v368
        %v372 = vmul.f32 %v358, %v366
        %375 = vst [vmem:[#allocation1] ss:$2 sm:$0xff] %v371
        %s376 = scalar_lea.vmem [#allocation1], 16
        %377 = vst [vmem:[%s376] ss:$2 sm:$0xff] %v372
        %v378 = vld.sshfl [vmem:[#allocation1] sm:$0xff pattern:$0x75316420]
        %v379 = vld.sshfl [vmem:[#allocation1 + $0x8] sm:$0xff pattern:$0x75316420]
        %v380 = vld.sshfl [vmem:[#allocation1 + $0x10] sm:$0xff pattern:$0x75316420]
        %381 = vrot.lane.b32.xlu0 %v378, 17
        %v382 = vpop.permute.xlu0 %381
        %383 = vrot.lane.b32.xlu0 %v379, 17
        %v384 = vpop.permute.xlu0 %383
        %385 = vrot.lane.b32.xlu0 %v380, 17
        %v386 = vpop.permute.xlu0 %385
        %vm387 = vcmask 138240
        %v388 = vsel %vm387, %v382, %v384
        %v389 = vsel %vm387, %v384, %v386
        %392 = vst [vmem:[#allocation4] sm:$0xf] %v388
        %393 = vst [vmem:[#allocation4 + $0x8] sm:$0xf] %v389
        %v394 = vld [vmem:[#allocation2] sm:$0xff]
        %v395 = vld [vmem:[#allocation2 + $0x8] sm:$0xf]
        %398 = vst [vmem:[#allocation1] ss:$2 sm:$0xff] %v394
        %s399 = scalar_lea.vmem [#allocation1], 16
        %400 = vst [vmem:[%s399] ss:$2 sm:$0xff] %v395
        %v401 = vld.sshfl [vmem:[#allocation1] sm:$0xff pattern:$0x75316420]
        %v402 = vld.sshfl [vmem:[#allocation1 + $0x8] sm:$0xff pattern:$0x75316420]
        %v403 = vld.sshfl [vmem:[#allocation1 + $0x10] sm:$0xff pattern:$0x75316420]
        %404 = vrot.lane.b32.xlu0 %v401, 16
        %v405 = vpop.permute.xlu0 %404
        %406 = vrot.lane.b32.xlu0 %v402, 16
        %v407 = vpop.permute.xlu0 %406
        %408 = vrot.lane.b32.xlu0 %v403, 16
        %v409 = vpop.permute.xlu0 %408
        %vm410 = vcmask 130048
        %v411 = vsel %vm410, %v405, %v407
        %v412 = vsel %vm410, %v407, %v409
        %415 = vst [vmem:[#allocation4 + $0x10] sm:$0xf] %v411
        %416 = vst [vmem:[#allocation4 + $0x18] sm:$0xf] %v412
        %v417 = vld [vmem:[#allocation2] sm:$0xff]
        %v418 = vld [vmem:[#allocation2 + $0x8] sm:$0xf]
        %v421 = vrot.slane %v353, 4
        %v422 = vsel %vm362, %v352, %v421
        %423 = vrot.lane.b32.xlu0 %v422, 113
        %v424 = vpop.permute.xlu0 %423
        %v425 = vrot.slane %v424, 4
        %vm426 = vcmask 924672
        %v427 = vsel %vm426, %v425, %v424
        %v430 = vmul.f32 %v417, %v427
        %v431 = vmul.f32 %v418, %v425
        %434 = vst [vmem:[#allocation1] ss:$2 sm:$0xff] %v430
        %s435 = scalar_lea.vmem [#allocation1], 16
        %436 = vst [vmem:[%s435] ss:$2 sm:$0xff] %v431
        %v437 = vld.sshfl [vmem:[#allocation1] sm:$0xff pattern:$0x75316420]
        %v438 = vld.sshfl [vmem:[#allocation1 + $0x8] sm:$0xff pattern:$0x75316420]
        %v439 = vld.sshfl [vmem:[#allocation1 + $0x10] sm:$0xff pattern:$0x75316420]
        %440 = vrot.lane.b32.xlu0 %v437, 15
        %v441 = vpop.permute.xlu0 %440
        %442 = vrot.lane.b32.xlu0 %v438, 15
        %v443 = vpop.permute.xlu0 %442
        %444 = vrot.lane.b32.xlu0 %v439, 15
        %v445 = vpop.permute.xlu0 %444
        %vm446 = vcmask 121856
        %v447 = vsel %vm446, %v441, %v443
        %v448 = vsel %vm446, %v443, %v445
        %451 = vst [vmem:[#allocation4 + $0x20] sm:$0xf] %v447
        %452 = vst [vmem:[#allocation4 + $0x28] sm:$0xf] %v448
        %v453 = vld [vmem:[#allocation2] sm:$0xff]
        %v454 = vld [vmem:[#allocation2 + $0x8] sm:$0xf]
        %455 = vrot.lane.b32.xlu0 %v363, 127
        %v456 = vpop.permute.xlu0 %455
        %v457 = vrot.slane %v456, 4
        %vm458 = vcmask 1039360
        %v459 = vsel %vm458, %v457, %v456
        %v462 = vmul.f32 %v453, %v459
        %v463 = vmul.f32 %v454, %v457
        %466 = vst [vmem:[#allocation1] ss:$2 sm:$0xff] %v462
        %s467 = scalar_lea.vmem [#allocation1], 16
        %468 = vst [vmem:[%s467] ss:$2 sm:$0xff] %v463
        %v469 = vld.sshfl [vmem:[#allocation1] sm:$0xff pattern:$0x75316420]
        %v470 = vld.sshfl [vmem:[#allocation1 + $0x8] sm:$0xff pattern:$0x75316420]
        %v471 = vld.sshfl [vmem:[#allocation1 + $0x10] sm:$0xff pattern:$0x75316420]
        %472 = vrot.lane.b32.xlu0 %v469, 1
        %v473 = vpop.permute.xlu0 %472
        %474 = vrot.lane.b32.xlu0 %v470, 1
        %v475 = vpop.permute.xlu0 %474
        %476 = vrot.lane.b32.xlu0 %v471, 1
        %v477 = vpop.permute.xlu0 %476
        %vm478 = vcmask 7168
        %v479 = vsel %vm478, %v473, %v475
        %v480 = vsel %vm478, %v475, %v477
        %483 = vst [vmem:[#allocation4 + $0x30] sm:$0xf] %v479
        %484 = vst [vmem:[#allocation4 + $0x38] sm:$0xf] %v480
        %v485 = vld [vmem:[#allocation2 + $0x4] sm:$0xff]
        %487 = vst [vmem:[#allocation1] ss:$2 sm:$0xff] %v485
        %v488 = vld.sshfl [vmem:[#allocation1] sm:$0xff pattern:$0x75316420]
        %v489 = vld.sshfl [vmem:[#allocation1 + $0x8] sm:$0xff pattern:$0x75316420]
        %492 = vst [vmem:[#allocation4 + $0x40] sm:$0xf] %v488
        %493 = vst [vmem:[#allocation4 + $0x48] sm:$0xf] %v489
        %v494 = vld [vmem:[#allocation2 + $0x4] sm:$0xff]
        %v495 = vld [vmem:[#allocation2 + $0xc] sm:$0xf]
        %496 = vrot.lane.b32.xlu0 %v422, 1
        %v497 = vpop.permute.xlu0 %496
        %v498 = vrot.slane %v497, 4
        %v499 = vsel %vm478, %v498, %v497
        %v502 = vmul.f32 %v494, %v499
        %v503 = vmul.f32 %v495, %v498
        %506 = vst [vmem:[#allocation1] ss:$2 sm:$0xff] %v502
        %s507 = scalar_lea.vmem [#allocation1], 16
        %508 = vst [vmem:[%s507] ss:$2 sm:$0xff] %v503
        %v509 = vld.sshfl [vmem:[#allocation1] sm:$0xff pattern:$0x75316420]
        %v510 = vld.sshfl [vmem:[#allocation1 + $0x8] sm:$0xff pattern:$0x75316420]
        %v511 = vld.sshfl [vmem:[#allocation1 + $0x10] sm:$0xff pattern:$0x75316420]
        %512 = vrot.lane.b32.xlu0 %v509, 127
        %v513 = vpop.permute.xlu0 %512
        %514 = vrot.lane.b32.xlu0 %v510, 127
        %v515 = vpop.permute.xlu0 %514
        %516 = vrot.lane.b32.xlu0 %v511, 127
        %v517 = vpop.permute.xlu0 %516
        %v518 = vsel %vm458, %v513, %v515
        %v519 = vsel %vm458, %v515, %v517
        %522 = vst [vmem:[#allocation4 + $0x50] sm:$0xf] %v518
        %523 = vst [vmem:[#allocation4 + $0x58] sm:$0xf] %v519
        %v524 = vld [vmem:[#allocation2 + $0x4] sm:$0xff]
        %v525 = vld [vmem:[#allocation2 + $0xc] sm:$0xf]
        %526 = vrot.lane.b32.xlu0 %v363, 15
        %v527 = vpop.permute.xlu0 %526
        %v528 = vrot.slane %v527, 4
        %v529 = vsel %vm446, %v528, %v527
        %v532 = vmul.f32 %v524, %v529
        %v533 = vmul.f32 %v525, %v528
        %536 = vst [vmem:[#allocation1] ss:$2 sm:$0xff] %v532
        %s537 = scalar_lea.vmem [#allocation1], 16
        %538 = vst [vmem:[%s537] ss:$2 sm:$0xff] %v533
        %v539 = vld.sshfl [vmem:[#allocation1] sm:$0xff pattern:$0x75316420]
        %v540 = vld.sshfl [vmem:[#allocation1 + $0x8] sm:$0xff pattern:$0x75316420]
        %v541 = vld.sshfl [vmem:[#allocation1 + $0x10] sm:$0xff pattern:$0x75316420]
        %542 = vrot.lane.b32.xlu0 %v539, 113
        %v543 = vpop.permute.xlu0 %542
        %544 = vrot.lane.b32.xlu0 %v540, 113
        %v545 = vpop.permute.xlu0 %544
        %546 = vrot.lane.b32.xlu0 %v541, 113
        %v547 = vpop.permute.xlu0 %546
        %v548 = vsel %vm426, %v543, %v545
        %v549 = vsel %vm426, %v545, %v547
        %552 = vst [vmem:[#allocation4 + $0x60] sm:$0xf] %v548
        %553 = vst [vmem:[#allocation4 + $0x68] sm:$0xf] %v549
        %v554 = vld [vmem:[#allocation2 + $0x4] sm:$0xff]
        %v555 = vld [vmem:[#allocation2 + $0xc] sm:$0xf]
        %558 = vst [vmem:[#allocation1] ss:$2 sm:$0xff] %v554
        %s559 = scalar_lea.vmem [#allocation1], 16
        %560 = vst [vmem:[%s559] ss:$2 sm:$0xff] %v555
        %v561 = vld.sshfl [vmem:[#allocation1] sm:$0xff pattern:$0x75316420]
        %v562 = vld.sshfl [vmem:[#allocation1 + $0x8] sm:$0xff pattern:$0x75316420]
        %v563 = vld.sshfl [vmem:[#allocation1 + $0x10] sm:$0xff pattern:$0x75316420]
        %564 = vrot.lane.b32.xlu0 %v561, 112
        %v565 = vpop.permute.xlu0 %564
        %566 = vrot.lane.b32.xlu0 %v562, 112
        %v567 = vpop.permute.xlu0 %566
        %568 = vrot.lane.b32.xlu0 %v563, 112
        %v569 = vpop.permute.xlu0 %568
        %vm570 = vcmask 916480
        %v571 = vsel %vm570, %v565, %v567
        %v572 = vsel %vm570, %v567, %v569
        %575 = vst [vmem:[#allocation4 + $0x70] sm:$0xf] %v571
        %576 = vst [vmem:[#allocation4 + $0x78] sm:$0xf] %v572
        %v577 = vld [vmem:[#allocation2 + $0x4] sm:$0xff]
        %v578 = vld [vmem:[#allocation2 + $0xc] sm:$0xf]
        %579 = vrot.lane.b32.xlu0 %v422, 17
        %v580 = vpop.permute.xlu0 %579
        %v581 = vrot.slane %v580, 4
        %v582 = vsel %vm387, %v581, %v580
        %v585 = vmul.f32 %v577, %v582
        %v586 = vmul.f32 %v578, %v581
        %589 = vst [vmem:[#allocation1] ss:$2 sm:$0xff] %v585
        %s590 = scalar_lea.vmem [#allocation1], 16
        %591 = vst [vmem:[%s590] ss:$2 sm:$0xff] %v586
        %v592 = vld.sshfl [vmem:[#allocation1] sm:$0xff pattern:$0x75316420]
        %v593 = vld.sshfl [vmem:[#allocation1 + $0x8] sm:$0xff pattern:$0x75316420]
        %v594 = vld.sshfl [vmem:[#allocation1 + $0x10] sm:$0xff pattern:$0x75316420]
        %595 = vrot.lane.b32.xlu0 %v592, 111
        %v596 = vpop.permute.xlu0 %595
        %597 = vrot.lane.b32.xlu0 %v593, 111
        %v598 = vpop.permute.xlu0 %597
        %599 = vrot.lane.b32.xlu0 %v594, 111
        %v600 = vpop.permute.xlu0 %599
        %v601 = vsel %vm367, %v596, %v598
        %v602 = vsel %vm367, %v598, %v600
        %605 = vst [vmem:[#allocation4 + $0x80] sm:$0xf] %v601
        %606 = vst [vmem:[#allocation4 + $0x88] sm:$0xf] %v602
        %v607 = vld [vmem:[%s3] sm:$0xff]
        %v608 = vld [vmem:[%s3 + $0x8] sm:$0xff]
        %v609 = vld [vmem:[#allocation4] sm:$0xff]
        %v610 = vld [vmem:[#allocation4 + $0x8] sm:$0xff]
        %v611 = vld [vmem:[#allocation4 + $0x10] sm:$0xff]
        %v612 = vld [vmem:[#allocation4 + $0x18] sm:$0xff]
        %v613 = vld [vmem:[#allocation4 + $0x20] sm:$0xff]
        %v614 = vld [vmem:[#allocation4 + $0x28] sm:$0xff]
        %v615 = vld [vmem:[#allocation4 + $0x30] sm:$0xff]
        %v616 = vld [vmem:[#allocation4 + $0x38] sm:$0xff]
        %v617 = vld [vmem:[#allocation4 + $0x40] sm:$0xff]
        %v618 = vld [vmem:[#allocation4 + $0x48] sm:$0xff]
        %v619 = vld [vmem:[#allocation4 + $0x50] sm:$0xff]
        %v620 = vld [vmem:[#allocation4 + $0x58] sm:$0xff]
        %v621 = vld [vmem:[#allocation4 + $0x60] sm:$0xff]
        %v622 = vld [vmem:[#allocation4 + $0x68] sm:$0xff]
        %v623 = vld [vmem:[#allocation4 + $0x70] sm:$0xff]
        %v624 = vld [vmem:[#allocation4 + $0x78] sm:$0xff]
        %v625 = vld [vmem:[#allocation4 + $0x80] sm:$0xff]
        %v626 = vld [vmem:[#allocation4 + $0x88] sm:$0xff]
        %v627 = vld [vmem:[%s4] sm:$0xff]
        %v628 = vld [vmem:[%s4 + $0x8] sm:$0xff]
        %630 = vset.pattern.permute.xlu0 0
        %631 = vperm.xlu0 %630, %v627
        %v632 = vpop.permute.xlu0 %631
        %635 = vset.pattern.permute.xlu0 0
        %636 = vperm.xlu0 %635, %v628
        %v637 = vpop.permute.xlu0 %636
        %vm639 = vcmask 588800
        %v641 = vsel %vm639, %v607, 0
        %v644 = vsel %vm639, %v608, 0
        %646 = vmatpush.msra.mxu0 0.0
        %647 = vmatpush.msra.mxu0 0.0
        %648 = vmatpush.msra.mxu0 0.0
        %649 = vmatpush.msra.mxu0 0.0
        %650 = vmatpush.msra.mxu0 0.0
        %651 = vmatpush.msra.mxu0 0.0
        %652 = vmatpush.msra.mxu0 0.0
        %653 = vmatpush.msra.mxu0 %v625
        %654 = vmatpush.msra.mxu0 %v623
        %655 = vmatpush.msra.mxu0 %v621
        %656 = vmatpush.msra.mxu0 %v619
        %657 = vmatpush.msra.mxu0 %v617
        %658 = vmatpush.msra.mxu0 %v615
        %659 = vmatpush.msra.mxu0 %v613
        %660 = vmatpush.msra.mxu0 %v611
        %661 = vmatpush.msra.mxu0 %v609
        %662 = vmatmul.f32.gmra.mxu0 %v641
        %v663 = vpop.f32.mrf.mxu0
        %v664 = vadd.f32 %v632, %v663
        %665 = vmatmul.f32.gmra.mxu0 %v644
        %v666 = vpop.f32.mrf.mxu0
        %v667 = vadd.f32 %v637, %v666
        %668 = vdwg.mxu0
        %669 = vmatpush.msra.mxu0 0.0
        %670 = vmatpush.msra.mxu0 0.0
        %671 = vmatpush.msra.mxu0 0.0
        %672 = vmatpush.msra.mxu0 0.0
        %673 = vmatpush.msra.mxu0 0.0
        %674 = vmatpush.msra.mxu0 0.0
        %675 = vmatpush.msra.mxu0 0.0
        %676 = vmatpush.msra.mxu0 %v626
        %677 = vmatpush.msra.mxu0 %v624
        %678 = vmatpush.msra.mxu0 %v622
        %679 = vmatpush.msra.mxu0 %v620
        %680 = vmatpush.msra.mxu0 %v618
        %681 = vmatpush.msra.mxu0 %v616
        %682 = vmatpush.msra.mxu0 %v614
        %683 = vmatpush.msra.mxu0 %v612
        %684 = vmatpush.msra.mxu0 %v610
        %685 = vmatmul.f32.gmra.mxu0 %v641
        %v686 = vpop.f32.mrf.mxu0
        %v687 = vadd.f32 %v632, %v686
        %688 = vmatmul.f32.gmra.mxu0 %v644
        %v689 = vpop.f32.mrf.mxu0
        %v690 = vadd.f32 %v637, %v689
        %691 = vdwg.mxu0
        %v692 = vld [vmem:[%s1] sm:$0xff]
        %v693 = vld [vmem:[%s1 + $0x8] sm:$0xff]
        %695 = vset.pattern.permute.xlu0 0
        %696 = vperm.xlu0 %695, %v692
        %v697 = vpop.permute.xlu0 %696
        %700 = vset.pattern.permute.xlu0 0
        %701 = vperm.xlu0 %700, %v693
        %v702 = vpop.permute.xlu0 %701
        %v704 = vadd.f32 %v664, %v697
        %v705 = vadd.f32 %v687, %v697
        %v706 = vadd.f32 %v667, %v702
        %v707 = vadd.f32 %v690, %v702
        %v708 = vsub.f32 0.0, %v704
        %v709 = vsub.f32 0.0, %v705
        %v710 = vsub.f32 0.0, %v706
        %v711 = vsub.f32 0.0, %v707
        %v712 = vmul.f32 %v708, 1.442695
        %v713 = vpow.pop %v712
        %v714 = vmul.f32 %v709, 1.442695
        %v715 = vpow.pop %v714
        %v716 = vmul.f32 %v710, 1.442695
        %v717 = vpow.pop %v716
        %v718 = vmul.f32 %v711, 1.442695
        %v719 = vpow.pop %v718
        %v720 = vadd.f32 %v713, 1.0
        %v721 = vadd.f32 %v715, 1.0
        %v722 = vadd.f32 %v717, 1.0
        %v723 = vadd.f32 %v719, 1.0
        %v724 = vrcp.pop %v720
        %v725 = vmul.f32 %v720, %v724
        %v726 = vsub.f32 1.0, %v725
        %v727 = vmul.f32 %v724, %v726
        %v728 = vadd.f32 %v724, %v727
        %vm729 = vweird.f32 %v720
        %vm730 = vweird.f32 %v724
        %vm731 = vmor %vm729, %vm730
        %v732 = vsel %vm731, %v724, %v728
        %v733 = vand.u32 2147483647, %v720
        %vm734 = vcmp.eq.f32.partialorder %v733, 8.507059e+37
        %v735 = vand.u32 %v720, 2147483648
        %v736 = vor.u32 1.1754944e-38, %v735
        %v737 = vsel %vm734, %v736, %v732
        %v738 = vmul.f32 1.0, %v737
        %v739 = vrcp.pop %v721
        %v740 = vmul.f32 %v721, %v739
        %v741 = vsub.f32 1.0, %v740
        %v742 = vmul.f32 %v739, %v741
        %v743 = vadd.f32 %v739, %v742
        %vm744 = vweird.f32 %v721
        %vm745 = vweird.f32 %v739
        %vm746 = vmor %vm744, %vm745
        %v747 = vsel %vm746, %v739, %v743
        %v748 = vand.u32 2147483647, %v721
        %vm749 = vcmp.eq.f32.partialorder %v748, 8.507059e+37
        %v750 = vand.u32 %v721, 2147483648
        %v751 = vor.u32 1.1754944e-38, %v750
        %v752 = vsel %vm749, %v751, %v747
        %v753 = vmul.f32 1.0, %v752
        %v754 = vrcp.pop %v722
        %v755 = vmul.f32 %v722, %v754
        %v756 = vsub.f32 1.0, %v755
        %v757 = vmul.f32 %v754, %v756
        %v758 = vadd.f32 %v754, %v757
        %vm759 = vweird.f32 %v722
        %vm760 = vweird.f32 %v754
        %vm761 = vmor %vm759, %vm760
        %v762 = vsel %vm761, %v754, %v758
        %v763 = vand.u32 2147483647, %v722
        %vm764 = vcmp.eq.f32.partialorder %v763, 8.507059e+37
        %v765 = vand.u32 %v722, 2147483648
        %v766 = vor.u32 1.1754944e-38, %v765
        %v767 = vsel %vm764, %v766, %v762
        %v768 = vmul.f32 1.0, %v767
        %v769 = vrcp.pop %v723
        %v770 = vmul.f32 %v723, %v769
        %v771 = vsub.f32 1.0, %v770
        %v772 = vmul.f32 %v769, %v771
        %v773 = vadd.f32 %v769, %v772
        %vm774 = vweird.f32 %v723
        %vm775 = vweird.f32 %v769
        %vm776 = vmor %vm774, %vm775
        %v777 = vsel %vm776, %v769, %v773
        %v778 = vand.u32 2147483647, %v723
        %vm779 = vcmp.eq.f32.partialorder %v778, 8.507059e+37
        %v780 = vand.u32 %v723, 2147483648
        %v781 = vor.u32 1.1754944e-38, %v780
        %v782 = vsel %vm779, %v781, %v777
        %v783 = vmul.f32 1.0, %v782
        %v784 = vmul.f32 %v704, %v738
        %v785 = vmul.f32 %v705, %v753
        %v786 = vmul.f32 %v706, %v768
        %v787 = vmul.f32 %v707, %v783
        %788 = vst [vmem:[#allocation3 + $0x8] sm:$0xff] %v784
        %789 = vst [vmem:[#allocation3 + $0x10] sm:$0xff] %v785
        %790 = vst [vmem:[#allocation3 + $0x28] sm:$0xff] %v786
        %791 = vst [vmem:[#allocation3 + $0x30] sm:$0xff] %v787
        %v792 = vld [vmem:[#allocation3] sm:$0xff]
        %v793 = vld [vmem:[#allocation3 + $0x8] sm:$0xff]
        %v794 = vld [vmem:[#allocation3 + $0x10] sm:$0xff]
        %v795 = vld [vmem:[#allocation3 + $0x20] sm:$0xff]
        %v796 = vld [vmem:[#allocation3 + $0x28] sm:$0xff]
        %v797 = vld [vmem:[#allocation3 + $0x30] sm:$0xff]
        %800 = vrot.lane.b32.xlu0 %v347, 111
        %v801 = vpop.permute.xlu0 %800
        %802 = vrot.lane.b32.xlu0 %v348, 111
        %v803 = vpop.permute.xlu0 %802
        %804 = vrot.lane.b32.xlu0 %v349, 111
        %v805 = vpop.permute.xlu0 %804
        %806 = vrot.lane.b32.xlu0 %v350, 111
        %v807 = vpop.permute.xlu0 %806
        %v808 = vsel %vm367, %v801, %v803
        %v809 = vsel %vm367, %v805, %v807
        %v816 = vmul.f32 %v792, %v801
        %v817 = vmul.f32 %v793, %v808
        %v818 = vmul.f32 %v794, %v803
        %v819 = vmul.f32 %v795, %v805
        %v820 = vmul.f32 %v796, %v809
        %v821 = vmul.f32 %v797, %v807
        %828 = vrot.lane.b32.xlu0 %v816, 17
        %v829 = vpop.permute.xlu0 %828
        %830 = vrot.lane.b32.xlu0 %v817, 17
        %v831 = vpop.permute.xlu0 %830
        %832 = vrot.lane.b32.xlu0 %v818, 17
        %v833 = vpop.permute.xlu0 %832
        %834 = vrot.lane.b32.xlu0 %v819, 17
        %v835 = vpop.permute.xlu0 %834
        %836 = vrot.lane.b32.xlu0 %v820, 17
        %v837 = vpop.permute.xlu0 %836
        %838 = vrot.lane.b32.xlu0 %v821, 17
        %v839 = vpop.permute.xlu0 %838
        %v840 = vsel %vm387, %v829, %v831
        %v841 = vsel %vm387, %v831, %v833
        %v842 = vsel %vm387, %v835, %v837
        %v843 = vsel %vm387, %v837, %v839
        %848 = vst [vmem:[#allocation5] sm:$0xff] %v840
        %849 = vst [vmem:[#allocation5 + $0x8] sm:$0xff] %v841
        %850 = vst [vmem:[#allocation5 + $0x10] sm:$0xff] %v842
        %851 = vst [vmem:[#allocation5 + $0x18] sm:$0xff] %v843
        %v852 = vld [vmem:[#allocation3] sm:$0xff]
        %v853 = vld [vmem:[#allocation3 + $0x8] sm:$0xff]
        %v854 = vld [vmem:[#allocation3 + $0x10] sm:$0xff]
        %v855 = vld [vmem:[#allocation3 + $0x20] sm:$0xff]
        %v856 = vld [vmem:[#allocation3 + $0x28] sm:$0xff]
        %v857 = vld [vmem:[#allocation3 + $0x30] sm:$0xff]
        %864 = vrot.lane.b32.xlu0 %v852, 16
        %v865 = vpop.permute.xlu0 %864
        %866 = vrot.lane.b32.xlu0 %v853, 16
        %v867 = vpop.permute.xlu0 %866
        %868 = vrot.lane.b32.xlu0 %v854, 16
        %v869 = vpop.permute.xlu0 %868
        %870 = vrot.lane.b32.xlu0 %v855, 16
        %v871 = vpop.permute.xlu0 %870
        %872 = vrot.lane.b32.xlu0 %v856, 16
        %v873 = vpop.permute.xlu0 %872
        %874 = vrot.lane.b32.xlu0 %v857, 16
        %v875 = vpop.permute.xlu0 %874
        %v876 = vsel %vm410, %v865, %v867
        %v877 = vsel %vm410, %v867, %v869
        %v878 = vsel %vm410, %v871, %v873
        %v879 = vsel %vm410, %v873, %v875
        %884 = vst [vmem:[#allocation5 + $0x20] sm:$0xff] %v876
        %885 = vst [vmem:[#allocation5 + $0x28] sm:$0xff] %v877
        %886 = vst [vmem:[#allocation5 + $0x30] sm:$0xff] %v878
        %887 = vst [vmem:[#allocation5 + $0x38] sm:$0xff] %v879
        %v888 = vld [vmem:[#allocation3] sm:$0xff]
        %v889 = vld [vmem:[#allocation3 + $0x8] sm:$0xff]
        %v890 = vld [vmem:[#allocation3 + $0x10] sm:$0xff]
        %v891 = vld [vmem:[#allocation3 + $0x20] sm:$0xff]
        %v892 = vld [vmem:[#allocation3 + $0x28] sm:$0xff]
        %v893 = vld [vmem:[#allocation3 + $0x30] sm:$0xff]
        %896 = vrot.lane.b32.xlu0 %v352, 113
        %v897 = vpop.permute.xlu0 %896
        %898 = vrot.lane.b32.xlu0 %v353, 113
        %v899 = vpop.permute.xlu0 %898
        %900 = vrot.lane.b32.xlu0 %v354, 113
        %v901 = vpop.permute.xlu0 %900
        %902 = vrot.lane.b32.xlu0 %v355, 113
        %v903 = vpop.permute.xlu0 %902
        %v904 = vsel %vm426, %v897, %v899
        %v905 = vsel %vm426, %v901, %v903
        %v912 = vmul.f32 %v888, %v897
        %v913 = vmul.f32 %v889, %v904
        %v914 = vmul.f32 %v890, %v899
        %v915 = vmul.f32 %v891, %v901
        %v916 = vmul.f32 %v892, %v905
        %v917 = vmul.f32 %v893, %v903
        %924 = vrot.lane.b32.xlu0 %v912, 15
        %v925 = vpop.permute.xlu0 %924
        %926 = vrot.lane.b32.xlu0 %v913, 15
        %v927 = vpop.permute.xlu0 %926
        %928 = vrot.lane.b32.xlu0 %v914, 15
        %v929 = vpop.permute.xlu0 %928
        %930 = vrot.lane.b32.xlu0 %v915, 15
        %v931 = vpop.permute.xlu0 %930
        %932 = vrot.lane.b32.xlu0 %v916, 15
        %v933 = vpop.permute.xlu0 %932
        %934 = vrot.lane.b32.xlu0 %v917, 15
        %v935 = vpop.permute.xlu0 %934
        %v936 = vsel %vm446, %v925, %v927
        %v937 = vsel %vm446, %v927, %v929
        %v938 = vsel %vm446, %v931, %v933
        %v939 = vsel %vm446, %v933, %v935
        %944 = vst [vmem:[#allocation5 + $0x40] sm:$0xff] %v936
        %945 = vst [vmem:[#allocation5 + $0x48] sm:$0xff] %v937
        %946 = vst [vmem:[#allocation5 + $0x50] sm:$0xff] %v938
        %947 = vst [vmem:[#allocation5 + $0x58] sm:$0xff] %v939
        %v948 = vld [vmem:[#allocation3] sm:$0xff]
        %v949 = vld [vmem:[#allocation3 + $0x8] sm:$0xff]
        %v950 = vld [vmem:[#allocation3 + $0x10] sm:$0xff]
        %v951 = vld [vmem:[#allocation3 + $0x20] sm:$0xff]
        %v952 = vld [vmem:[#allocation3 + $0x28] sm:$0xff]
        %v953 = vld [vmem:[#allocation3 + $0x30] sm:$0xff]
        %954 = vrot.lane.b32.xlu0 %v347, 127
        %v955 = vpop.permute.xlu0 %954
        %956 = vrot.lane.b32.xlu0 %v348, 127
        %v957 = vpop.permute.xlu0 %956
        %958 = vrot.lane.b32.xlu0 %v349, 127
        %v959 = vpop.permute.xlu0 %958
        %960 = vrot.lane.b32.xlu0 %v350, 127
        %v961 = vpop.permute.xlu0 %960
        %v962 = vsel %vm458, %v955, %v957
        %v963 = vsel %vm458, %v959, %v961
        %v970 = vmul.f32 %v948, %v955
        %v971 = vmul.f32 %v949, %v962
        %v972 = vmul.f32 %v950, %v957
        %v973 = vmul.f32 %v951, %v959
        %v974 = vmul.f32 %v952, %v963
        %v975 = vmul.f32 %v953, %v961
        %982 = vrot.lane.b32.xlu0 %v970, 1
        %v983 = vpop.permute.xlu0 %982
        %984 = vrot.lane.b32.xlu0 %v971, 1
        %v985 = vpop.permute.xlu0 %984
        %986 = vrot.lane.b32.xlu0 %v972, 1
        %v987 = vpop.permute.xlu0 %986
        %988 = vrot.lane.b32.xlu0 %v973, 1
        %v989 = vpop.permute.xlu0 %988
        %990 = vrot.lane.b32.xlu0 %v974, 1
        %v991 = vpop.permute.xlu0 %990
        %992 = vrot.lane.b32.xlu0 %v975, 1
        %v993 = vpop.permute.xlu0 %992
        %v994 = vsel %vm478, %v983, %v985
        %v995 = vsel %vm478, %v985, %v987
        %v996 = vsel %vm478, %v989, %v991
        %v997 = vsel %vm478, %v991, %v993
        %1002 = vst [vmem:[#allocation5 + $0x60] sm:$0xff] %v994
        %1003 = vst [vmem:[#allocation5 + $0x68] sm:$0xff] %v995
        %1004 = vst [vmem:[#allocation5 + $0x70] sm:$0xff] %v996
        %1005 = vst [vmem:[#allocation5 + $0x78] sm:$0xff] %v997
        %v1006 = vld [vmem:[#allocation3 + $0x8] sm:$0xff]
        %v1007 = vld [vmem:[#allocation3 + $0x10] sm:$0xff]
        %v1008 = vld [vmem:[#allocation3 + $0x28] sm:$0xff]
        %v1009 = vld [vmem:[#allocation3 + $0x30] sm:$0xff]
        %1010 = vst [vmem:[#allocation5 + $0x80] sm:$0xff] %v1006
        %1011 = vst [vmem:[#allocation5 + $0x88] sm:$0xff] %v1007
        %1012 = vst [vmem:[#allocation5 + $0x90] sm:$0xff] %v1008
        %1013 = vst [vmem:[#allocation5 + $0x98] sm:$0xff] %v1009
        %v1014 = vld [vmem:[#allocation3 + $0x8] sm:$0xff]
        %v1015 = vld [vmem:[#allocation3 + $0x10] sm:$0xff]
        %v1016 = vld [vmem:[#allocation3 + $0x18] sm:$0xff]
        %v1017 = vld [vmem:[#allocation3 + $0x28] sm:$0xff]
        %v1018 = vld [vmem:[#allocation3 + $0x30] sm:$0xff]
        %v1019 = vld [vmem:[#allocation3 + $0x38] sm:$0xff]
        %1020 = vrot.lane.b32.xlu0 %v352, 1
        %v1021 = vpop.permute.xlu0 %1020
        %1022 = vrot.lane.b32.xlu0 %v353, 1
        %v1023 = vpop.permute.xlu0 %1022
        %1024 = vrot.lane.b32.xlu0 %v354, 1
        %v1025 = vpop.permute.xlu0 %1024
        %1026 = vrot.lane.b32.xlu0 %v355, 1
        %v1027 = vpop.permute.xlu0 %1026
        %v1028 = vsel %vm478, %v1021, %v1023
        %v1029 = vsel %vm478, %v1025, %v1027
        %v1036 = vmul.f32 %v1014, %v1021
        %v1037 = vmul.f32 %v1015, %v1028
        %v1038 = vmul.f32 %v1016, %v1023
        %v1039 = vmul.f32 %v1017, %v1025
        %v1040 = vmul.f32 %v1018, %v1029
        %v1041 = vmul.f32 %v1019, %v1027
        %1048 = vrot.lane.b32.xlu0 %v1036, 127
        %v1049 = vpop.permute.xlu0 %1048
        %1050 = vrot.lane.b32.xlu0 %v1037, 127
        %v1051 = vpop.permute.xlu0 %1050
        %1052 = vrot.lane.b32.xlu0 %v1038, 127
        %v1053 = vpop.permute.xlu0 %1052
        %1054 = vrot.lane.b32.xlu0 %v1039, 127
        %v1055 = vpop.permute.xlu0 %1054
        %1056 = vrot.lane.b32.xlu0 %v1040, 127
        %v1057 = vpop.permute.xlu0 %1056
        %1058 = vrot.lane.b32.xlu0 %v1041, 127
        %v1059 = vpop.permute.xlu0 %1058
        %v1060 = vsel %vm458, %v1049, %v1051
        %v1061 = vsel %vm458, %v1051, %v1053
        %v1062 = vsel %vm458, %v1055, %v1057
        %v1063 = vsel %vm458, %v1057, %v1059
        %1068 = vst [vmem:[#allocation5 + $0xa0] sm:$0xff] %v1060
        %1069 = vst [vmem:[#allocation5 + $0xa8] sm:$0xff] %v1061
        %1070 = vst [vmem:[#allocation5 + $0xb0] sm:$0xff] %v1062
        %1071 = vst [vmem:[#allocation5 + $0xb8] sm:$0xff] %v1063
        %v1072 = vld [vmem:[#allocation3 + $0x8] sm:$0xff]
        %v1073 = vld [vmem:[#allocation3 + $0x10] sm:$0xff]
        %v1074 = vld [vmem:[#allocation3 + $0x18] sm:$0xff]
        %v1075 = vld [vmem:[#allocation3 + $0x28] sm:$0xff]
        %v1076 = vld [vmem:[#allocation3 + $0x30] sm:$0xff]
        %v1077 = vld [vmem:[#allocation3 + $0x38] sm:$0xff]
        %1078 = vrot.lane.b32.xlu0 %v347, 15
        %v1079 = vpop.permute.xlu0 %1078
        %1080 = vrot.lane.b32.xlu0 %v348, 15
        %v1081 = vpop.permute.xlu0 %1080
        %1082 = vrot.lane.b32.xlu0 %v349, 15
        %v1083 = vpop.permute.xlu0 %1082
        %1084 = vrot.lane.b32.xlu0 %v350, 15
        %v1085 = vpop.permute.xlu0 %1084
        %v1086 = vsel %vm446, %v1079, %v1081
        %v1087 = vsel %vm446, %v1083, %v1085
        %v1094 = vmul.f32 %v1072, %v1079
        %v1095 = vmul.f32 %v1073, %v1086
        %v1096 = vmul.f32 %v1074, %v1081
        %v1097 = vmul.f32 %v1075, %v1083
        %v1098 = vmul.f32 %v1076, %v1087
        %v1099 = vmul.f32 %v1077, %v1085
        %1106 = vrot.lane.b32.xlu0 %v1094, 113
        %v1107 = vpop.permute.xlu0 %1106
        %1108 = vrot.lane.b32.xlu0 %v1095, 113
        %v1109 = vpop.permute.xlu0 %1108
        %1110 = vrot.lane.b32.xlu0 %v1096, 113
        %v1111 = vpop.permute.xlu0 %1110
        %1112 = vrot.lane.b32.xlu0 %v1097, 113
        %v1113 = vpop.permute.xlu0 %1112
        %1114 = vrot.lane.b32.xlu0 %v1098, 113
        %v1115 = vpop.permute.xlu0 %1114
        %1116 = vrot.lane.b32.xlu0 %v1099, 113
        %v1117 = vpop.permute.xlu0 %1116
        %v1118 = vsel %vm426, %v1107, %v1109
        %v1119 = vsel %vm426, %v1109, %v1111
        %v1120 = vsel %vm426, %v1113, %v1115
        %v1121 = vsel %vm426, %v1115, %v1117
        %1126 = vst [vmem:[#allocation5 + $0xc0] sm:$0xff] %v1118
        %1127 = vst [vmem:[#allocation5 + $0xc8] sm:$0xff] %v1119
        %1128 = vst [vmem:[#allocation5 + $0xd0] sm:$0xff] %v1120
        %1129 = vst [vmem:[#allocation5 + $0xd8] sm:$0xff] %v1121
        %v1130 = vld [vmem:[#allocation3 + $0x8] sm:$0xff]
        %v1131 = vld [vmem:[#allocation3 + $0x10] sm:$0xff]
        %v1132 = vld [vmem:[#allocation3 + $0x18] sm:$0xff]
        %v1133 = vld [vmem:[#allocation3 + $0x28] sm:$0xff]
        %v1134 = vld [vmem:[#allocation3 + $0x30] sm:$0xff]
        %v1135 = vld [vmem:[#allocation3 + $0x38] sm:$0xff]
        %1142 = vrot.lane.b32.xlu0 %v1130, 112
        %v1143 = vpop.permute.xlu0 %1142
        %1144 = vrot.lane.b32.xlu0 %v1131, 112
        %v1145 = vpop.permute.xlu0 %1144
        %1146 = vrot.lane.b32.xlu0 %v1132, 112
        %v1147 = vpop.permute.xlu0 %1146
        %1148 = vrot.lane.b32.xlu0 %v1133, 112
        %v1149 = vpop.permute.xlu0 %1148
        %1150 = vrot.lane.b32.xlu0 %v1134, 112
        %v1151 = vpop.permute.xlu0 %1150
        %1152 = vrot.lane.b32.xlu0 %v1135, 112
        %v1153 = vpop.permute.xlu0 %1152
        %v1154 = vsel %vm570, %v1143, %v1145
        %v1155 = vsel %vm570, %v1145, %v1147
        %v1156 = vsel %vm570, %v1149, %v1151
        %v1157 = vsel %vm570, %v1151, %v1153
        %1162 = vst [vmem:[#allocation5 + $0xe0] sm:$0xff] %v1154
        %1163 = vst [vmem:[#allocation5 + $0xe8] sm:$0xff] %v1155
        %1164 = vst [vmem:[#allocation5 + $0xf0] sm:$0xff] %v1156
        %1165 = vst [vmem:[#allocation5 + $0xf8] sm:$0xff] %v1157
        %v1166 = vld [vmem:[#allocation3 + $0x8] sm:$0xff]
        %v1167 = vld [vmem:[#allocation3 + $0x10] sm:$0xff]
        %v1168 = vld [vmem:[#allocation3 + $0x18] sm:$0xff]
        %v1169 = vld [vmem:[#allocation3 + $0x28] sm:$0xff]
        %v1170 = vld [vmem:[#allocation3 + $0x30] sm:$0xff]
        %v1171 = vld [vmem:[#allocation3 + $0x38] sm:$0xff]
        %1172 = vrot.lane.b32.xlu0 %v352, 17
        %v1173 = vpop.permute.xlu0 %1172
        %1174 = vrot.lane.b32.xlu0 %v353, 17
        %v1175 = vpop.permute.xlu0 %1174
        %1176 = vrot.lane.b32.xlu0 %v354, 17
        %v1177 = vpop.permute.xlu0 %1176
        %1178 = vrot.lane.b32.xlu0 %v355, 17
        %v1179 = vpop.permute.xlu0 %1178
        %v1180 = vsel %vm387, %v1173, %v1175
        %v1181 = vsel %vm387, %v1177, %v1179
        %v1188 = vmul.f32 %v1166, %v1173
        %v1189 = vmul.f32 %v1167, %v1180
        %v1190 = vmul.f32 %v1168, %v1175
        %v1191 = vmul.f32 %v1169, %v1177
        %v1192 = vmul.f32 %v1170, %v1181
        %v1193 = vmul.f32 %v1171, %v1179
        %1200 = vrot.lane.b32.xlu0 %v1188, 111
        %v1201 = vpop.permute.xlu0 %1200
        %1202 = vrot.lane.b32.xlu0 %v1189, 111
        %v1203 = vpop.permute.xlu0 %1202
        %1204 = vrot.lane.b32.xlu0 %v1190, 111
        %v1205 = vpop.permute.xlu0 %1204
        %1206 = vrot.lane.b32.xlu0 %v1191, 111
        %v1207 = vpop.permute.xlu0 %1206
        %1208 = vrot.lane.b32.xlu0 %v1192, 111
        %v1209 = vpop.permute.xlu0 %1208
        %1210 = vrot.lane.b32.xlu0 %v1193, 111
        %v1211 = vpop.permute.xlu0 %1210
        %v1212 = vsel %vm367, %v1201, %v1203
        %v1213 = vsel %vm367, %v1203, %v1205
        %v1214 = vsel %vm367, %v1207, %v1209
        %v1215 = vsel %vm367, %v1209, %v1211
        %1220 = vst [vmem:[#allocation5 + $0x100] sm:$0xff] %v1212
        %1221 = vst [vmem:[#allocation5 + $0x108] sm:$0xff] %v1213
        %1222 = vst [vmem:[#allocation5 + $0x110] sm:$0xff] %v1214
        %1223 = vst [vmem:[#allocation5 + $0x118] sm:$0xff] %v1215
        %v1224 = vld [vmem:[%s5] sm:$0xff]
        %v1225 = vld [vmem:[%s5 + $0x8] sm:$0xff]
        %v1226 = vld [vmem:[#allocation5] sm:$0xff]
        %v1227 = vld [vmem:[#allocation5 + $0x8] sm:$0xff]
        %v1228 = vld [vmem:[#allocation5 + $0x10] sm:$0xff]
        %v1229 = vld [vmem:[#allocation5 + $0x18] sm:$0xff]
        %v1230 = vld [vmem:[#allocation5 + $0x20] sm:$0xff]
        %v1231 = vld [vmem:[#allocation5 + $0x28] sm:$0xff]
        %v1232 = vld [vmem:[#allocation5 + $0x30] sm:$0xff]
        %v1233 = vld [vmem:[#allocation5 + $0x38] sm:$0xff]
        %v1234 = vld [vmem:[#allocation5 + $0x40] sm:$0xff]
        %v1235 = vld [vmem:[#allocation5 + $0x48] sm:$0xff]
        %v1236 = vld [vmem:[#allocation5 + $0x50] sm:$0xff]
        %v1237 = vld [vmem:[#allocation5 + $0x58] sm:$0xff]
        %v1238 = vld [vmem:[#allocation5 + $0x60] sm:$0xff]
        %v1239 = vld [vmem:[#allocation5 + $0x68] sm:$0xff]
        %v1240 = vld [vmem:[#allocation5 + $0x70] sm:$0xff]
        %v1241 = vld [vmem:[#allocation5 + $0x78] sm:$0xff]
        %v1242 = vld [vmem:[#allocation5 + $0x80] sm:$0xff]
        %v1243 = vld [vmem:[#allocation5 + $0x88] sm:$0xff]
        %v1244 = vld [vmem:[#allocation5 + $0x90] sm:$0xff]
        %v1245 = vld [vmem:[#allocation5 + $0x98] sm:$0xff]
        %v1246 = vld [vmem:[#allocation5 + $0xa0] sm:$0xff]
        %v1247 = vld [vmem:[#allocation5 + $0xa8] sm:$0xff]
        %v1248 = vld [vmem:[#allocation5 + $0xb0] sm:$0xff]
        %v1249 = vld [vmem:[#allocation5 + $0xb8] sm:$0xff]
        %v1250 = vld [vmem:[#allocation5 + $0xc0] sm:$0xff]
        %v1251 = vld [vmem:[#allocation5 + $0xc8] sm:$0xff]
        %v1252 = vld [vmem:[#allocation5 + $0xd0] sm:$0xff]
        %v1253 = vld [vmem:[#allocation5 + $0xd8] sm:$0xff]
        %v1254 = vld [vmem:[#allocation5 + $0xe0] sm:$0xff]
        %v1255 = vld [vmem:[#allocation5 + $0xe8] sm:$0xff]
        %v1256 = vld [vmem:[#allocation5 + $0xf0] sm:$0xff]
        %v1257 = vld [vmem:[#allocation5 + $0xf8] sm:$0xff]
        %v1258 = vld [vmem:[#allocation5 + $0x100] sm:$0xff]
        %v1259 = vld [vmem:[#allocation5 + $0x108] sm:$0xff]
        %v1260 = vld [vmem:[#allocation5 + $0x110] sm:$0xff]
        %v1261 = vld [vmem:[#allocation5 + $0x118] sm:$0xff]
        %v1262 = vld [vmem:[%s6] sm:$0xff]
        %1264 = vset.pattern.permute.xlu0 0
        %1265 = vperm.xlu0 %1264, %v1262
        %v1266 = vpop.permute.xlu0 %1265
        %v1269 = vsel %vm410, %v1225, 0
        %1271 = vmatpush.msra.mxu0 %v1256
        %1272 = vmatpush.msra.mxu0 %v1254
        %1273 = vmatpush.msra.mxu0 %v1252
        %1274 = vmatpush.msra.mxu0 %v1250
        %1275 = vmatpush.msra.mxu0 %v1248
        %1276 = vmatpush.msra.mxu0 %v1246
        %1277 = vmatpush.msra.mxu0 %v1244
        %1278 = vmatpush.msra.mxu0 %v1242
        %1279 = vmatpush.msra.mxu0 %v1240
        %1280 = vmatpush.msra.mxu0 %v1238
        %1281 = vmatpush.msra.mxu0 %v1236
        %1282 = vmatpush.msra.mxu0 %v1234
        %1283 = vmatpush.msra.mxu0 %v1232
        %1284 = vmatpush.msra.mxu0 %v1230
        %1285 = vmatpush.msra.mxu0 %v1228
        %1286 = vmatpush.msra.mxu0 %v1226
        %1287 = vmatmul.f32.gmra.mxu0 %v1224
        %v1288 = vpop.f32.mrf.mxu0
        %v1289 = vadd.f32 %v1266, %v1288
        %1290 = vdwg.mxu0
        %1291 = vmatpush.msra.mxu0 0.0
        %1292 = vmatpush.msra.mxu0 0.0
        %1293 = vmatpush.msra.mxu0 0.0
        %1294 = vmatpush.msra.mxu0 0.0
        %1295 = vmatpush.msra.mxu0 0.0
        %1296 = vmatpush.msra.mxu0 0.0
        %1297 = vmatpush.msra.mxu0 0.0
        %1298 = vmatpush.msra.mxu0 0.0
        %1299 = vmatpush.msra.mxu0 0.0
        %1300 = vmatpush.msra.mxu0 0.0
        %1301 = vmatpush.msra.mxu0 0.0
        %1302 = vmatpush.msra.mxu0 0.0
        %1303 = vmatpush.msra.mxu0 0.0
        %1304 = vmatpush.msra.mxu0 0.0
        %1305 = vmatpush.msra.mxu0 %v1260
        %1306 = vmatpush.msra.mxu0 %v1258
        %1307 = vmatmul.f32.gmra.mxu0 %v1269
        %v1308 = vpop.f32.mrf.mxu0
        %v1309 = vadd.f32 %v1289, %v1308
        %1310 = vdwg.mxu0
        %1311 = vmatpush.msra.mxu0 %v1257
        %1312 = vmatpush.msra.mxu0 %v1255
        %1313 = vmatpush.msra.mxu0 %v1253
        %1314 = vmatpush.msra.mxu0 %v1251
        %1315 = vmatpush.msra.mxu0 %v1249
        %1316 = vmatpush.msra.mxu0 %v1247
        %1317 = vmatpush.msra.mxu0 %v1245
        %1318 = vmatpush.msra.mxu0 %v1243
        %1319 = vmatpush.msra.mxu0 %v1241
        %1320 = vmatpush.msra.mxu0 %v1239
        %1321 = vmatpush.msra.mxu0 %v1237
        %1322 = vmatpush.msra.mxu0 %v1235
        %1323 = vmatpush.msra.mxu0 %v1233
        %1324 = vmatpush.msra.mxu0 %v1231
        %1325 = vmatpush.msra.mxu0 %v1229
        %1326 = vmatpush.msra.mxu0 %v1227
        %1327 = vmatmul.f32.gmra.mxu0 %v1224
        %v1328 = vpop.f32.mrf.mxu0
        %v1329 = vadd.f32 %v1266, %v1328
        %1330 = vdwg.mxu0
        %1331 = vmatpush.msra.mxu0 0.0
        %1332 = vmatpush.msra.mxu0 0.0
        %1333 = vmatpush.msra.mxu0 0.0
        %1334 = vmatpush.msra.mxu0 0.0
        %1335 = vmatpush.msra.mxu0 0.0
        %1336 = vmatpush.msra.mxu0 0.0
        %1337 = vmatpush.msra.mxu0 0.0
        %1338 = vmatpush.msra.mxu0 0.0
        %1339 = vmatpush.msra.mxu0 0.0
        %1340 = vmatpush.msra.mxu0 0.0
        %1341 = vmatpush.msra.mxu0 0.0
        %1342 = vmatpush.msra.mxu0 0.0
        %1343 = vmatpush.msra.mxu0 0.0
        %1344 = vmatpush.msra.mxu0 0.0
        %1345 = vmatpush.msra.mxu0 %v1261
        %1346 = vmatpush.msra.mxu0 %v1259
        %1347 = vmatmul.f32.gmra.mxu0 %v1269
        %v1348 = vpop.f32.mrf.mxu0
        %v1349 = vadd.f32 %v1329, %v1348
        %1350 = vdwg.mxu0
        %s1351 = sld [smem:[#allocation6]]
        %s1352 = sld [smem:[#allocation6 + $0x1]]
        %s1353 = sld [smem:[#allocation6 + $0x2]]
        %s1354 = sld [smem:[#allocation6 + $0x3]]
        %s1355 = sld [smem:[#allocation6 + $0x4]]
        %v1356 = vstv %s1352
        %v1357 = vmul.f32 %v1356, %v1309
        %v1358 = vmul.f32 %v1356, %v1349
        %v1361 = vrot.slane %v1358, 4
        %v1362 = vsel %vm362, %v1357, %v1361
        %v1364 = vsub.f32 %v346, %v1362
        %v1365 = vstv %s1351
        %v1366 = vmul.f32 %v1364, %v1365
        %v1367 = vmax.f32 %v1366, -1.0
        %v1368 = vmin.f32 %v1367, 1.0
        %v1369 = vsub.f32 %v1368, %v1366
        %v1370 = vstv %s1355
        %v1371 = vmul.f32 %v1369, %v1370
        %v1372 = vadd.f32 %v1366, %v1371
        %v1373 = vstv %s1353
        %v1374 = vmul.f32 %v1373, %v1372
        %v1375 = vstv %s1354
        %v1376 = vmul.f32 %v1375, %v1309
        %v1377 = vmul.f32 %v1375, %v1349
        %v1380 = vrot.slane %v1377, 4
        %v1381 = vsel %vm362, %v1376, %v1380
        %v1383 = vadd.f32 %v1374, %v1381
        %1384 = vst [vmem:[%s312] sm:$0xff] %v1383
        %s1385 = sand.u32 %s204, 1
        %s1386 = scalar_lea.sflag [#allocation7], %s1385
        %s1387 = sand.u32 %s204, 1
        %s1388 = smul.addr %s1387, 8
        %s1389 = scalar_lea.vmem [#allocation9], %s1388
        // Predicated region
        $region57: #{closed_call.9} parent=51 // pred_check
          %p1390 = pneg %p214
        $region58: #{closed_call.9} parent=51 // pred_check_branch
          %1392 = sbr.rel (%p1390) target = $region60
        $region59: #{closed_call.9} parent=51 // pred_region
          %1394 = vsyncadd %s1386, 0
          %s1395 = smul.addr %s23, 2
          %s1396 = smul.addr %s1395, 4
          %s1397 = scalar_lea.hbm %s8, %s1396
          %s1399 = sshll.u32 %s1389, 4
          %s1400 = int_to_ptr.vmem [resolvable:$true] %s1399
          %s1401 = sshll.u32 %s1397, 4
          %s1402 = int_to_ptr.hbm [resolvable:$true] %s1401
          %1404 = dma.vmem_to_hbm [thread:$0]  %s1400, 128, %s1402, %s1386
        $region60: #{closed_call.9} parent=51 // pred_fallthru
          _
      $region52: #{closed_call.9} parent=5 // pred_fallthru
        _
      %p1405 = scmp.le.s32.totalorder 2, %s18
      // Predicated region
      $region61: #{closed_call.9} parent=5 // pred_check
        %p1406 = pneg %p1405
      $region62: #{closed_call.9} parent=5 // pred_check_branch
        %1408 = sbr.rel (%p1406) target = $region64
      $region63: #{closed_call.9} parent=5 // pred_region
        %s1409 = ssub.s32 %s18, 2
        // Predicated region
        $region65: #{closed_call.9} parent=63 // pred_check
          %p1410 = pneg %p220
        $region66: #{closed_call.9} parent=63 // pred_check_branch
          %1412 = sbr.rel (%p1410) target = $region68
        $region67: #{closed_call.9} parent=63 // pred_region
          %s1413 = sand.u32 %s205, 1
          %s1414 = scalar_lea.sflag [#allocation7], %s1413
          %s1415 = sand.u32 %s205, 1
          %s1416 = smul.addr %s1415, 8
          %s1417 = scalar_lea.vmem [#allocation9], %s1416
          %1419 = dma.done %s1414, 128
        $region68: #{closed_call.9} parent=63 // pred_fallthru
          _
      $region64: #{closed_call.9} parent=5 // pred_fallthru
        _
    $region6: #{closed_call.9} parent=1 // loop_footer
      %s22 = sadd.s32 1, %s18
    $region7: #{closed_call.9} parent=1 // loop_footer_branch
      %17 = sbr.rel target = $region3
    $region8: #{closed_call.9} parent=1 // loop_exit
      _
    %1420 = vsyncpa [#allocation7], 1
    %s1421 = scalar_lea.sflag [#allocation7], 1
    %1422 = vsyncpa %s1421, 1
    %1423 = vsyncpa [#allocation8], 1
    %s1424 = scalar_lea.sflag [#allocation8], 1
    %1425 = vsyncpa %s1424, 1

// kernel: closed_call.8
$region0: #{closed_call.8}
  #allocation0 [shape = 'u32[]', space=smem, size = 0x4, offset = 0x4, fixed_abs, tag = 'smem constant byte address 0x4 - core index']
  #allocation1 [shape = 'u32[72,128]{1,0:T(1,128)}', space=vmem, size = 0x9000, scoped, tag = 'internal scratch']
  #allocation2 [shape = 'f32[4,512]{1,0:T(4,128)}', space=vmem, size = 0x2000, scoped, tag = 'scratch operand']
  #allocation3 [shape = 'f32[16,512]{1,0:T(8,128)}', space=vmem, size = 0x8000, scoped, tag = 'scratch operand']
  #allocation4 [shape = 'f32[72,256]{1,0:T(8,128)}', space=vmem, size = 0x12000, scoped, tag = 'scratch operand']
  #allocation5 [shape = 'f32[144,256]{1,0:T(8,128)}', space=vmem, size = 0x24000, scoped, tag = 'scratch operand']
  %s0 = inlined_call_operand.vmem [shape: f32[8], index: 0, kind: input, shape index: {}]
  %s1 = inlined_call_operand.vmem [shape: f32[16,1], index: 1, kind: input, shape index: {}]
  %s2 = inlined_call_operand.vmem [shape: f32[2,16,256], index: 2, kind: input, shape index: {}]
  %s3 = inlined_call_operand.vmem [shape: f32[16,72], index: 3, kind: input, shape index: {}]
  %s4 = inlined_call_operand.vmem [shape: f32[16,1], index: 4, kind: input, shape index: {}]
  %s5 = inlined_call_operand.vmem [shape: f32[8,144], index: 5, kind: input, shape index: {}]
  %s6 = inlined_call_operand.vmem [shape: f32[8,1], index: 6, kind: input, shape index: {}]
  %s7 = inlined_call_operand.vmem [shape: f32[2,4,256], index: 7, kind: input, shape index: {}]
  %s8 = inlined_call_operand.vmem [shape: f32[2,4,256], index: 8, kind: output, shape index: {}]
  %s9 = sld [smem:[#allocation0]]
  $region69: #{closed_call.8} parent=0
    _
  %s11 = ssub.s32 1, %s9
  %s12 = scalar_select 0, %s11, %s9
  $region1: #{closed_call.8} parent=0
    #allocation6 [shape = 'u8[512]{0}', space=smem, size = 0x200, scoped, tag = 'input window, operand 0, single buffered']
    #allocation7 [shape = 's32[2]{0}', space=sflag, size = 0x8, scoped, tag = 'scoped memory for closed_call.8']
    %13 = vsyncpa [#allocation7], 0
    loop: start=0, step=1, limit=4
    $region2: #{closed_call.8} parent=1 // loop_pre_header
      _
    $region3: #{closed_call.8} parent=1 // loop_header
      %s15 = sphi 0, %s19
      %p16 = scmp.ge.s32.totalorder %s15, 4
      %s23 = sphi 0, %s23
      %s25 = sphi 0, %s23
      %s26 = sphi 0, %s25
      %s40 = sphi 0, %s26
      %s44 = sphi 0, %s44
      %s46 = sphi 0, %s44
      %s47 = sphi 0, %s46
      %s61 = sphi 0, %s47
      %s65 = sphi 0, %s65
      %s67 = sphi 0, %s65
      %s68 = sphi 0, %s67
      %s82 = sphi 0, %s68
      %s86 = sphi 0, %s86
      %s88 = sphi 0, %s86
      %s89 = sphi 0, %s88
      %s103 = sphi 0, %s89
      %s107 = sphi 0, %s107
      %s109 = sphi 0, %s107
      %s110 = sphi 0, %s109
      %s124 = sphi 0, %s110
      %s128 = sphi 0, %s128
      %s130 = sphi 0, %s128
      %s131 = sphi 0, %s130
      %s145 = sphi 0, %s131
      %s149 = sphi 0, %s149
      %s151 = sphi 0, %s149
      %s152 = sphi 0, %s151
      %s166 = sphi 0, %s152
      %s172 = sphi 0, %s174
      %s175 = sphi 0, %s172
      %s176 = sphi 0, %s175
      %s192 = sphi 0, %s176
      %s198 = sphi 0, %s200
      %s201 = sphi 0, %s198
      %s202 = sphi 0, %s201
      %s218 = sphi 0, %s202
    $region4: #{closed_call.8} parent=1 // loop_header_branch
      %18 = sbr.rel (%p16) target = $region8
    $region5: #{closed_call.8} parent=1 // loop_body
      %s20 = ssub.s32 %s15, 1
      %s21 = ssub.s32 %s15, 2
      %s22 = sadd.s32 %s15, 1
      %s24 = sadd.s32 %s23, 1
      %p27 = scmp.eq.s32.totalorder %s15, 1
      %p28 = scmp.ne.s32.totalorder %s23, %s25
      %p29 = scmp.eq.s32.totalorder %s15, 0
      %p30 = por %p28, %p29
      %p31 = scmp.ne.s32.totalorder %s23, %s25
      %p32 = scmp.eq.s32.totalorder %s20, 1
      %p33 = por %p31, %p32
      %p34 = scmp.ne.s32.totalorder %s25, %s26
      %p35 = scmp.eq.s32.totalorder %s20, 0
      %p36 = por %p34, %p35
      %p37 = scmp.ne.s32.totalorder %s25, %s26
      %p38 = scmp.eq.s32.totalorder %s21, 1
      %p39 = por %p37, %p38
      %p41 = scmp.ne.s32.totalorder %s26, %s40
      %p42 = scmp.eq.s32.totalorder %s21, 0
      %p43 = por %p41, %p42
      %s45 = sadd.s32 %s44, 1
      %p48 = scmp.eq.s32.totalorder %s15, 1
      %p49 = scmp.ne.s32.totalorder %s44, %s46
      %p50 = scmp.eq.s32.totalorder %s15, 0
      %p51 = por %p49, %p50
      %p52 = scmp.ne.s32.totalorder %s44, %s46
      %p53 = scmp.eq.s32.totalorder %s20, 1
      %p54 = por %p52, %p53
      %p55 = scmp.ne.s32.totalorder %s46, %s47
      %p56 = scmp.eq.s32.totalorder %s20, 0
      %p57 = por %p55, %p56
      %p58 = scmp.ne.s32.totalorder %s46, %s47
      %p59 = scmp.eq.s32.totalorder %s21, 1
      %p60 = por %p58, %p59
      %p62 = scmp.ne.s32.totalorder %s47, %s61
      %p63 = scmp.eq.s32.totalorder %s21, 0
      %p64 = por %p62, %p63
      %s66 = sadd.s32 %s65, 1
      %p69 = scmp.eq.s32.totalorder %s15, 1
      %p70 = scmp.ne.s32.totalorder %s65, %s67
      %p71 = scmp.eq.s32.totalorder %s15, 0
      %p72 = por %p70, %p71
      %p73 = scmp.ne.s32.totalorder %s65, %s67
      %p74 = scmp.eq.s32.totalorder %s20, 1
      %p75 = por %p73, %p74
      %p76 = scmp.ne.s32.totalorder %s67, %s68
      %p77 = scmp.eq.s32.totalorder %s20, 0
      %p78 = por %p76, %p77
      %p79 = scmp.ne.s32.totalorder %s67, %s68
      %p80 = scmp.eq.s32.totalorder %s21, 1
      %p81 = por %p79, %p80
      %p83 = scmp.ne.s32.totalorder %s68, %s82
      %p84 = scmp.eq.s32.totalorder %s21, 0
      %p85 = por %p83, %p84
      %s87 = sadd.s32 %s86, 1
      %p90 = scmp.eq.s32.totalorder %s15, 1
      %p91 = scmp.ne.s32.totalorder %s86, %s88
      %p92 = scmp.eq.s32.totalorder %s15, 0
      %p93 = por %p91, %p92
      %p94 = scmp.ne.s32.totalorder %s86, %s88
      %p95 = scmp.eq.s32.totalorder %s20, 1
      %p96 = por %p94, %p95
      %p97 = scmp.ne.s32.totalorder %s88, %s89
      %p98 = scmp.eq.s32.totalorder %s20, 0
      %p99 = por %p97, %p98
      %p100 = scmp.ne.s32.totalorder %s88, %s89
      %p101 = scmp.eq.s32.totalorder %s21, 1
      %p102 = por %p100, %p101
      %p104 = scmp.ne.s32.totalorder %s89, %s103
      %p105 = scmp.eq.s32.totalorder %s21, 0
      %p106 = por %p104, %p105
      %s108 = sadd.s32 %s107, 1
      %p111 = scmp.eq.s32.totalorder %s15, 1
      %p112 = scmp.ne.s32.totalorder %s107, %s109
      %p113 = scmp.eq.s32.totalorder %s15, 0
      %p114 = por %p112, %p113
      %p115 = scmp.ne.s32.totalorder %s107, %s109
      %p116 = scmp.eq.s32.totalorder %s20, 1
      %p117 = por %p115, %p116
      %p118 = scmp.ne.s32.totalorder %s109, %s110
      %p119 = scmp.eq.s32.totalorder %s20, 0
      %p120 = por %p118, %p119
      %p121 = scmp.ne.s32.totalorder %s109, %s110
      %p122 = scmp.eq.s32.totalorder %s21, 1
      %p123 = por %p121, %p122
      %p125 = scmp.ne.s32.totalorder %s110, %s124
      %p126 = scmp.eq.s32.totalorder %s21, 0
      %p127 = por %p125, %p126
      %s129 = sadd.s32 %s128, 1
      %p132 = scmp.eq.s32.totalorder %s15, 1
      %p133 = scmp.ne.s32.totalorder %s128, %s130
      %p134 = scmp.eq.s32.totalorder %s15, 0
      %p135 = por %p133, %p134
      %p136 = scmp.ne.s32.totalorder %s128, %s130
      %p137 = scmp.eq.s32.totalorder %s20, 1
      %p138 = por %p136, %p137
      %p139 = scmp.ne.s32.totalorder %s130, %s131
      %p140 = scmp.eq.s32.totalorder %s20, 0
      %p141 = por %p139, %p140
      %p142 = scmp.ne.s32.totalorder %s130, %s131
      %p143 = scmp.eq.s32.totalorder %s21, 1
      %p144 = por %p142, %p143
      %p146 = scmp.ne.s32.totalorder %s131, %s145
      %p147 = scmp.eq.s32.totalorder %s21, 0
      %p148 = por %p146, %p147
      %s150 = sadd.s32 %s149, 1
      %p153 = scmp.eq.s32.totalorder %s15, 1
      %p154 = scmp.ne.s32.totalorder %s149, %s151
      %p155 = scmp.eq.s32.totalorder %s15, 0
      %p156 = por %p154, %p155
      %p157 = scmp.ne.s32.totalorder %s149, %s151
      %p158 = scmp.eq.s32.totalorder %s20, 1
      %p159 = por %p157, %p158
      %p160 = scmp.ne.s32.totalorder %s151, %s152
      %p161 = scmp.eq.s32.totalorder %s20, 0
      %p162 = por %p160, %p161
      %p163 = scmp.ne.s32.totalorder %s151, %s152
      %p164 = scmp.eq.s32.totalorder %s21, 1
      %p165 = por %p163, %p164
      %p167 = scmp.ne.s32.totalorder %s152, %s166
      %p168 = scmp.eq.s32.totalorder %s21, 0
      %p169 = por %p167, %p168
      %s170 = ssub.s32 %s15, %s22
      %p171 = scmp.eq.s32.totalorder %s170, 0
      %s173 = sadd.s32 %s172, 1
      %s174 = scalar_select %p171, %s172, %s173
      %p177 = pneg %p171
      %p178 = scmp.eq.s32.totalorder %s15, 1
      %p179 = por %p177, %p178
      %p180 = scmp.ne.s32.totalorder %s172, %s175
      %p181 = scmp.eq.s32.totalorder %s15, 0
      %p182 = por %p180, %p181
      %p183 = scmp.ne.s32.totalorder %s172, %s175
      %p184 = scmp.eq.s32.totalorder %s20, 1
      %p185 = por %p183, %p184
      %p186 = scmp.ne.s32.totalorder %s175, %s176
      %p187 = scmp.eq.s32.totalorder %s20, 0
      %p188 = por %p186, %p187
      %p189 = scmp.ne.s32.totalorder %s175, %s176
      %p190 = scmp.eq.s32.totalorder %s21, 1
      %p191 = por %p189, %p190
      %p193 = scmp.ne.s32.totalorder %s176, %s192
      %p194 = scmp.eq.s32.totalorder %s21, 0
      %p195 = por %p193, %p194
      %s196 = ssub.s32 %s15, %s22
      %p197 = scmp.eq.s32.totalorder %s196, 0
      %s199 = sadd.s32 %s198, 1
      %s200 = scalar_select %p197, %s198, %s199
      %p203 = pneg %p197
      %p204 = scmp.eq.s32.totalorder %s15, 1
      %p205 = por %p203, %p204
      %p206 = scmp.ne.s32.totalorder %s198, %s201
      %p207 = scmp.eq.s32.totalorder %s15, 0
      %p208 = por %p206, %p207
      %p209 = scmp.ne.s32.totalorder %s198, %s201
      %p210 = scmp.eq.s32.totalorder %s20, 1
      %p211 = por %p209, %p210
      %p212 = scmp.ne.s32.totalorder %s201, %s202
      %p213 = scmp.eq.s32.totalorder %s20, 0
      %p214 = por %p212, %p213
      %p215 = scmp.ne.s32.totalorder %s201, %s202
      %p216 = scmp.eq.s32.totalorder %s21, 1
      %p217 = por %p215, %p216
      %p219 = scmp.ne.s32.totalorder %s202, %s218
      %p220 = scmp.eq.s32.totalorder %s21, 0
      %p221 = por %p219, %p220
      %p222 = scmp.le.s32.totalorder 1, %s15
      %p223 = scmp.lt.s32.totalorder %s15, 3
      %p224 = pnand %p222, %p223
      %p225 = pneg %p224
      // Predicated region
      $region9: #{closed_call.8} parent=5 // pred_check
        _
      $region10: #{closed_call.8} parent=5 // pred_check_branch
        %227 = sbr.rel (%p224) target = $region12
      $region11: #{closed_call.8} parent=5 // pred_region
        %s228 = ssub.s32 %s15, 1
        // Predicated region
        $region13: #{closed_call.8} parent=11 // pred_check
          %p229 = pneg %p36
        $region14: #{closed_call.8} parent=11 // pred_check_branch
          %231 = sbr.rel (%p229) target = $region16
        $region15: #{closed_call.8} parent=11 // pred_region
          %233 = vsyncadd [#allocation7], 0
          %s235 = sshll.u32 %s0, 4
          %s236 = int_to_ptr.vmem [resolvable:$true] %s235
          %238 = dma.vmem_to_smem %s236, 16, [#allocation6], [#allocation7]
        $region16: #{closed_call.8} parent=11 // pred_fallthru
          _
        // Predicated region
        $region17: #{closed_call.8} parent=11 // pred_check
          %p239 = pneg %p57
        $region18: #{closed_call.8} parent=11 // pred_check_branch
          %241 = sbr.rel (%p239) target = $region20
        $region19: #{closed_call.8} parent=11 // pred_region
          _
        $region20: #{closed_call.8} parent=11 // pred_fallthru
          _
        // Predicated region
        $region21: #{closed_call.8} parent=11 // pred_check
          %p242 = pneg %p78
        $region22: #{closed_call.8} parent=11 // pred_check_branch
          %244 = sbr.rel (%p242) target = $region24
        $region23: #{closed_call.8} parent=11 // pred_region
          _
        $region24: #{closed_call.8} parent=11 // pred_fallthru
          _
        // Predicated region
        $region25: #{closed_call.8} parent=11 // pred_check
          %p245 = pneg %p99
        $region26: #{closed_call.8} parent=11 // pred_check_branch
          %247 = sbr.rel (%p245) target = $region28
        $region27: #{closed_call.8} parent=11 // pred_region
          _
        $region28: #{closed_call.8} parent=11 // pred_fallthru
          _
        // Predicated region
        $region29: #{closed_call.8} parent=11 // pred_check
          %p248 = pneg %p120
        $region30: #{closed_call.8} parent=11 // pred_check_branch
          %250 = sbr.rel (%p248) target = $region32
        $region31: #{closed_call.8} parent=11 // pred_region
          _
        $region32: #{closed_call.8} parent=11 // pred_fallthru
          _
        // Predicated region
        $region33: #{closed_call.8} parent=11 // pred_check
          %p251 = pneg %p141
        $region34: #{closed_call.8} parent=11 // pred_check_branch
          %253 = sbr.rel (%p251) target = $region36
        $region35: #{closed_call.8} parent=11 // pred_region
          _
        $region36: #{closed_call.8} parent=11 // pred_fallthru
          _
        // Predicated region
        $region37: #{closed_call.8} parent=11 // pred_check
          %p254 = pneg %p162
        $region38: #{closed_call.8} parent=11 // pred_check_branch
          %256 = sbr.rel (%p254) target = $region40
        $region39: #{closed_call.8} parent=11 // pred_region
          _
        $region40: #{closed_call.8} parent=11 // pred_fallthru
          _
      $region12: #{closed_call.8} parent=5 // pred_fallthru
        _
      %p257 = scmp.lt.s32.totalorder %s15, 2
      // Predicated region
      $region41: #{closed_call.8} parent=5 // pred_check
        %p258 = pneg %p257
      $region42: #{closed_call.8} parent=5 // pred_check_branch
        %260 = sbr.rel (%p258) target = $region44
      $region43: #{closed_call.8} parent=5 // pred_region
        // Predicated region
        $region45: #{closed_call.8} parent=43 // pred_check
          %p261 = pneg %p182
        $region46: #{closed_call.8} parent=43 // pred_check_branch
          %263 = sbr.rel (%p261) target = $region48
        $region47: #{closed_call.8} parent=43 // pred_region
          %p264 = scmp.lt.s32.totalorder %s15, 1
          %s265 = scalar_select %p264, %s15, 1
          %s266 = smul.addr %s265, 2
          %s267 = smul.addr %s266, 4
          %s268 = scalar_lea.vmem %s7, %s267
        $region48: #{closed_call.8} parent=43 // pred_fallthru
          _
      $region44: #{closed_call.8} parent=5 // pred_fallthru
        _
      %p269 = scmp.le.s32.totalorder 1, %s15
      %p270 = scmp.lt.s32.totalorder %s15, 3
      %p271 = pnand %p269, %p270
      %p272 = pneg %p271
      // Predicated region
      $region49: #{closed_call.8} parent=5 // pred_check
        _
      $region50: #{closed_call.8} parent=5 // pred_check_branch
        %274 = sbr.rel (%p271) target = $region52
      $region51: #{closed_call.8} parent=5 // pred_region
        %s275 = ssub.s32 %s15, 1
        // Predicated region
        $region53: #{closed_call.8} parent=51 // pred_check
          %p276 = pneg %p36
        $region54: #{closed_call.8} parent=51 // pred_check_branch
          %278 = sbr.rel (%p276) target = $region56
        $region55: #{closed_call.8} parent=51 // pred_region
          %280 = dma.done [#allocation7], 16
        $region56: #{closed_call.8} parent=51 // pred_fallthru
          _
        %281 = sfence
        %p282 = pneg %p36
        %p283 = pneg %p33
        %p284 = pneg %p57
        %p285 = pneg %p54
        %p286 = pneg %p78
        %p287 = pneg %p75
        %p288 = pneg %p99
        %p289 = pneg %p96
        %p290 = pneg %p120
        %p291 = pneg %p117
        %p292 = pneg %p141
        %p293 = pneg %p138
        %p294 = pneg %p162
        %p295 = pneg %p159
        %p296 = scmp.lt.s32.totalorder %s20, 1
        %s297 = scalar_select %p296, %s20, 1
        %s298 = smul.addr %s297, 2
        %s299 = smul.addr %s298, 4
        %s300 = scalar_lea.vmem %s7, %s299
        %p301 = pneg %p188
        %p302 = pneg %p185
        %p303 = pneg %p214
        %p304 = pneg %p211
        %p305 = scmp.lt.s32.totalorder %s20, 1
        %s306 = scalar_select %p305, %s20, 1
        %s307 = smul.addr %s306, 2
        %s308 = smul.addr %s307, 4
        %s309 = scalar_lea.vmem %s8, %s308
        %p310 = scmp.lt.s32.totalorder %s20, 1
        %s311 = scalar_select %p310, %s20, 1
        %s312 = smul.addr %s311, 2
        %s313 = smul.addr %s312, 4
        %s314 = scalar_lea.vmem %s7, %s313
        %p315 = scmp.lt.s32.totalorder %s20, 1
        %s316 = scalar_select %p315, %s20, 1
        %s317 = smul.addr %s316, 2
        %s318 = smul.addr %s317, 4
        %s319 = scalar_lea.vmem %s8, %s318
        %320 = vst [vmem:[#allocation2] sm:$0xff] 0.0
        %321 = vst [vmem:[#allocation2 + $0x8] sm:$0xff] 0.0
        %322 = vst [vmem:[#allocation3] sm:$0xff] 0.0
        %323 = vst [vmem:[#allocation3 + $0x8] sm:$0xff] 0.0
        %324 = vst [vmem:[#allocation3 + $0x10] sm:$0xff] 0.0
        %325 = vst [vmem:[#allocation3 + $0x18] sm:$0xff] 0.0
        %326 = vst [vmem:[#allocation3 + $0x20] sm:$0xff] 0.0
        %327 = vst [vmem:[#allocation3 + $0x28] sm:$0xff] 0.0
        %328 = vst [vmem:[#allocation3 + $0x30] sm:$0xff] 0.0
        %329 = vst [vmem:[#allocation3 + $0x38] sm:$0xff] 0.0
        %330 = vst [vmem:[#allocation4] sm:$0xff] 0.0
        %331 = vst [vmem:[#allocation4 + $0x8] sm:$0xff] 0.0
        %332 = vst [vmem:[#allocation4 + $0x10] sm:$0xff] 0.0
        %333 = vst [vmem:[#allocation4 + $0x18] sm:$0xff] 0.0
        %334 = vst [vmem:[#allocation4 + $0x20] sm:$0xff] 0.0
        %335 = vst [vmem:[#allocation4 + $0x28] sm:$0xff] 0.0
        %336 = vst [vmem:[#allocation4 + $0x30] sm:$0xff] 0.0
        %337 = vst [vmem:[#allocation4 + $0x38] sm:$0xff] 0.0
        %338 = vst [vmem:[#allocation4 + $0x40] sm:$0xff] 0.0
        %339 = vst [vmem:[#allocation4 + $0x48] sm:$0xff] 0.0
        %340 = vst [vmem:[#allocation4 + $0x50] sm:$0xff] 0.0
        %341 = vst [vmem:[#allocation4 + $0x58] sm:$0xff] 0.0
        %342 = vst [vmem:[#allocation4 + $0x60] sm:$0xff] 0.0
        %343 = vst [vmem:[#allocation4 + $0x68] sm:$0xff] 0.0
        %344 = vst [vmem:[#allocation4 + $0x70] sm:$0xff] 0.0
        %345 = vst [vmem:[#allocation4 + $0x78] sm:$0xff] 0.0
        %346 = vst [vmem:[#allocation4 + $0x80] sm:$0xff] 0.0
        %347 = vst [vmem:[#allocation4 + $0x88] sm:$0xff] 0.0
        %v348 = vld [vmem:[%s314] sm:$0xff]
        %v349 = vld [vmem:[%s2] sm:$0xff]
        %v350 = vld [vmem:[%s2 + $0x8] sm:$0xff]
        %v351 = vld [vmem:[%s2 + $0x10] sm:$0xff]
        %v352 = vld [vmem:[%s2 + $0x18] sm:$0xff]
        %s353 = scalar_lea.vmem %s2, 32
        %v354 = vld [vmem:[%s353] sm:$0xff]
        %v355 = vld [vmem:[%s353 + $0x8] sm:$0xff]
        %v356 = vld [vmem:[%s353 + $0x10] sm:$0xff]
        %v357 = vld [vmem:[%s353 + $0x18] sm:$0xff]
        %358 = vst [vmem:[#allocation2 + $0x4] sm:$0xff] %v348
        %v359 = vld [vmem:[#allocation2] sm:$0xff]
        %v360 = vld [vmem:[#allocation2 + $0x8] sm:$0xf]
        %v363 = vrot.slane %v350, 4
        %vm364 = vcmask 1043456
        %v365 = vsel %vm364, %v349, %v363
        %366 = vrot.lane.b32.xlu0 %v365, 111
        %v367 = vpop.permute.xlu0 %366
        %v368 = vrot.slane %v367, 4
        %vm369 = vcmask 908288
        %v370 = vsel %vm369, %v368, %v367
        %v373 = vmul.f32 %v359, %v370
        %v374 = vmul.f32 %v360, %v368
        %377 = vst [vmem:[#allocation1] ss:$2 sm:$0xff] %v373
        %s378 = scalar_lea.vmem [#allocation1], 16
        %379 = vst [vmem:[%s378] ss:$2 sm:$0xff] %v374
        %v380 = vld.sshfl [vmem:[#allocation1] sm:$0xff pattern:$0x75316420]
        %v381 = vld.sshfl [vmem:[#allocation1 + $0x8] sm:$0xff pattern:$0x75316420]
        %v382 = vld.sshfl [vmem:[#allocation1 + $0x10] sm:$0xff pattern:$0x75316420]
        %383 = vrot.lane.b32.xlu0 %v380, 17
        %v384 = vpop.permute.xlu0 %383
        %385 = vrot.lane.b32.xlu0 %v381, 17
        %v386 = vpop.permute.xlu0 %385
        %387 = vrot.lane.b32.xlu0 %v382, 17
        %v388 = vpop.permute.xlu0 %387
        %vm389 = vcmask 138240
        %v390 = vsel %vm389, %v384, %v386
        %v391 = vsel %vm389, %v386, %v388
        %394 = vst [vmem:[#allocation4] sm:$0xf] %v390
        %395 = vst [vmem:[#allocation4 + $0x8] sm:$0xf] %v391
        %v396 = vld [vmem:[#allocation2] sm:$0xff]
        %v397 = vld [vmem:[#allocation2 + $0x8] sm:$0xf]
        %400 = vst [vmem:[#allocation1] ss:$2 sm:$0xff] %v396
        %s401 = scalar_lea.vmem [#allocation1], 16
        %402 = vst [vmem:[%s401] ss:$2 sm:$0xff] %v397
        %v403 = vld.sshfl [vmem:[#allocation1] sm:$0xff pattern:$0x75316420]
        %v404 = vld.sshfl [vmem:[#allocation1 + $0x8] sm:$0xff pattern:$0x75316420]
        %v405 = vld.sshfl [vmem:[#allocation1 + $0x10] sm:$0xff pattern:$0x75316420]
        %406 = vrot.lane.b32.xlu0 %v403, 16
        %v407 = vpop.permute.xlu0 %406
        %408 = vrot.lane.b32.xlu0 %v404, 16
        %v409 = vpop.permute.xlu0 %408
        %410 = vrot.lane.b32.xlu0 %v405, 16
        %v411 = vpop.permute.xlu0 %410
        %vm412 = vcmask 130048
        %v413 = vsel %vm412, %v407, %v409
        %v414 = vsel %vm412, %v409, %v411
        %417 = vst [vmem:[#allocation4 + $0x10] sm:$0xf] %v413
        %418 = vst [vmem:[#allocation4 + $0x18] sm:$0xf] %v414
        %v419 = vld [vmem:[#allocation2] sm:$0xff]
        %v420 = vld [vmem:[#allocation2 + $0x8] sm:$0xf]
        %v423 = vrot.slane %v355, 4
        %v424 = vsel %vm364, %v354, %v423
        %425 = vrot.lane.b32.xlu0 %v424, 113
        %v426 = vpop.permute.xlu0 %425
        %v427 = vrot.slane %v426, 4
        %vm428 = vcmask 924672
        %v429 = vsel %vm428, %v427, %v426
        %v432 = vmul.f32 %v419, %v429
        %v433 = vmul.f32 %v420, %v427
        %436 = vst [vmem:[#allocation1] ss:$2 sm:$0xff] %v432
        %s437 = scalar_lea.vmem [#allocation1], 16
        %438 = vst [vmem:[%s437] ss:$2 sm:$0xff] %v433
        %v439 = vld.sshfl [vmem:[#allocation1] sm:$0xff pattern:$0x75316420]
        %v440 = vld.sshfl [vmem:[#allocation1 + $0x8] sm:$0xff pattern:$0x75316420]
        %v441 = vld.sshfl [vmem:[#allocation1 + $0x10] sm:$0xff pattern:$0x75316420]
        %442 = vrot.lane.b32.xlu0 %v439, 15
        %v443 = vpop.permute.xlu0 %442
        %444 = vrot.lane.b32.xlu0 %v440, 15
        %v445 = vpop.permute.xlu0 %444
        %446 = vrot.lane.b32.xlu0 %v441, 15
        %v447 = vpop.permute.xlu0 %446
        %vm448 = vcmask 121856
        %v449 = vsel %vm448, %v443, %v445
        %v450 = vsel %vm448, %v445, %v447
        %453 = vst [vmem:[#allocation4 + $0x20] sm:$0xf] %v449
        %454 = vst [vmem:[#allocation4 + $0x28] sm:$0xf] %v450
        %v455 = vld [vmem:[#allocation2] sm:$0xff]
        %v456 = vld [vmem:[#allocation2 + $0x8] sm:$0xf]
        %457 = vrot.lane.b32.xlu0 %v365, 127
        %v458 = vpop.permute.xlu0 %457
        %v459 = vrot.slane %v458, 4
        %vm460 = vcmask 1039360
        %v461 = vsel %vm460, %v459, %v458
        %v464 = vmul.f32 %v455, %v461
        %v465 = vmul.f32 %v456, %v459
        %468 = vst [vmem:[#allocation1] ss:$2 sm:$0xff] %v464
        %s469 = scalar_lea.vmem [#allocation1], 16
        %470 = vst [vmem:[%s469] ss:$2 sm:$0xff] %v465
        %v471 = vld.sshfl [vmem:[#allocation1] sm:$0xff pattern:$0x75316420]
        %v472 = vld.sshfl [vmem:[#allocation1 + $0x8] sm:$0xff pattern:$0x75316420]
        %v473 = vld.sshfl [vmem:[#allocation1 + $0x10] sm:$0xff pattern:$0x75316420]
        %474 = vrot.lane.b32.xlu0 %v471, 1
        %v475 = vpop.permute.xlu0 %474
        %476 = vrot.lane.b32.xlu0 %v472, 1
        %v477 = vpop.permute.xlu0 %476
        %478 = vrot.lane.b32.xlu0 %v473, 1
        %v479 = vpop.permute.xlu0 %478
        %vm480 = vcmask 7168
        %v481 = vsel %vm480, %v475, %v477
        %v482 = vsel %vm480, %v477, %v479
        %485 = vst [vmem:[#allocation4 + $0x30] sm:$0xf] %v481
        %486 = vst [vmem:[#allocation4 + $0x38] sm:$0xf] %v482
        %v487 = vld [vmem:[#allocation2 + $0x4] sm:$0xff]
        %489 = vst [vmem:[#allocation1] ss:$2 sm:$0xff] %v487
        %v490 = vld.sshfl [vmem:[#allocation1] sm:$0xff pattern:$0x75316420]
        %v491 = vld.sshfl [vmem:[#allocation1 + $0x8] sm:$0xff pattern:$0x75316420]
        %494 = vst [vmem:[#allocation4 + $0x40] sm:$0xf] %v490
        %495 = vst [vmem:[#allocation4 + $0x48] sm:$0xf] %v491
        %v496 = vld [vmem:[#allocation2 + $0x4] sm:$0xff]
        %v497 = vld [vmem:[#allocation2 + $0xc] sm:$0xf]
        %498 = vrot.lane.b32.xlu0 %v424, 1
        %v499 = vpop.permute.xlu0 %498
        %v500 = vrot.slane %v499, 4
        %v501 = vsel %vm480, %v500, %v499
        %v504 = vmul.f32 %v496, %v501
        %v505 = vmul.f32 %v497, %v500
        %508 = vst [vmem:[#allocation1] ss:$2 sm:$0xff] %v504
        %s509 = scalar_lea.vmem [#allocation1], 16
        %510 = vst [vmem:[%s509] ss:$2 sm:$0xff] %v505
        %v511 = vld.sshfl [vmem:[#allocation1] sm:$0xff pattern:$0x75316420]
        %v512 = vld.sshfl [vmem:[#allocation1 + $0x8] sm:$0xff pattern:$0x75316420]
        %v513 = vld.sshfl [vmem:[#allocation1 + $0x10] sm:$0xff pattern:$0x75316420]
        %514 = vrot.lane.b32.xlu0 %v511, 127
        %v515 = vpop.permute.xlu0 %514
        %516 = vrot.lane.b32.xlu0 %v512, 127
        %v517 = vpop.permute.xlu0 %516
        %518 = vrot.lane.b32.xlu0 %v513, 127
        %v519 = vpop.permute.xlu0 %518
        %v520 = vsel %vm460, %v515, %v517
        %v521 = vsel %vm460, %v517, %v519
        %524 = vst [vmem:[#allocation4 + $0x50] sm:$0xf] %v520
        %525 = vst [vmem:[#allocation4 + $0x58] sm:$0xf] %v521
        %v526 = vld [vmem:[#allocation2 + $0x4] sm:$0xff]
        %v527 = vld [vmem:[#allocation2 + $0xc] sm:$0xf]
        %528 = vrot.lane.b32.xlu0 %v365, 15
        %v529 = vpop.permute.xlu0 %528
        %v530 = vrot.slane %v529, 4
        %v531 = vsel %vm448, %v530, %v529
        %v534 = vmul.f32 %v526, %v531
        %v535 = vmul.f32 %v527, %v530
        %538 = vst [vmem:[#allocation1] ss:$2 sm:$0xff] %v534
        %s539 = scalar_lea.vmem [#allocation1], 16
        %540 = vst [vmem:[%s539] ss:$2 sm:$0xff] %v535
        %v541 = vld.sshfl [vmem:[#allocation1] sm:$0xff pattern:$0x75316420]
        %v542 = vld.sshfl [vmem:[#allocation1 + $0x8] sm:$0xff pattern:$0x75316420]
        %v543 = vld.sshfl [vmem:[#allocation1 + $0x10] sm:$0xff pattern:$0x75316420]
        %544 = vrot.lane.b32.xlu0 %v541, 113
        %v545 = vpop.permute.xlu0 %544
        %546 = vrot.lane.b32.xlu0 %v542, 113
        %v547 = vpop.permute.xlu0 %546
        %548 = vrot.lane.b32.xlu0 %v543, 113
        %v549 = vpop.permute.xlu0 %548
        %v550 = vsel %vm428, %v545, %v547
        %v551 = vsel %vm428, %v547, %v549
        %554 = vst [vmem:[#allocation4 + $0x60] sm:$0xf] %v550
        %555 = vst [vmem:[#allocation4 + $0x68] sm:$0xf] %v551
        %v556 = vld [vmem:[#allocation2 + $0x4] sm:$0xff]
        %v557 = vld [vmem:[#allocation2 + $0xc] sm:$0xf]
        %560 = vst [vmem:[#allocation1] ss:$2 sm:$0xff] %v556
        %s561 = scalar_lea.vmem [#allocation1], 16
        %562 = vst [vmem:[%s561] ss:$2 sm:$0xff] %v557
        %v563 = vld.sshfl [vmem:[#allocation1] sm:$0xff pattern:$0x75316420]
        %v564 = vld.sshfl [vmem:[#allocation1 + $0x8] sm:$0xff pattern:$0x75316420]
        %v565 = vld.sshfl [vmem:[#allocation1 + $0x10] sm:$0xff pattern:$0x75316420]
        %566 = vrot.lane.b32.xlu0 %v563, 112
        %v567 = vpop.permute.xlu0 %566
        %568 = vrot.lane.b32.xlu0 %v564, 112
        %v569 = vpop.permute.xlu0 %568
        %570 = vrot.lane.b32.xlu0 %v565, 112
        %v571 = vpop.permute.xlu0 %570
        %vm572 = vcmask 916480
        %v573 = vsel %vm572, %v567, %v569
        %v574 = vsel %vm572, %v569, %v571
        %577 = vst [vmem:[#allocation4 + $0x70] sm:$0xf] %v573
        %578 = vst [vmem:[#allocation4 + $0x78] sm:$0xf] %v574
        %v579 = vld [vmem:[#allocation2 + $0x4] sm:$0xff]
        %v580 = vld [vmem:[#allocation2 + $0xc] sm:$0xf]
        %581 = vrot.lane.b32.xlu0 %v424, 17
        %v582 = vpop.permute.xlu0 %581
        %v583 = vrot.slane %v582, 4
        %v584 = vsel %vm389, %v583, %v582
        %v587 = vmul.f32 %v579, %v584
        %v588 = vmul.f32 %v580, %v583
        %591 = vst [vmem:[#allocation1] ss:$2 sm:$0xff] %v587
        %s592 = scalar_lea.vmem [#allocation1], 16
        %593 = vst [vmem:[%s592] ss:$2 sm:$0xff] %v588
        %v594 = vld.sshfl [vmem:[#allocation1] sm:$0xff pattern:$0x75316420]
        %v595 = vld.sshfl [vmem:[#allocation1 + $0x8] sm:$0xff pattern:$0x75316420]
        %v596 = vld.sshfl [vmem:[#allocation1 + $0x10] sm:$0xff pattern:$0x75316420]
        %597 = vrot.lane.b32.xlu0 %v594, 111
        %v598 = vpop.permute.xlu0 %597
        %599 = vrot.lane.b32.xlu0 %v595, 111
        %v600 = vpop.permute.xlu0 %599
        %601 = vrot.lane.b32.xlu0 %v596, 111
        %v602 = vpop.permute.xlu0 %601
        %v603 = vsel %vm369, %v598, %v600
        %v604 = vsel %vm369, %v600, %v602
        %607 = vst [vmem:[#allocation4 + $0x80] sm:$0xf] %v603
        %608 = vst [vmem:[#allocation4 + $0x88] sm:$0xf] %v604
        %v609 = vld [vmem:[%s3] sm:$0xff]
        %v610 = vld [vmem:[%s3 + $0x8] sm:$0xff]
        %v611 = vld [vmem:[#allocation4] sm:$0xff]
        %v612 = vld [vmem:[#allocation4 + $0x8] sm:$0xff]
        %v613 = vld [vmem:[#allocation4 + $0x10] sm:$0xff]
        %v614 = vld [vmem:[#allocation4 + $0x18] sm:$0xff]
        %v615 = vld [vmem:[#allocation4 + $0x20] sm:$0xff]
        %v616 = vld [vmem:[#allocation4 + $0x28] sm:$0xff]
        %v617 = vld [vmem:[#allocation4 + $0x30] sm:$0xff]
        %v618 = vld [vmem:[#allocation4 + $0x38] sm:$0xff]
        %v619 = vld [vmem:[#allocation4 + $0x40] sm:$0xff]
        %v620 = vld [vmem:[#allocation4 + $0x48] sm:$0xff]
        %v621 = vld [vmem:[#allocation4 + $0x50] sm:$0xff]
        %v622 = vld [vmem:[#allocation4 + $0x58] sm:$0xff]
        %v623 = vld [vmem:[#allocation4 + $0x60] sm:$0xff]
        %v624 = vld [vmem:[#allocation4 + $0x68] sm:$0xff]
        %v625 = vld [vmem:[#allocation4 + $0x70] sm:$0xff]
        %v626 = vld [vmem:[#allocation4 + $0x78] sm:$0xff]
        %v627 = vld [vmem:[#allocation4 + $0x80] sm:$0xff]
        %v628 = vld [vmem:[#allocation4 + $0x88] sm:$0xff]
        %v629 = vld [vmem:[%s4] sm:$0xff]
        %v630 = vld [vmem:[%s4 + $0x8] sm:$0xff]
        %632 = vset.pattern.permute.xlu0 0
        %633 = vperm.xlu0 %632, %v629
        %v634 = vpop.permute.xlu0 %633
        %637 = vset.pattern.permute.xlu0 0
        %638 = vperm.xlu0 %637, %v630
        %v639 = vpop.permute.xlu0 %638
        %vm641 = vcmask 588800
        %v643 = vsel %vm641, %v609, 0
        %v646 = vsel %vm641, %v610, 0
        %648 = vmatpush.msra.mxu0 0.0
        %649 = vmatpush.msra.mxu0 0.0
        %650 = vmatpush.msra.mxu0 0.0
        %651 = vmatpush.msra.mxu0 0.0
        %652 = vmatpush.msra.mxu0 0.0
        %653 = vmatpush.msra.mxu0 0.0
        %654 = vmatpush.msra.mxu0 0.0
        %655 = vmatpush.msra.mxu0 %v627
        %656 = vmatpush.msra.mxu0 %v625
        %657 = vmatpush.msra.mxu0 %v623
        %658 = vmatpush.msra.mxu0 %v621
        %659 = vmatpush.msra.mxu0 %v619
        %660 = vmatpush.msra.mxu0 %v617
        %661 = vmatpush.msra.mxu0 %v615
        %662 = vmatpush.msra.mxu0 %v613
        %663 = vmatpush.msra.mxu0 %v611
        %664 = vmatmul.f32.gmra.mxu0 %v643
        %v665 = vpop.f32.mrf.mxu0
        %v666 = vadd.f32 %v634, %v665
        %667 = vmatmul.f32.gmra.mxu0 %v646
        %v668 = vpop.f32.mrf.mxu0
        %v669 = vadd.f32 %v639, %v668
        %670 = vdwg.mxu0
        %671 = vmatpush.msra.mxu0 0.0
        %672 = vmatpush.msra.mxu0 0.0
        %673 = vmatpush.msra.mxu0 0.0
        %674 = vmatpush.msra.mxu0 0.0
        %675 = vmatpush.msra.mxu0 0.0
        %676 = vmatpush.msra.mxu0 0.0
        %677 = vmatpush.msra.mxu0 0.0
        %678 = vmatpush.msra.mxu0 %v628
        %679 = vmatpush.msra.mxu0 %v626
        %680 = vmatpush.msra.mxu0 %v624
        %681 = vmatpush.msra.mxu0 %v622
        %682 = vmatpush.msra.mxu0 %v620
        %683 = vmatpush.msra.mxu0 %v618
        %684 = vmatpush.msra.mxu0 %v616
        %685 = vmatpush.msra.mxu0 %v614
        %686 = vmatpush.msra.mxu0 %v612
        %687 = vmatmul.f32.gmra.mxu0 %v643
        %v688 = vpop.f32.mrf.mxu0
        %v689 = vadd.f32 %v634, %v688
        %690 = vmatmul.f32.gmra.mxu0 %v646
        %v691 = vpop.f32.mrf.mxu0
        %v692 = vadd.f32 %v639, %v691
        %693 = vdwg.mxu0
        %v694 = vld [vmem:[%s1] sm:$0xff]
        %v695 = vld [vmem:[%s1 + $0x8] sm:$0xff]
        %697 = vset.pattern.permute.xlu0 0
        %698 = vperm.xlu0 %697, %v694
        %v699 = vpop.permute.xlu0 %698
        %702 = vset.pattern.permute.xlu0 0
        %703 = vperm.xlu0 %702, %v695
        %v704 = vpop.permute.xlu0 %703
        %v706 = vadd.f32 %v666, %v699
        %v707 = vadd.f32 %v689, %v699
        %v708 = vadd.f32 %v669, %v704
        %v709 = vadd.f32 %v692, %v704
        %v710 = vsub.f32 0.0, %v706
        %v711 = vsub.f32 0.0, %v707
        %v712 = vsub.f32 0.0, %v708
        %v713 = vsub.f32 0.0, %v709
        %v714 = vmul.f32 %v710, 1.442695
        %v715 = vpow.pop %v714
        %v716 = vmul.f32 %v711, 1.442695
        %v717 = vpow.pop %v716
        %v718 = vmul.f32 %v712, 1.442695
        %v719 = vpow.pop %v718
        %v720 = vmul.f32 %v713, 1.442695
        %v721 = vpow.pop %v720
        %v722 = vadd.f32 %v715, 1.0
        %v723 = vadd.f32 %v717, 1.0
        %v724 = vadd.f32 %v719, 1.0
        %v725 = vadd.f32 %v721, 1.0
        %v726 = vrcp.pop %v722
        %v727 = vmul.f32 %v722, %v726
        %v728 = vsub.f32 1.0, %v727
        %v729 = vmul.f32 %v726, %v728
        %v730 = vadd.f32 %v726, %v729
        %vm731 = vweird.f32 %v722
        %vm732 = vweird.f32 %v726
        %vm733 = vmor %vm731, %vm732
        %v734 = vsel %vm733, %v726, %v730
        %v735 = vand.u32 2147483647, %v722
        %vm736 = vcmp.eq.f32.partialorder %v735, 8.507059e+37
        %v737 = vand.u32 %v722, 2147483648
        %v738 = vor.u32 1.1754944e-38, %v737
        %v739 = vsel %vm736, %v738, %v734
        %v740 = vmul.f32 1.0, %v739
        %v741 = vrcp.pop %v723
        %v742 = vmul.f32 %v723, %v741
        %v743 = vsub.f32 1.0, %v742
        %v744 = vmul.f32 %v741, %v743
        %v745 = vadd.f32 %v741, %v744
        %vm746 = vweird.f32 %v723
        %vm747 = vweird.f32 %v741
        %vm748 = vmor %vm746, %vm747
        %v749 = vsel %vm748, %v741, %v745
        %v750 = vand.u32 2147483647, %v723
        %vm751 = vcmp.eq.f32.partialorder %v750, 8.507059e+37
        %v752 = vand.u32 %v723, 2147483648
        %v753 = vor.u32 1.1754944e-38, %v752
        %v754 = vsel %vm751, %v753, %v749
        %v755 = vmul.f32 1.0, %v754
        %v756 = vrcp.pop %v724
        %v757 = vmul.f32 %v724, %v756
        %v758 = vsub.f32 1.0, %v757
        %v759 = vmul.f32 %v756, %v758
        %v760 = vadd.f32 %v756, %v759
        %vm761 = vweird.f32 %v724
        %vm762 = vweird.f32 %v756
        %vm763 = vmor %vm761, %vm762
        %v764 = vsel %vm763, %v756, %v760
        %v765 = vand.u32 2147483647, %v724
        %vm766 = vcmp.eq.f32.partialorder %v765, 8.507059e+37
        %v767 = vand.u32 %v724, 2147483648
        %v768 = vor.u32 1.1754944e-38, %v767
        %v769 = vsel %vm766, %v768, %v764
        %v770 = vmul.f32 1.0, %v769
        %v771 = vrcp.pop %v725
        %v772 = vmul.f32 %v725, %v771
        %v773 = vsub.f32 1.0, %v772
        %v774 = vmul.f32 %v771, %v773
        %v775 = vadd.f32 %v771, %v774
        %vm776 = vweird.f32 %v725
        %vm777 = vweird.f32 %v771
        %vm778 = vmor %vm776, %vm777
        %v779 = vsel %vm778, %v771, %v775
        %v780 = vand.u32 2147483647, %v725
        %vm781 = vcmp.eq.f32.partialorder %v780, 8.507059e+37
        %v782 = vand.u32 %v725, 2147483648
        %v783 = vor.u32 1.1754944e-38, %v782
        %v784 = vsel %vm781, %v783, %v779
        %v785 = vmul.f32 1.0, %v784
        %v786 = vmul.f32 %v706, %v740
        %v787 = vmul.f32 %v707, %v755
        %v788 = vmul.f32 %v708, %v770
        %v789 = vmul.f32 %v709, %v785
        %790 = vst [vmem:[#allocation3 + $0x8] sm:$0xff] %v786
        %791 = vst [vmem:[#allocation3 + $0x10] sm:$0xff] %v787
        %792 = vst [vmem:[#allocation3 + $0x28] sm:$0xff] %v788
        %793 = vst [vmem:[#allocation3 + $0x30] sm:$0xff] %v789
        %v794 = vld [vmem:[#allocation3] sm:$0xff]
        %v795 = vld [vmem:[#allocation3 + $0x8] sm:$0xff]
        %v796 = vld [vmem:[#allocation3 + $0x10] sm:$0xff]
        %v797 = vld [vmem:[#allocation3 + $0x20] sm:$0xff]
        %v798 = vld [vmem:[#allocation3 + $0x28] sm:$0xff]
        %v799 = vld [vmem:[#allocation3 + $0x30] sm:$0xff]
        %802 = vrot.lane.b32.xlu0 %v349, 111
        %v803 = vpop.permute.xlu0 %802
        %804 = vrot.lane.b32.xlu0 %v350, 111
        %v805 = vpop.permute.xlu0 %804
        %806 = vrot.lane.b32.xlu0 %v351, 111
        %v807 = vpop.permute.xlu0 %806
        %808 = vrot.lane.b32.xlu0 %v352, 111
        %v809 = vpop.permute.xlu0 %808
        %v810 = vsel %vm369, %v803, %v805
        %v811 = vsel %vm369, %v807, %v809
        %v818 = vmul.f32 %v794, %v803
        %v819 = vmul.f32 %v795, %v810
        %v820 = vmul.f32 %v796, %v805
        %v821 = vmul.f32 %v797, %v807
        %v822 = vmul.f32 %v798, %v811
        %v823 = vmul.f32 %v799, %v809
        %830 = vrot.lane.b32.xlu0 %v818, 17
        %v831 = vpop.permute.xlu0 %830
        %832 = vrot.lane.b32.xlu0 %v819, 17
        %v833 = vpop.permute.xlu0 %832
        %834 = vrot.lane.b32.xlu0 %v820, 17
        %v835 = vpop.permute.xlu0 %834
        %836 = vrot.lane.b32.xlu0 %v821, 17
        %v837 = vpop.permute.xlu0 %836
        %838 = vrot.lane.b32.xlu0 %v822, 17
        %v839 = vpop.permute.xlu0 %838
        %840 = vrot.lane.b32.xlu0 %v823, 17
        %v841 = vpop.permute.xlu0 %840
        %v842 = vsel %vm389, %v831, %v833
        %v843 = vsel %vm389, %v833, %v835
        %v844 = vsel %vm389, %v837, %v839
        %v845 = vsel %vm389, %v839, %v841
        %850 = vst [vmem:[#allocation5] sm:$0xff] %v842
        %851 = vst [vmem:[#allocation5 + $0x8] sm:$0xff] %v843
        %852 = vst [vmem:[#allocation5 + $0x10] sm:$0xff] %v844
        %853 = vst [vmem:[#allocation5 + $0x18] sm:$0xff] %v845
        %v854 = vld [vmem:[#allocation3] sm:$0xff]
        %v855 = vld [vmem:[#allocation3 + $0x8] sm:$0xff]
        %v856 = vld [vmem:[#allocation3 + $0x10] sm:$0xff]
        %v857 = vld [vmem:[#allocation3 + $0x20] sm:$0xff]
        %v858 = vld [vmem:[#allocation3 + $0x28] sm:$0xff]
        %v859 = vld [vmem:[#allocation3 + $0x30] sm:$0xff]
        %866 = vrot.lane.b32.xlu0 %v854, 16
        %v867 = vpop.permute.xlu0 %866
        %868 = vrot.lane.b32.xlu0 %v855, 16
        %v869 = vpop.permute.xlu0 %868
        %870 = vrot.lane.b32.xlu0 %v856, 16
        %v871 = vpop.permute.xlu0 %870
        %872 = vrot.lane.b32.xlu0 %v857, 16
        %v873 = vpop.permute.xlu0 %872
        %874 = vrot.lane.b32.xlu0 %v858, 16
        %v875 = vpop.permute.xlu0 %874
        %876 = vrot.lane.b32.xlu0 %v859, 16
        %v877 = vpop.permute.xlu0 %876
        %v878 = vsel %vm412, %v867, %v869
        %v879 = vsel %vm412, %v869, %v871
        %v880 = vsel %vm412, %v873, %v875
        %v881 = vsel %vm412, %v875, %v877
        %886 = vst [vmem:[#allocation5 + $0x20] sm:$0xff] %v878
        %887 = vst [vmem:[#allocation5 + $0x28] sm:$0xff] %v879
        %888 = vst [vmem:[#allocation5 + $0x30] sm:$0xff] %v880
        %889 = vst [vmem:[#allocation5 + $0x38] sm:$0xff] %v881
        %v890 = vld [vmem:[#allocation3] sm:$0xff]
        %v891 = vld [vmem:[#allocation3 + $0x8] sm:$0xff]
        %v892 = vld [vmem:[#allocation3 + $0x10] sm:$0xff]
        %v893 = vld [vmem:[#allocation3 + $0x20] sm:$0xff]
        %v894 = vld [vmem:[#allocation3 + $0x28] sm:$0xff]
        %v895 = vld [vmem:[#allocation3 + $0x30] sm:$0xff]
        %898 = vrot.lane.b32.xlu0 %v354, 113
        %v899 = vpop.permute.xlu0 %898
        %900 = vrot.lane.b32.xlu0 %v355, 113
        %v901 = vpop.permute.xlu0 %900
        %902 = vrot.lane.b32.xlu0 %v356, 113
        %v903 = vpop.permute.xlu0 %902
        %904 = vrot.lane.b32.xlu0 %v357, 113
        %v905 = vpop.permute.xlu0 %904
        %v906 = vsel %vm428, %v899, %v901
        %v907 = vsel %vm428, %v903, %v905
        %v914 = vmul.f32 %v890, %v899
        %v915 = vmul.f32 %v891, %v906
        %v916 = vmul.f32 %v892, %v901
        %v917 = vmul.f32 %v893, %v903
        %v918 = vmul.f32 %v894, %v907
        %v919 = vmul.f32 %v895, %v905
        %926 = vrot.lane.b32.xlu0 %v914, 15
        %v927 = vpop.permute.xlu0 %926
        %928 = vrot.lane.b32.xlu0 %v915, 15
        %v929 = vpop.permute.xlu0 %928
        %930 = vrot.lane.b32.xlu0 %v916, 15
        %v931 = vpop.permute.xlu0 %930
        %932 = vrot.lane.b32.xlu0 %v917, 15
        %v933 = vpop.permute.xlu0 %932
        %934 = vrot.lane.b32.xlu0 %v918, 15
        %v935 = vpop.permute.xlu0 %934
        %936 = vrot.lane.b32.xlu0 %v919, 15
        %v937 = vpop.permute.xlu0 %936
        %v938 = vsel %vm448, %v927, %v929
        %v939 = vsel %vm448, %v929, %v931
        %v940 = vsel %vm448, %v933, %v935
        %v941 = vsel %vm448, %v935, %v937
        %946 = vst [vmem:[#allocation5 + $0x40] sm:$0xff] %v938
        %947 = vst [vmem:[#allocation5 + $0x48] sm:$0xff] %v939
        %948 = vst [vmem:[#allocation5 + $0x50] sm:$0xff] %v940
        %949 = vst [vmem:[#allocation5 + $0x58] sm:$0xff] %v941
        %v950 = vld [vmem:[#allocation3] sm:$0xff]
        %v951 = vld [vmem:[#allocation3 + $0x8] sm:$0xff]
        %v952 = vld [vmem:[#allocation3 + $0x10] sm:$0xff]
        %v953 = vld [vmem:[#allocation3 + $0x20] sm:$0xff]
        %v954 = vld [vmem:[#allocation3 + $0x28] sm:$0xff]
        %v955 = vld [vmem:[#allocation3 + $0x30] sm:$0xff]
        %956 = vrot.lane.b32.xlu0 %v349, 127
        %v957 = vpop.permute.xlu0 %956
        %958 = vrot.lane.b32.xlu0 %v350, 127
        %v959 = vpop.permute.xlu0 %958
        %960 = vrot.lane.b32.xlu0 %v351, 127
        %v961 = vpop.permute.xlu0 %960
        %962 = vrot.lane.b32.xlu0 %v352, 127
        %v963 = vpop.permute.xlu0 %962
        %v964 = vsel %vm460, %v957, %v959
        %v965 = vsel %vm460, %v961, %v963
        %v972 = vmul.f32 %v950, %v957
        %v973 = vmul.f32 %v951, %v964
        %v974 = vmul.f32 %v952, %v959
        %v975 = vmul.f32 %v953, %v961
        %v976 = vmul.f32 %v954, %v965
        %v977 = vmul.f32 %v955, %v963
        %984 = vrot.lane.b32.xlu0 %v972, 1
        %v985 = vpop.permute.xlu0 %984
        %986 = vrot.lane.b32.xlu0 %v973, 1
        %v987 = vpop.permute.xlu0 %986
        %988 = vrot.lane.b32.xlu0 %v974, 1
        %v989 = vpop.permute.xlu0 %988
        %990 = vrot.lane.b32.xlu0 %v975, 1
        %v991 = vpop.permute.xlu0 %990
        %992 = vrot.lane.b32.xlu0 %v976, 1
        %v993 = vpop.permute.xlu0 %992
        %994 = vrot.lane.b32.xlu0 %v977, 1
        %v995 = vpop.permute.xlu0 %994
        %v996 = vsel %vm480, %v985, %v987
        %v997 = vsel %vm480, %v987, %v989
        %v998 = vsel %vm480, %v991, %v993
        %v999 = vsel %vm480, %v993, %v995
        %1004 = vst [vmem:[#allocation5 + $0x60] sm:$0xff] %v996
        %1005 = vst [vmem:[#allocation5 + $0x68] sm:$0xff] %v997
        %1006 = vst [vmem:[#allocation5 + $0x70] sm:$0xff] %v998
        %1007 = vst [vmem:[#allocation5 + $0x78] sm:$0xff] %v999
        %v1008 = vld [vmem:[#allocation3 + $0x8] sm:$0xff]
        %v1009 = vld [vmem:[#allocation3 + $0x10] sm:$0xff]
        %v1010 = vld [vmem:[#allocation3 + $0x28] sm:$0xff]
        %v1011 = vld [vmem:[#allocation3 + $0x30] sm:$0xff]
        %1012 = vst [vmem:[#allocation5 + $0x80] sm:$0xff] %v1008
        %1013 = vst [vmem:[#allocation5 + $0x88] sm:$0xff] %v1009
        %1014 = vst [vmem:[#allocation5 + $0x90] sm:$0xff] %v1010
        %1015 = vst [vmem:[#allocation5 + $0x98] sm:$0xff] %v1011
        %v1016 = vld [vmem:[#allocation3 + $0x8] sm:$0xff]
        %v1017 = vld [vmem:[#allocation3 + $0x10] sm:$0xff]
        %v1018 = vld [vmem:[#allocation3 + $0x18] sm:$0xff]
        %v1019 = vld [vmem:[#allocation3 + $0x28] sm:$0xff]
        %v1020 = vld [vmem:[#allocation3 + $0x30] sm:$0xff]
        %v1021 = vld [vmem:[#allocation3 + $0x38] sm:$0xff]
        %1022 = vrot.lane.b32.xlu0 %v354, 1
        %v1023 = vpop.permute.xlu0 %1022
        %1024 = vrot.lane.b32.xlu0 %v355, 1
        %v1025 = vpop.permute.xlu0 %1024
        %1026 = vrot.lane.b32.xlu0 %v356, 1
        %v1027 = vpop.permute.xlu0 %1026
        %1028 = vrot.lane.b32.xlu0 %v357, 1
        %v1029 = vpop.permute.xlu0 %1028
        %v1030 = vsel %vm480, %v1023, %v1025
        %v1031 = vsel %vm480, %v1027, %v1029
        %v1038 = vmul.f32 %v1016, %v1023
        %v1039 = vmul.f32 %v1017, %v1030
        %v1040 = vmul.f32 %v1018, %v1025
        %v1041 = vmul.f32 %v1019, %v1027
        %v1042 = vmul.f32 %v1020, %v1031
        %v1043 = vmul.f32 %v1021, %v1029
        %1050 = vrot.lane.b32.xlu0 %v1038, 127
        %v1051 = vpop.permute.xlu0 %1050
        %1052 = vrot.lane.b32.xlu0 %v1039, 127
        %v1053 = vpop.permute.xlu0 %1052
        %1054 = vrot.lane.b32.xlu0 %v1040, 127
        %v1055 = vpop.permute.xlu0 %1054
        %1056 = vrot.lane.b32.xlu0 %v1041, 127
        %v1057 = vpop.permute.xlu0 %1056
        %1058 = vrot.lane.b32.xlu0 %v1042, 127
        %v1059 = vpop.permute.xlu0 %1058
        %1060 = vrot.lane.b32.xlu0 %v1043, 127
        %v1061 = vpop.permute.xlu0 %1060
        %v1062 = vsel %vm460, %v1051, %v1053
        %v1063 = vsel %vm460, %v1053, %v1055
        %v1064 = vsel %vm460, %v1057, %v1059
        %v1065 = vsel %vm460, %v1059, %v1061
        %1070 = vst [vmem:[#allocation5 + $0xa0] sm:$0xff] %v1062
        %1071 = vst [vmem:[#allocation5 + $0xa8] sm:$0xff] %v1063
        %1072 = vst [vmem:[#allocation5 + $0xb0] sm:$0xff] %v1064
        %1073 = vst [vmem:[#allocation5 + $0xb8] sm:$0xff] %v1065
        %v1074 = vld [vmem:[#allocation3 + $0x8] sm:$0xff]
        %v1075 = vld [vmem:[#allocation3 + $0x10] sm:$0xff]
        %v1076 = vld [vmem:[#allocation3 + $0x18] sm:$0xff]
        %v1077 = vld [vmem:[#allocation3 + $0x28] sm:$0xff]
        %v1078 = vld [vmem:[#allocation3 + $0x30] sm:$0xff]
        %v1079 = vld [vmem:[#allocation3 + $0x38] sm:$0xff]
        %1080 = vrot.lane.b32.xlu0 %v349, 15
        %v1081 = vpop.permute.xlu0 %1080
        %1082 = vrot.lane.b32.xlu0 %v350, 15
        %v1083 = vpop.permute.xlu0 %1082
        %1084 = vrot.lane.b32.xlu0 %v351, 15
        %v1085 = vpop.permute.xlu0 %1084
        %1086 = vrot.lane.b32.xlu0 %v352, 15
        %v1087 = vpop.permute.xlu0 %1086
        %v1088 = vsel %vm448, %v1081, %v1083
        %v1089 = vsel %vm448, %v1085, %v1087
        %v1096 = vmul.f32 %v1074, %v1081
        %v1097 = vmul.f32 %v1075, %v1088
        %v1098 = vmul.f32 %v1076, %v1083
        %v1099 = vmul.f32 %v1077, %v1085
        %v1100 = vmul.f32 %v1078, %v1089
        %v1101 = vmul.f32 %v1079, %v1087
        %1108 = vrot.lane.b32.xlu0 %v1096, 113
        %v1109 = vpop.permute.xlu0 %1108
        %1110 = vrot.lane.b32.xlu0 %v1097, 113
        %v1111 = vpop.permute.xlu0 %1110
        %1112 = vrot.lane.b32.xlu0 %v1098, 113
        %v1113 = vpop.permute.xlu0 %1112
        %1114 = vrot.lane.b32.xlu0 %v1099, 113
        %v1115 = vpop.permute.xlu0 %1114
        %1116 = vrot.lane.b32.xlu0 %v1100, 113
        %v1117 = vpop.permute.xlu0 %1116
        %1118 = vrot.lane.b32.xlu0 %v1101, 113
        %v1119 = vpop.permute.xlu0 %1118
        %v1120 = vsel %vm428, %v1109, %v1111
        %v1121 = vsel %vm428, %v1111, %v1113
        %v1122 = vsel %vm428, %v1115, %v1117
        %v1123 = vsel %vm428, %v1117, %v1119
        %1128 = vst [vmem:[#allocation5 + $0xc0] sm:$0xff] %v1120
        %1129 = vst [vmem:[#allocation5 + $0xc8] sm:$0xff] %v1121
        %1130 = vst [vmem:[#allocation5 + $0xd0] sm:$0xff] %v1122
        %1131 = vst [vmem:[#allocation5 + $0xd8] sm:$0xff] %v1123
        %v1132 = vld [vmem:[#allocation3 + $0x8] sm:$0xff]
        %v1133 = vld [vmem:[#allocation3 + $0x10] sm:$0xff]
        %v1134 = vld [vmem:[#allocation3 + $0x18] sm:$0xff]
        %v1135 = vld [vmem:[#allocation3 + $0x28] sm:$0xff]
        %v1136 = vld [vmem:[#allocation3 + $0x30] sm:$0xff]
        %v1137 = vld [vmem:[#allocation3 + $0x38] sm:$0xff]
        %1144 = vrot.lane.b32.xlu0 %v1132, 112
        %v1145 = vpop.permute.xlu0 %1144
        %1146 = vrot.lane.b32.xlu0 %v1133, 112
        %v1147 = vpop.permute.xlu0 %1146
        %1148 = vrot.lane.b32.xlu0 %v1134, 112
        %v1149 = vpop.permute.xlu0 %1148
        %1150 = vrot.lane.b32.xlu0 %v1135, 112
        %v1151 = vpop.permute.xlu0 %1150
        %1152 = vrot.lane.b32.xlu0 %v1136, 112
        %v1153 = vpop.permute.xlu0 %1152
        %1154 = vrot.lane.b32.xlu0 %v1137, 112
        %v1155 = vpop.permute.xlu0 %1154
        %v1156 = vsel %vm572, %v1145, %v1147
        %v1157 = vsel %vm572, %v1147, %v1149
        %v1158 = vsel %vm572, %v1151, %v1153
        %v1159 = vsel %vm572, %v1153, %v1155
        %1164 = vst [vmem:[#allocation5 + $0xe0] sm:$0xff] %v1156
        %1165 = vst [vmem:[#allocation5 + $0xe8] sm:$0xff] %v1157
        %1166 = vst [vmem:[#allocation5 + $0xf0] sm:$0xff] %v1158
        %1167 = vst [vmem:[#allocation5 + $0xf8] sm:$0xff] %v1159
        %v1168 = vld [vmem:[#allocation3 + $0x8] sm:$0xff]
        %v1169 = vld [vmem:[#allocation3 + $0x10] sm:$0xff]
        %v1170 = vld [vmem:[#allocation3 + $0x18] sm:$0xff]
        %v1171 = vld [vmem:[#allocation3 + $0x28] sm:$0xff]
        %v1172 = vld [vmem:[#allocation3 + $0x30] sm:$0xff]
        %v1173 = vld [vmem:[#allocation3 + $0x38] sm:$0xff]
        %1174 = vrot.lane.b32.xlu0 %v354, 17
        %v1175 = vpop.permute.xlu0 %1174
        %1176 = vrot.lane.b32.xlu0 %v355, 17
        %v1177 = vpop.permute.xlu0 %1176
        %1178 = vrot.lane.b32.xlu0 %v356, 17
        %v1179 = vpop.permute.xlu0 %1178
        %1180 = vrot.lane.b32.xlu0 %v357, 17
        %v1181 = vpop.permute.xlu0 %1180
        %v1182 = vsel %vm389, %v1175, %v1177
        %v1183 = vsel %vm389, %v1179, %v1181
        %v1190 = vmul.f32 %v1168, %v1175
        %v1191 = vmul.f32 %v1169, %v1182
        %v1192 = vmul.f32 %v1170, %v1177
        %v1193 = vmul.f32 %v1171, %v1179
        %v1194 = vmul.f32 %v1172, %v1183
        %v1195 = vmul.f32 %v1173, %v1181
        %1202 = vrot.lane.b32.xlu0 %v1190, 111
        %v1203 = vpop.permute.xlu0 %1202
        %1204 = vrot.lane.b32.xlu0 %v1191, 111
        %v1205 = vpop.permute.xlu0 %1204
        %1206 = vrot.lane.b32.xlu0 %v1192, 111
        %v1207 = vpop.permute.xlu0 %1206
        %1208 = vrot.lane.b32.xlu0 %v1193, 111
        %v1209 = vpop.permute.xlu0 %1208
        %1210 = vrot.lane.b32.xlu0 %v1194, 111
        %v1211 = vpop.permute.xlu0 %1210
        %1212 = vrot.lane.b32.xlu0 %v1195, 111
        %v1213 = vpop.permute.xlu0 %1212
        %v1214 = vsel %vm369, %v1203, %v1205
        %v1215 = vsel %vm369, %v1205, %v1207
        %v1216 = vsel %vm369, %v1209, %v1211
        %v1217 = vsel %vm369, %v1211, %v1213
        %1222 = vst [vmem:[#allocation5 + $0x100] sm:$0xff] %v1214
        %1223 = vst [vmem:[#allocation5 + $0x108] sm:$0xff] %v1215
        %1224 = vst [vmem:[#allocation5 + $0x110] sm:$0xff] %v1216
        %1225 = vst [vmem:[#allocation5 + $0x118] sm:$0xff] %v1217
        %v1226 = vld [vmem:[%s5] sm:$0xff]
        %v1227 = vld [vmem:[%s5 + $0x8] sm:$0xff]
        %v1228 = vld [vmem:[#allocation5] sm:$0xff]
        %v1229 = vld [vmem:[#allocation5 + $0x8] sm:$0xff]
        %v1230 = vld [vmem:[#allocation5 + $0x10] sm:$0xff]
        %v1231 = vld [vmem:[#allocation5 + $0x18] sm:$0xff]
        %v1232 = vld [vmem:[#allocation5 + $0x20] sm:$0xff]
        %v1233 = vld [vmem:[#allocation5 + $0x28] sm:$0xff]
        %v1234 = vld [vmem:[#allocation5 + $0x30] sm:$0xff]
        %v1235 = vld [vmem:[#allocation5 + $0x38] sm:$0xff]
        %v1236 = vld [vmem:[#allocation5 + $0x40] sm:$0xff]
        %v1237 = vld [vmem:[#allocation5 + $0x48] sm:$0xff]
        %v1238 = vld [vmem:[#allocation5 + $0x50] sm:$0xff]
        %v1239 = vld [vmem:[#allocation5 + $0x58] sm:$0xff]
        %v1240 = vld [vmem:[#allocation5 + $0x60] sm:$0xff]
        %v1241 = vld [vmem:[#allocation5 + $0x68] sm:$0xff]
        %v1242 = vld [vmem:[#allocation5 + $0x70] sm:$0xff]
        %v1243 = vld [vmem:[#allocation5 + $0x78] sm:$0xff]
        %v1244 = vld [vmem:[#allocation5 + $0x80] sm:$0xff]
        %v1245 = vld [vmem:[#allocation5 + $0x88] sm:$0xff]
        %v1246 = vld [vmem:[#allocation5 + $0x90] sm:$0xff]
        %v1247 = vld [vmem:[#allocation5 + $0x98] sm:$0xff]
        %v1248 = vld [vmem:[#allocation5 + $0xa0] sm:$0xff]
        %v1249 = vld [vmem:[#allocation5 + $0xa8] sm:$0xff]
        %v1250 = vld [vmem:[#allocation5 + $0xb0] sm:$0xff]
        %v1251 = vld [vmem:[#allocation5 + $0xb8] sm:$0xff]
        %v1252 = vld [vmem:[#allocation5 + $0xc0] sm:$0xff]
        %v1253 = vld [vmem:[#allocation5 + $0xc8] sm:$0xff]
        %v1254 = vld [vmem:[#allocation5 + $0xd0] sm:$0xff]
        %v1255 = vld [vmem:[#allocation5 + $0xd8] sm:$0xff]
        %v1256 = vld [vmem:[#allocation5 + $0xe0] sm:$0xff]
        %v1257 = vld [vmem:[#allocation5 + $0xe8] sm:$0xff]
        %v1258 = vld [vmem:[#allocation5 + $0xf0] sm:$0xff]
        %v1259 = vld [vmem:[#allocation5 + $0xf8] sm:$0xff]
        %v1260 = vld [vmem:[#allocation5 + $0x100] sm:$0xff]
        %v1261 = vld [vmem:[#allocation5 + $0x108] sm:$0xff]
        %v1262 = vld [vmem:[#allocation5 + $0x110] sm:$0xff]
        %v1263 = vld [vmem:[#allocation5 + $0x118] sm:$0xff]
        %v1264 = vld [vmem:[%s6] sm:$0xff]
        %1266 = vset.pattern.permute.xlu0 0
        %1267 = vperm.xlu0 %1266, %v1264
        %v1268 = vpop.permute.xlu0 %1267
        %v1271 = vsel %vm412, %v1227, 0
        %1273 = vmatpush.msra.mxu0 %v1258
        %1274 = vmatpush.msra.mxu0 %v1256
        %1275 = vmatpush.msra.mxu0 %v1254
        %1276 = vmatpush.msra.mxu0 %v1252
        %1277 = vmatpush.msra.mxu0 %v1250
        %1278 = vmatpush.msra.mxu0 %v1248
        %1279 = vmatpush.msra.mxu0 %v1246
        %1280 = vmatpush.msra.mxu0 %v1244
        %1281 = vmatpush.msra.mxu0 %v1242
        %1282 = vmatpush.msra.mxu0 %v1240
        %1283 = vmatpush.msra.mxu0 %v1238
        %1284 = vmatpush.msra.mxu0 %v1236
        %1285 = vmatpush.msra.mxu0 %v1234
        %1286 = vmatpush.msra.mxu0 %v1232
        %1287 = vmatpush.msra.mxu0 %v1230
        %1288 = vmatpush.msra.mxu0 %v1228
        %1289 = vmatmul.f32.gmra.mxu0 %v1226
        %v1290 = vpop.f32.mrf.mxu0
        %v1291 = vadd.f32 %v1268, %v1290
        %1292 = vdwg.mxu0
        %1293 = vmatpush.msra.mxu0 0.0
        %1294 = vmatpush.msra.mxu0 0.0
        %1295 = vmatpush.msra.mxu0 0.0
        %1296 = vmatpush.msra.mxu0 0.0
        %1297 = vmatpush.msra.mxu0 0.0
        %1298 = vmatpush.msra.mxu0 0.0
        %1299 = vmatpush.msra.mxu0 0.0
        %1300 = vmatpush.msra.mxu0 0.0
        %1301 = vmatpush.msra.mxu0 0.0
        %1302 = vmatpush.msra.mxu0 0.0
        %1303 = vmatpush.msra.mxu0 0.0
        %1304 = vmatpush.msra.mxu0 0.0
        %1305 = vmatpush.msra.mxu0 0.0
        %1306 = vmatpush.msra.mxu0 0.0
        %1307 = vmatpush.msra.mxu0 %v1262
        %1308 = vmatpush.msra.mxu0 %v1260
        %1309 = vmatmul.f32.gmra.mxu0 %v1271
        %v1310 = vpop.f32.mrf.mxu0
        %v1311 = vadd.f32 %v1291, %v1310
        %1312 = vdwg.mxu0
        %1313 = vmatpush.msra.mxu0 %v1259
        %1314 = vmatpush.msra.mxu0 %v1257
        %1315 = vmatpush.msra.mxu0 %v1255
        %1316 = vmatpush.msra.mxu0 %v1253
        %1317 = vmatpush.msra.mxu0 %v1251
        %1318 = vmatpush.msra.mxu0 %v1249
        %1319 = vmatpush.msra.mxu0 %v1247
        %1320 = vmatpush.msra.mxu0 %v1245
        %1321 = vmatpush.msra.mxu0 %v1243
        %1322 = vmatpush.msra.mxu0 %v1241
        %1323 = vmatpush.msra.mxu0 %v1239
        %1324 = vmatpush.msra.mxu0 %v1237
        %1325 = vmatpush.msra.mxu0 %v1235
        %1326 = vmatpush.msra.mxu0 %v1233
        %1327 = vmatpush.msra.mxu0 %v1231
        %1328 = vmatpush.msra.mxu0 %v1229
        %1329 = vmatmul.f32.gmra.mxu0 %v1226
        %v1330 = vpop.f32.mrf.mxu0
        %v1331 = vadd.f32 %v1268, %v1330
        %1332 = vdwg.mxu0
        %1333 = vmatpush.msra.mxu0 0.0
        %1334 = vmatpush.msra.mxu0 0.0
        %1335 = vmatpush.msra.mxu0 0.0
        %1336 = vmatpush.msra.mxu0 0.0
        %1337 = vmatpush.msra.mxu0 0.0
        %1338 = vmatpush.msra.mxu0 0.0
        %1339 = vmatpush.msra.mxu0 0.0
        %1340 = vmatpush.msra.mxu0 0.0
        %1341 = vmatpush.msra.mxu0 0.0
        %1342 = vmatpush.msra.mxu0 0.0
        %1343 = vmatpush.msra.mxu0 0.0
        %1344 = vmatpush.msra.mxu0 0.0
        %1345 = vmatpush.msra.mxu0 0.0
        %1346 = vmatpush.msra.mxu0 0.0
        %1347 = vmatpush.msra.mxu0 %v1263
        %1348 = vmatpush.msra.mxu0 %v1261
        %1349 = vmatmul.f32.gmra.mxu0 %v1271
        %v1350 = vpop.f32.mrf.mxu0
        %v1351 = vadd.f32 %v1331, %v1350
        %1352 = vdwg.mxu0
        %s1353 = sld [smem:[#allocation6]]
        %s1354 = sld [smem:[#allocation6 + $0x1]]
        %s1355 = sld [smem:[#allocation6 + $0x2]]
        %s1356 = sld [smem:[#allocation6 + $0x3]]
        %s1357 = sld [smem:[#allocation6 + $0x4]]
        %v1358 = vstv %s1354
        %v1359 = vmul.f32 %v1358, %v1311
        %v1360 = vmul.f32 %v1358, %v1351
        %v1363 = vrot.slane %v1360, 4
        %v1364 = vsel %vm364, %v1359, %v1363
        %v1366 = vsub.f32 %v348, %v1364
        %v1367 = vstv %s1353
        %v1368 = vmul.f32 %v1366, %v1367
        %v1369 = vmax.f32 %v1368, -1.0
        %v1370 = vmin.f32 %v1369, 1.0
        %v1371 = vsub.f32 %v1370, %v1368
        %v1372 = vstv %s1357
        %v1373 = vmul.f32 %v1371, %v1372
        %v1374 = vadd.f32 %v1368, %v1373
        %v1375 = vstv %s1355
        %v1376 = vmul.f32 %v1375, %v1374
        %v1377 = vstv %s1356
        %v1378 = vmul.f32 %v1377, %v1311
        %v1379 = vmul.f32 %v1377, %v1351
        %v1382 = vrot.slane %v1379, 4
        %v1383 = vsel %vm364, %v1378, %v1382
        %v1385 = vadd.f32 %v1376, %v1383
        %1386 = vst [vmem:[%s319] sm:$0xff] %v1385
        %p1387 = scmp.lt.s32.totalorder %s20, 1
        %s1388 = scalar_select %p1387, %s20, 1
        %s1389 = smul.addr %s1388, 2
        %s1390 = smul.addr %s1389, 4
        %s1391 = scalar_lea.vmem %s8, %s1390
        // Predicated region
        $region57: #{closed_call.8} parent=51 // pred_check
          %p1392 = pneg %p211
        $region58: #{closed_call.8} parent=51 // pred_check_branch
          %1394 = sbr.rel (%p1392) target = $region60
        $region59: #{closed_call.8} parent=51 // pred_region
          _
        $region60: #{closed_call.8} parent=51 // pred_fallthru
          _
      $region52: #{closed_call.8} parent=5 // pred_fallthru
        _
      %p1395 = scmp.le.s32.totalorder 2, %s15
      // Predicated region
      $region61: #{closed_call.8} parent=5 // pred_check
        %p1396 = pneg %p1395
      $region62: #{closed_call.8} parent=5 // pred_check_branch
        %1398 = sbr.rel (%p1396) target = $region64
      $region63: #{closed_call.8} parent=5 // pred_region
        %s1399 = ssub.s32 %s15, 2
        // Predicated region
        $region65: #{closed_call.8} parent=63 // pred_check
          %p1400 = pneg %p217
        $region66: #{closed_call.8} parent=63 // pred_check_branch
          %1402 = sbr.rel (%p1400) target = $region68
        $region67: #{closed_call.8} parent=63 // pred_region
          %p1403 = scmp.lt.s32.totalorder %s21, 1
          %s1404 = scalar_select %p1403, %s21, 1
          %s1405 = smul.addr %s1404, 2
          %s1406 = smul.addr %s1405, 4
          %s1407 = scalar_lea.vmem %s8, %s1406
        $region68: #{closed_call.8} parent=63 // pred_fallthru
          _
      $region64: #{closed_call.8} parent=5 // pred_fallthru
        _
    $region6: #{closed_call.8} parent=1 // loop_footer
      %s19 = sadd.s32 1, %s15
    $region7: #{closed_call.8} parent=1 // loop_footer_branch
      %14 = sbr.rel target = $region3
    $region8: #{closed_call.8} parent=1 // loop_exit
      _
    %1408 = vsyncpa [#allocation7], 1
    %s1409 = scalar_lea.sflag [#allocation7], 1
    %1410 = vsyncpa %s1409, 1

</llo_original>
